<compile_context>
chip_gen: v7x
topology: tpu7x:2x2x1
jax: 0.10.0
libtpu: 0.0.40
codegen_flags: <defaults>
</compile_context>

<pallas_src>
import functools

import jax
import jax.numpy as jnp
from jax.experimental import pallas as pl
from jax.experimental.pallas import tpu as pltpu

IN_FEATURES = 28 * 28   # 784
HIDDEN = 128
OUT_FEATURES = 10


def mlp_kernel(x_ref, w1_ref, b1_ref, w2_ref, b2_ref, out_ref):
    # fc1 + ReLU: f32 MXU matmul, f32 bias + ReLU on the VPU (h never touches HBM).
    h = jnp.dot(x_ref[...], w1_ref[...],
                preferred_element_type=jnp.float32,
                precision=jax.lax.Precision.HIGHEST)
    h = jnp.maximum(h + b1_ref[...], 0.0)
    # fc2: 10-wide output; masked lane stores are fine (store slot has slack here).
    o = jnp.dot(h, w2_ref[...],
                preferred_element_type=jnp.float32,
                precision=jax.lax.Precision.HIGHEST)
    out_ref[...] = (o + b2_ref[...]).astype(out_ref.dtype)


def _round_up(x, m):
    return ((x + m - 1) // m) * m


def _choose_batch_tile(batch, tile_b):
    """16-aligned batch tile <= tile_b, sized from B; >=2 tiles when batch allows
    so both v7x TensorCores get work via the 'parallel' grid axis."""
    min_tiles = 2 if batch >= 32 else 1
    n_tiles = max(min_tiles, -(-batch // tile_b))
    tb = _round_up(-(-batch // n_tiles), 16)
    n_tiles = -(-batch // tb)
    return tb, n_tiles


@functools.partial(jax.jit, static_argnames=("tile_b",))
def net_forward(x, w1, b1, w2, b2, *, tile_b=4096):
    """x: [B, 1, 28, 28] (NCHW) -> logits [B, 10].

    w1: [784, 128], b1: [1, 128], w2: [128, 10], b2: [1, 10]
    (weights stored as [in, out]; equivalent to PyTorch's x @ W.T).
    """
    B = x.shape[0]
    x_flat = x.reshape(B, -1).astype(jnp.float32)          # nn.Flatten(): [B, 784]

    # --- batch tiling (sublane granularity 8; use 16 alignment), pad B up to tiles ---
    tb, n_tiles = _choose_batch_tile(B, tile_b)
    b_pad = n_tiles * tb
    if b_pad != B:
        x_flat = jnp.pad(x_flat, ((0, b_pad - B), (0, 0)))

    w1 = w1.astype(jnp.float32)
    b1 = b1.astype(jnp.float32).reshape(1, HIDDEN)
    w2 = w2.astype(jnp.float32)
    b2 = b2.astype(jnp.float32).reshape(1, OUT_FEATURES)

    cost = pl.CostEstimate(
        flops=2 * b_pad * (IN_FEATURES * HIDDEN + HIDDEN * OUT_FEATURES),
        transcendentals=0,
        bytes_accessed=(b_pad * IN_FEATURES * 4                  # x (f32, streamed)
                        + IN_FEATURES * HIDDEN * 4 + HIDDEN * 4  # w1, b1
                        + HIDDEN * OUT_FEATURES * 4 + OUT_FEATURES * 4  # w2, b2
                        + b_pad * OUT_FEATURES * 4),             # out (f32, unpadded)
    )

    # VMEM need: double-buffered x/out tiles + h temp + resident weights
    # (the (tb, 10) out tile is lane-padded to 128 inside VMEM).
    vmem_need = (2 * tb * IN_FEATURES * 4
                 + 2 * tb * 128 * 4
                 + tb * HIDDEN * 4
                 + 2 * (IN_FEATURES * HIDDEN + HIDDEN + HIDDEN * 128 + 128) * 4)
    vmem_limit = int(min(max(vmem_need + (8 << 20), 32 << 20), 56 << 20))

    out = pl.pallas_call(
        mlp_kernel,
        out_shape=jax.ShapeDtypeStruct((b_pad, OUT_FEATURES), jnp.float32),
        grid=(n_tiles,),
        in_specs=[
            pl.BlockSpec((tb, IN_FEATURES), lambda i: (i, 0)),       # x tile, dbl-buffered
            pl.BlockSpec((IN_FEATURES, HIDDEN), lambda i: (0, 0)),   # w1 resident
            pl.BlockSpec((1, HIDDEN), lambda i: (0, 0)),             # b1 resident
            pl.BlockSpec((HIDDEN, OUT_FEATURES), lambda i: (0, 0)),  # w2 resident
            pl.BlockSpec((1, OUT_FEATURES), lambda i: (0, 0)),       # b2 resident
        ],
        out_specs=pl.BlockSpec((tb, OUT_FEATURES), lambda i: (i, 0)),
        compiler_params=pltpu.CompilerParams(
            dimension_semantics=("parallel",),       # megacore sharding on v7x
            vmem_limit_bytes=vmem_limit,
        ),
        cost_estimate=cost,
    )(x_flat, w1, b1, w2, b2)

    return out[:B] if b_pad != B else out


def init_params(key):
    """Deterministic init mimicking nn.Linear's uniform(+-1/sqrt(fan_in)) bounds."""
    k1, k2, k3, k4 = jax.random.split(key, 4)
    bound1 = 1.0 / jnp.sqrt(IN_FEATURES)
    bound2 = 1.0 / jnp.sqrt(HIDDEN)
    w1 = jax.random.uniform(k1, (IN_FEATURES, HIDDEN), jnp.float32, -bound1, bound1)
    b1 = jax.random.uniform(k2, (1, HIDDEN), jnp.float32, -bound1, bound1)
    w2 = jax.random.uniform(k3, (HIDDEN, OUT_FEATURES), jnp.float32, -bound2, bound2)
    b2 = jax.random.uniform(k4, (1, OUT_FEATURES), jnp.float32, -bound2, bound2)
    return w1, b1, w2, b2


if __name__ == "__main__":
    key = jax.random.PRNGKey(0)
    kx, kp = jax.random.split(key)
    B = 8
    x = jax.random.normal(kx, (B, 1, 28, 28), dtype=jnp.float32)  # MNIST-style NCHW input
    w1, b1, w2, b2 = init_params(kp)

    logits = net_forward(x, w1, b1, w2, b2)
    logits = jax.block_until_ready(logits)

    # sanity check vs plain-JAX f32 reference (f32 path end-to-end -> tight tolerance)
    x_flat = x.reshape(B, -1)
    hi = jax.lax.Precision.HIGHEST
    ref = jnp.dot(jnp.maximum(jnp.dot(x_flat, w1, precision=hi) + b1, 0.0),
                  w2, precision=hi) + b2
    assert logits.shape == (B, 10)
    assert jnp.allclose(logits, ref, atol=1e-3, rtol=1e-3), (
        f"max abs diff {jnp.max(jnp.abs(logits - ref))}")

    print("KERNEL_OK")
</pallas_src>

<mosaic_0001>
module attributes {stable_mosaic.version = 11 : i64} {
  func.func @mlp_kernel(%arg0: i32, %arg1: memref<16x784xf32, #tpu.memory_space<vmem>>, %arg2: memref<784x128xf32, #tpu.memory_space<vmem>>, %arg3: memref<1x128xf32, #tpu.memory_space<vmem>>, %arg4: memref<128x10xf32, #tpu.memory_space<vmem>>, %arg5: memref<1x10xf32, #tpu.memory_space<vmem>>, %arg6: memref<16x10xf32, #tpu.memory_space<vmem>>) attributes {dimension_semantics = [#tpu.dimension_semantics<parallel>], iteration_bounds = array<i64: 1>, scalar_prefetch = 0 : i64, scratch_operands = 0 : i64, tpu.core_type = #tpu.core_type<tc>, window_params = [{transform_indices = @transform_0, window_bounds = array<i64: 16, 784>}, {pipeline_mode = #tpu.pipeline_mode<synchronous>, transform_indices = @transform_1, window_bounds = array<i64: 784, 128>}, {pipeline_mode = #tpu.pipeline_mode<synchronous>, transform_indices = @transform_2, window_bounds = array<i64: 1, 128>}, {pipeline_mode = #tpu.pipeline_mode<synchronous>, transform_indices = @transform_3, window_bounds = array<i64: 128, 10>}, {pipeline_mode = #tpu.pipeline_mode<synchronous>, transform_indices = @transform_4, window_bounds = array<i64: 1, 10>}, {transform_indices = @transform_5, window_bounds = array<i64: 16, 10>}]} {
    %c0 = arith.constant 0 : index
    %c0_0 = arith.constant 0 : index
    %0 = vector.load %arg1[%c0, %c0_0] : memref<16x784xf32, #tpu.memory_space<vmem>>, vector<16x784xf32>
    %c0_1 = arith.constant 0 : index
    %c0_2 = arith.constant 0 : index
    %1 = vector.load %arg2[%c0_1, %c0_2] : memref<784x128xf32, #tpu.memory_space<vmem>>, vector<784x128xf32>
    %cst = arith.constant dense<0.000000e+00> : vector<16x128xf32>
    %2 = tpu.matmul %0, %1, %cst {dimension_numbers = #tpu.dot_dimension_numbers<[1], [0], [0], [1], [0, 0, 1, 1], [], []>, precision = #tpu.contract_precision<fp32>} : vector<16x784xf32>, vector<784x128xf32>, vector<16x128xf32> -> vector<16x128xf32>
    %c0_3 = arith.constant 0 : index
    %c0_4 = arith.constant 0 : index
    %3 = vector.load %arg3[%c0_3, %c0_4] : memref<1x128xf32, #tpu.memory_space<vmem>>, vector<1x128xf32>
    %4 = vector.broadcast %3 : vector<1x128xf32> to vector<16x128xf32>
    %5 = arith.addf %2, %4 : vector<16x128xf32>
    %cst_5 = arith.constant 0.000000e+00 : f32
    %6 = vector.broadcast %cst_5 : f32 to vector<16x128xf32>
    %7 = arith.maximumf %5, %6 : vector<16x128xf32>
    %c0_6 = arith.constant 0 : index
    %c0_7 = arith.constant 0 : index
    %8 = vector.load %arg4[%c0_6, %c0_7] : memref<128x10xf32, #tpu.memory_space<vmem>>, vector<128x10xf32>
    %cst_8 = arith.constant dense<0.000000e+00> : vector<16x10xf32>
    %9 = tpu.matmul %7, %8, %cst_8 {dimension_numbers = #tpu.dot_dimension_numbers<[1], [0], [0], [1], [0, 0, 1, 1], [], []>, precision = #tpu.contract_precision<fp32>} : vector<16x128xf32>, vector<128x10xf32>, vector<16x10xf32> -> vector<16x10xf32>
    %c0_9 = arith.constant 0 : index
    %c0_10 = arith.constant 0 : index
    %10 = vector.load %arg5[%c0_9, %c0_10] : memref<1x10xf32, #tpu.memory_space<vmem>>, vector<1x10xf32>
    %11 = vector.broadcast %10 : vector<1x10xf32> to vector<16x10xf32>
    %12 = arith.addf %9, %11 : vector<16x10xf32>
    %c0_11 = arith.constant 0 : index
    %c0_12 = arith.constant 0 : index
    %13 = vector.load %arg6[%c0_11, %c0_12] : memref<16x10xf32, #tpu.memory_space<vmem>>, vector<16x10xf32>
    tpu.vector_store %arg6[%c0_11, %c0_12], %12 {strides = array<i32>} : memref<16x10xf32, #tpu.memory_space<vmem>>, vector<16x10xf32>,
    return
  }
  func.func @transform_0(%arg0: i32) -> (i32, i32) {
    %c0_i32 = arith.constant 0 : i32
    %c0_i32_0 = arith.constant 0 : i32
    return %arg0, %c0_i32 : i32, i32
  }
  func.func @transform_1(%arg0: i32) -> (i32, i32) {
    %c0_i32 = arith.constant 0 : i32
    %c0_i32_0 = arith.constant 0 : i32
    %c0_i32_1 = arith.constant 0 : i32
    return %c0_i32, %c0_i32_0 : i32, i32
  }
  func.func @transform_2(%arg0: i32) -> (i32, i32) {
    %c0_i32 = arith.constant 0 : i32
    %c0_i32_0 = arith.constant 0 : i32
    %c0_i32_1 = arith.constant 0 : i32
    return %c0_i32, %c0_i32_0 : i32, i32
  }
  func.func @transform_3(%arg0: i32) -> (i32, i32) {
    %c0_i32 = arith.constant 0 : i32
    %c0_i32_0 = arith.constant 0 : i32
    %c0_i32_1 = arith.constant 0 : i32
    return %c0_i32, %c0_i32_0 : i32, i32
  }
  func.func @transform_4(%arg0: i32) -> (i32, i32) {
    %c0_i32 = arith.constant 0 : i32
    %c0_i32_0 = arith.constant 0 : i32
    %c0_i32_1 = arith.constant 0 : i32
    return %c0_i32, %c0_i32_0 : i32, i32
  }
  func.func @transform_5(%arg0: i32) -> (i32, i32) {
    %c0_i32 = arith.constant 0 : i32
    %c0_i32_0 = arith.constant 0 : i32
    return %arg0, %c0_i32 : i32, i32
  }
}

</mosaic_0001>

<llo_original>
// kernel: net_forward.1
$region0: #{net_forward.1}
  #allocation0 [shape = 'u32[]', space=smem, size = 0x4, offset = 0x4, fixed_abs, tag = 'smem constant byte address 0x4 - core index']
  #allocation1 [shape = 'u32[144,128]{1,0:T(1,128)}', space=vmem, size = 0x12000, scoped, tag = 'internal scratch']
  %s0 = inlined_call_operand.vmem [shape: f32[16,784], index: 0, kind: input, shape index: {}]
  %s1 = inlined_call_operand.vmem [shape: f32[784,128], index: 1, kind: input, shape index: {}]
  %s2 = inlined_call_operand.vmem [shape: f32[1,128], index: 2, kind: input, shape index: {}]
  %s3 = inlined_call_operand.vmem [shape: f32[128,10], index: 3, kind: input, shape index: {}]
  %s4 = inlined_call_operand.vmem [shape: f32[1,10], index: 4, kind: input, shape index: {}]
  %s5 = inlined_call_operand.vmem [shape: f32[16,10], index: 5, kind: output, shape index: {}]
  %s6 = sld [smem:[#allocation0]]
  $region30: #{net_forward.1} parent=0
    _
  %s8 = ssub.s32 1, %s6
  %s9 = scalar_select 0, %s8, %s6
  // Predicated region
  $region2: #{net_forward.1} parent=0 // pred_check
    _
  $region3: #{net_forward.1} parent=0 // pred_check_branch
    %11 = sbr.rel (0) target = $region5
  $region4: #{net_forward.1} parent=0 // pred_region
    _
  $region5: #{net_forward.1} parent=0 // pred_fallthru
    _
  // Predicated region
  $region6: #{net_forward.1} parent=0 // pred_check
    _
  $region7: #{net_forward.1} parent=0 // pred_check_branch
    %13 = sbr.rel (0) target = $region9
  $region8: #{net_forward.1} parent=0 // pred_region
    _
  $region9: #{net_forward.1} parent=0 // pred_fallthru
    _
  // Predicated region
  $region10: #{net_forward.1} parent=0 // pred_check
    _
  $region11: #{net_forward.1} parent=0 // pred_check_branch
    %15 = sbr.rel (0) target = $region13
  $region12: #{net_forward.1} parent=0 // pred_region
    _
  $region13: #{net_forward.1} parent=0 // pred_fallthru
    _
  // Predicated region
  $region14: #{net_forward.1} parent=0 // pred_check
    _
  $region15: #{net_forward.1} parent=0 // pred_check_branch
    %17 = sbr.rel (0) target = $region17
  $region16: #{net_forward.1} parent=0 // pred_region
    _
  $region17: #{net_forward.1} parent=0 // pred_fallthru
    _
  // Predicated region
  $region18: #{net_forward.1} parent=0 // pred_check
    _
  $region19: #{net_forward.1} parent=0 // pred_check_branch
    %19 = sbr.rel (0) target = $region21
  $region20: #{net_forward.1} parent=0 // pred_region
    _
  $region21: #{net_forward.1} parent=0 // pred_fallthru
    _
  %v20 = vld [vmem:[%s0] sm:$0xff]
  %v21 = vld [vmem:[%s0 + $0x8] sm:$0xff]
  %v22 = vld [vmem:[%s0 + $0x10] sm:$0xff]
  %v23 = vld [vmem:[%s0 + $0x18] sm:$0xff]
  %v24 = vld [vmem:[%s0 + $0x20] sm:$0xff]
  %v25 = vld [vmem:[%s0 + $0x28] sm:$0xff]
  %v26 = vld [vmem:[%s0 + $0x30] sm:$0xff]
  %v27 = vld [vmem:[%s0 + $0x38] sm:$0xff]
  %v28 = vld [vmem:[%s0 + $0x40] sm:$0xff]
  %v29 = vld [vmem:[%s0 + $0x48] sm:$0xff]
  %v30 = vld [vmem:[%s0 + $0x50] sm:$0xff]
  %v31 = vld [vmem:[%s0 + $0x58] sm:$0xff]
  %v32 = vld [vmem:[%s0 + $0x60] sm:$0xff]
  %v33 = vld [vmem:[%s0 + $0x68] sm:$0xff]
  %v34 = vld [vmem:[%s1] sm:$0xff]
  %v35 = vld [vmem:[%s1 + $0x8] sm:$0xff]
  %v36 = vld [vmem:[%s1 + $0x10] sm:$0xff]
  %v37 = vld [vmem:[%s1 + $0x18] sm:$0xff]
  %v38 = vld [vmem:[%s1 + $0x20] sm:$0xff]
  %v39 = vld [vmem:[%s1 + $0x28] sm:$0xff]
  %v40 = vld [vmem:[%s1 + $0x30] sm:$0xff]
  %v41 = vld [vmem:[%s1 + $0x38] sm:$0xff]
  %v42 = vld [vmem:[%s1 + $0x40] sm:$0xff]
  %v43 = vld [vmem:[%s1 + $0x48] sm:$0xff]
  %v44 = vld [vmem:[%s1 + $0x50] sm:$0xff]
  %v45 = vld [vmem:[%s1 + $0x58] sm:$0xff]
  %v46 = vld [vmem:[%s1 + $0x60] sm:$0xff]
  %v47 = vld [vmem:[%s1 + $0x68] sm:$0xff]
  %v48 = vld [vmem:[%s1 + $0x70] sm:$0xff]
  %v49 = vld [vmem:[%s1 + $0x78] sm:$0xff]
  %v50 = vld [vmem:[%s1 + $0x80] sm:$0xff]
  %v51 = vld [vmem:[%s1 + $0x88] sm:$0xff]
  %v52 = vld [vmem:[%s1 + $0x90] sm:$0xff]
  %v53 = vld [vmem:[%s1 + $0x98] sm:$0xff]
  %v54 = vld [vmem:[%s1 + $0xa0] sm:$0xff]
  %v55 = vld [vmem:[%s1 + $0xa8] sm:$0xff]
  %v56 = vld [vmem:[%s1 + $0xb0] sm:$0xff]
  %v57 = vld [vmem:[%s1 + $0xb8] sm:$0xff]
  %v58 = vld [vmem:[%s1 + $0xc0] sm:$0xff]
  %v59 = vld [vmem:[%s1 + $0xc8] sm:$0xff]
  %v60 = vld [vmem:[%s1 + $0xd0] sm:$0xff]
  %v61 = vld [vmem:[%s1 + $0xd8] sm:$0xff]
  %v62 = vld [vmem:[%s1 + $0xe0] sm:$0xff]
  %v63 = vld [vmem:[%s1 + $0xe8] sm:$0xff]
  %v64 = vld [vmem:[%s1 + $0xf0] sm:$0xff]
  %v65 = vld [vmem:[%s1 + $0xf8] sm:$0xff]
  %v66 = vld [vmem:[%s1 + $0x100] sm:$0xff]
  %v67 = vld [vmem:[%s1 + $0x108] sm:$0xff]
  %v68 = vld [vmem:[%s1 + $0x110] sm:$0xff]
  %v69 = vld [vmem:[%s1 + $0x118] sm:$0xff]
  %v70 = vld [vmem:[%s1 + $0x120] sm:$0xff]
  %v71 = vld [vmem:[%s1 + $0x128] sm:$0xff]
  %v72 = vld [vmem:[%s1 + $0x130] sm:$0xff]
  %v73 = vld [vmem:[%s1 + $0x138] sm:$0xff]
  %v74 = vld [vmem:[%s1 + $0x140] sm:$0xff]
  %v75 = vld [vmem:[%s1 + $0x148] sm:$0xff]
  %v76 = vld [vmem:[%s1 + $0x150] sm:$0xff]
  %v77 = vld [vmem:[%s1 + $0x158] sm:$0xff]
  %v78 = vld [vmem:[%s1 + $0x160] sm:$0xff]
  %v79 = vld [vmem:[%s1 + $0x168] sm:$0xff]
  %v80 = vld [vmem:[%s1 + $0x170] sm:$0xff]
  %v81 = vld [vmem:[%s1 + $0x178] sm:$0xff]
  %v82 = vld [vmem:[%s1 + $0x180] sm:$0xff]
  %v83 = vld [vmem:[%s1 + $0x188] sm:$0xff]
  %v84 = vld [vmem:[%s1 + $0x190] sm:$0xff]
  %v85 = vld [vmem:[%s1 + $0x198] sm:$0xff]
  %v86 = vld [vmem:[%s1 + $0x1a0] sm:$0xff]
  %v87 = vld [vmem:[%s1 + $0x1a8] sm:$0xff]
  %v88 = vld [vmem:[%s1 + $0x1b0] sm:$0xff]
  %v89 = vld [vmem:[%s1 + $0x1b8] sm:$0xff]
  %v90 = vld [vmem:[%s1 + $0x1c0] sm:$0xff]
  %v91 = vld [vmem:[%s1 + $0x1c8] sm:$0xff]
  %v92 = vld [vmem:[%s1 + $0x1d0] sm:$0xff]
  %v93 = vld [vmem:[%s1 + $0x1d8] sm:$0xff]
  %v94 = vld [vmem:[%s1 + $0x1e0] sm:$0xff]
  %v95 = vld [vmem:[%s1 + $0x1e8] sm:$0xff]
  %v96 = vld [vmem:[%s1 + $0x1f0] sm:$0xff]
  %v97 = vld [vmem:[%s1 + $0x1f8] sm:$0xff]
  %v98 = vld [vmem:[%s1 + $0x200] sm:$0xff]
  %v99 = vld [vmem:[%s1 + $0x208] sm:$0xff]
  %v100 = vld [vmem:[%s1 + $0x210] sm:$0xff]
  %v101 = vld [vmem:[%s1 + $0x218] sm:$0xff]
  %v102 = vld [vmem:[%s1 + $0x220] sm:$0xff]
  %v103 = vld [vmem:[%s1 + $0x228] sm:$0xff]
  %v104 = vld [vmem:[%s1 + $0x230] sm:$0xff]
  %v105 = vld [vmem:[%s1 + $0x238] sm:$0xff]
  %v106 = vld [vmem:[%s1 + $0x240] sm:$0xff]
  %v107 = vld [vmem:[%s1 + $0x248] sm:$0xff]
  %v108 = vld [vmem:[%s1 + $0x250] sm:$0xff]
  %v109 = vld [vmem:[%s1 + $0x258] sm:$0xff]
  %v110 = vld [vmem:[%s1 + $0x260] sm:$0xff]
  %v111 = vld [vmem:[%s1 + $0x268] sm:$0xff]
  %v112 = vld [vmem:[%s1 + $0x270] sm:$0xff]
  %v113 = vld [vmem:[%s1 + $0x278] sm:$0xff]
  %v114 = vld [vmem:[%s1 + $0x280] sm:$0xff]
  %v115 = vld [vmem:[%s1 + $0x288] sm:$0xff]
  %v116 = vld [vmem:[%s1 + $0x290] sm:$0xff]
  %v117 = vld [vmem:[%s1 + $0x298] sm:$0xff]
  %v118 = vld [vmem:[%s1 + $0x2a0] sm:$0xff]
  %v119 = vld [vmem:[%s1 + $0x2a8] sm:$0xff]
  %v120 = vld [vmem:[%s1 + $0x2b0] sm:$0xff]
  %v121 = vld [vmem:[%s1 + $0x2b8] sm:$0xff]
  %v122 = vld [vmem:[%s1 + $0x2c0] sm:$0xff]
  %v123 = vld [vmem:[%s1 + $0x2c8] sm:$0xff]
  %v124 = vld [vmem:[%s1 + $0x2d0] sm:$0xff]
  %v125 = vld [vmem:[%s1 + $0x2d8] sm:$0xff]
  %v126 = vld [vmem:[%s1 + $0x2e0] sm:$0xff]
  %v127 = vld [vmem:[%s1 + $0x2e8] sm:$0xff]
  %v128 = vld [vmem:[%s1 + $0x2f0] sm:$0xff]
  %v129 = vld [vmem:[%s1 + $0x2f8] sm:$0xff]
  %v130 = vld [vmem:[%s1 + $0x300] sm:$0xff]
  %v131 = vld [vmem:[%s1 + $0x308] sm:$0xff]
  %v132 = vld [vmem:[%s2] sm:$0x1]
  %v134 = vlaneseq
  %v135 = vshrl.u32 %v134, 7
  %v136 = vsub.s32 0, %v135
  %v137 = vrot.slane %v132, %v136
  %vm139 = vcmask 130048
  %v141 = vsel %vm139, %v26, 0
  %v144 = vsel %vm139, %v33, 0
  %146 = vmatprep.subr.mxu0 0.0
  %v147 = vand.u32 %v34, 4294901760
  %148 = vmatpush1.msra.mxu0 %v147
  %149 = vmatprep.subr.mxu0 0.0
  %v150 = vand.u32 %v35, 4294901760
  %151 = vmatpush1.msra.mxu0 %v150
  %152 = vmatprep.subr.mxu0 0.0
  %v153 = vand.u32 %v36, 4294901760
  %154 = vmatpush1.msra.mxu0 %v153
  %155 = vmatprep.subr.mxu0 0.0
  %v156 = vand.u32 %v37, 4294901760
  %157 = vmatpush1.msra.mxu0 %v156
  %158 = vmatprep.subr.mxu0 0.0
  %v159 = vand.u32 %v38, 4294901760
  %160 = vmatpush1.msra.mxu0 %v159
  %161 = vmatprep.subr.mxu0 0.0
  %v162 = vand.u32 %v39, 4294901760
  %163 = vmatpush1.msra.mxu0 %v162
  %164 = vmatprep.subr.mxu0 0.0
  %v165 = vand.u32 %v40, 4294901760
  %166 = vmatpush1.msra.mxu0 %v165
  %167 = vmatprep.subr.mxu0 0.0
  %v168 = vand.u32 %v41, 4294901760
  %169 = vmatpush1.msra.mxu0 %v168
  %170 = vmatprep.subr.mxu0 0.0
  %v171 = vand.u32 %v42, 4294901760
  %172 = vmatpush1.msra.mxu0 %v171
  %173 = vmatprep.subr.mxu0 0.0
  %v174 = vand.u32 %v43, 4294901760
  %175 = vmatpush1.msra.mxu0 %v174
  %176 = vmatprep.subr.mxu0 0.0
  %v177 = vand.u32 %v44, 4294901760
  %178 = vmatpush1.msra.mxu0 %v177
  %179 = vmatprep.subr.mxu0 0.0
  %v180 = vand.u32 %v45, 4294901760
  %181 = vmatpush1.msra.mxu0 %v180
  %182 = vmatprep.subr.mxu0 0.0
  %v183 = vand.u32 %v46, 4294901760
  %184 = vmatpush1.msra.mxu0 %v183
  %185 = vmatprep.subr.mxu0 0.0
  %v186 = vand.u32 %v47, 4294901760
  %187 = vmatpush1.msra.mxu0 %v186
  %188 = vmatprep.subr.mxu0 0.0
  %v189 = vand.u32 %v48, 4294901760
  %190 = vmatpush1.msra.mxu0 %v189
  %191 = vmatprep.subr.mxu0 0.0
  %v192 = vand.u32 %v49, 4294901760
  %193 = vmatpush1.msra.mxu0 %v192
  %194 = vmatprep.subr.mxu0 0.0
  %v195 = vand.u32 %v50, 4294901760
  %196 = vmatpush1.msra.mxu0 %v195
  %197 = vmatprep.subr.mxu0 0.0
  %v198 = vand.u32 %v51, 4294901760
  %199 = vmatpush1.msra.mxu0 %v198
  %200 = vmatprep.subr.mxu0 0.0
  %v201 = vand.u32 %v52, 4294901760
  %202 = vmatpush1.msra.mxu0 %v201
  %203 = vmatprep.subr.mxu0 0.0
  %v204 = vand.u32 %v53, 4294901760
  %205 = vmatpush1.msra.mxu0 %v204
  %206 = vmatprep.subr.mxu0 0.0
  %v207 = vand.u32 %v54, 4294901760
  %208 = vmatpush1.msra.mxu0 %v207
  %209 = vmatprep.subr.mxu0 0.0
  %v210 = vand.u32 %v55, 4294901760
  %211 = vmatpush1.msra.mxu0 %v210
  %212 = vmatprep.subr.mxu0 0.0
  %v213 = vand.u32 %v56, 4294901760
  %214 = vmatpush1.msra.mxu0 %v213
  %215 = vmatprep.subr.mxu0 0.0
  %v216 = vand.u32 %v57, 4294901760
  %217 = vmatpush1.msra.mxu0 %v216
  %218 = vmatprep.subr.mxu0 0.0
  %v219 = vand.u32 %v58, 4294901760
  %220 = vmatpush1.msra.mxu0 %v219
  %221 = vmatprep.subr.mxu0 0.0
  %v222 = vand.u32 %v59, 4294901760
  %223 = vmatpush1.msra.mxu0 %v222
  %224 = vmatprep.subr.mxu0 0.0
  %v225 = vand.u32 %v60, 4294901760
  %226 = vmatpush1.msra.mxu0 %v225
  %227 = vmatprep.subr.mxu0 0.0
  %v228 = vand.u32 %v61, 4294901760
  %229 = vmatpush1.msra.mxu0 %v228
  %230 = vmatprep.subr.mxu0 0.0
  %v231 = vand.u32 %v62, 4294901760
  %232 = vmatpush1.msra.mxu0 %v231
  %233 = vmatprep.subr.mxu0 0.0
  %v234 = vand.u32 %v63, 4294901760
  %235 = vmatpush1.msra.mxu0 %v234
  %236 = vmatprep.subr.mxu0 0.0
  %v237 = vand.u32 %v64, 4294901760
  %238 = vmatpush1.msra.mxu0 %v237
  %239 = vmatprep.subr.mxu0 0.0
  %v240 = vand.u32 %v65, 4294901760
  %241 = vmatpush1.msra.mxu0 %v240
  %v242 = vand.u32 %v21, 4294901760
  %v243 = vsub.f32 %v21, %v242
  %v244 = vand.u32 %v243, 4294901760
  %v245 = vsub.f32 %v243, %v244
  %v246 = vand.u32 %v245, 4294901760
  %247 = vmatprep.mubr.f32.mxu0 %v246
  %v248 = vand.u32 %v20, 4294901760
  %v249 = vsub.f32 %v20, %v248
  %v250 = vand.u32 %v249, 4294901760
  %v251 = vsub.f32 %v249, %v250
  %v252 = vand.u32 %v251, 4294901760
  %253 = vmatmul.mubr.f32.gmra.mrb[0].mxu0 %v252
  %v254 = vpop.f32.mrb[0].mxu0
  %v255 = vadd.f32 %v137, %v254
  %v256 = vpop.f32.mrb[0].mxu0
  %v257 = vand.u32 %v28, 4294901760
  %v258 = vsub.f32 %v28, %v257
  %v259 = vand.u32 %v258, 4294901760
  %v260 = vsub.f32 %v258, %v259
  %v261 = vand.u32 %v260, 4294901760
  %262 = vmatprep.mubr.f32.mxu0 %v261
  %v263 = vand.u32 %v27, 4294901760
  %v264 = vsub.f32 %v27, %v263
  %v265 = vand.u32 %v264, 4294901760
  %v266 = vsub.f32 %v264, %v265
  %v267 = vand.u32 %v266, 4294901760
  %268 = vmatmul.mubr.f32.gmra.mrb[0].mxu0 %v267
  %v269 = vpop.f32.mrb[0].mxu0
  %v270 = vadd.f32 %v137, %v269
  %v271 = vpop.f32.mrb[0].mxu0
  %272 = vdwg.mxu0
  %273 = vmatprep.subr.mxu0 0.0
  %v274 = vand.u32 %v34, 4294901760
  %v275 = vsub.f32 %v34, %v274
  %v276 = vand.u32 %v275, 4294901760
  %v277 = vsub.f32 %v275, %v276
  %v278 = vand.u32 %v277, 4294901760
  %279 = vmatpush1.msra.mxu0 %v278
  %280 = vmatprep.subr.mxu0 0.0
  %v281 = vand.u32 %v35, 4294901760
  %v282 = vsub.f32 %v35, %v281
  %v283 = vand.u32 %v282, 4294901760
  %v284 = vsub.f32 %v282, %v283
  %v285 = vand.u32 %v284, 4294901760
  %286 = vmatpush1.msra.mxu0 %v285
  %287 = vmatprep.subr.mxu0 0.0
  %v288 = vand.u32 %v36, 4294901760
  %v289 = vsub.f32 %v36, %v288
  %v290 = vand.u32 %v289, 4294901760
  %v291 = vsub.f32 %v289, %v290
  %v292 = vand.u32 %v291, 4294901760
  %293 = vmatpush1.msra.mxu0 %v292
  %294 = vmatprep.subr.mxu0 0.0
  %v295 = vand.u32 %v37, 4294901760
  %v296 = vsub.f32 %v37, %v295
  %v297 = vand.u32 %v296, 4294901760
  %v298 = vsub.f32 %v296, %v297
  %v299 = vand.u32 %v298, 4294901760
  %300 = vmatpush1.msra.mxu0 %v299
  %301 = vmatprep.subr.mxu0 0.0
  %v302 = vand.u32 %v38, 4294901760
  %v303 = vsub.f32 %v38, %v302
  %v304 = vand.u32 %v303, 4294901760
  %v305 = vsub.f32 %v303, %v304
  %v306 = vand.u32 %v305, 4294901760
  %307 = vmatpush1.msra.mxu0 %v306
  %308 = vmatprep.subr.mxu0 0.0
  %v309 = vand.u32 %v39, 4294901760
  %v310 = vsub.f32 %v39, %v309
  %v311 = vand.u32 %v310, 4294901760
  %v312 = vsub.f32 %v310, %v311
  %v313 = vand.u32 %v312, 4294901760
  %314 = vmatpush1.msra.mxu0 %v313
  %315 = vmatprep.subr.mxu0 0.0
  %v316 = vand.u32 %v40, 4294901760
  %v317 = vsub.f32 %v40, %v316
  %v318 = vand.u32 %v317, 4294901760
  %v319 = vsub.f32 %v317, %v318
  %v320 = vand.u32 %v319, 4294901760
  %321 = vmatpush1.msra.mxu0 %v320
  %322 = vmatprep.subr.mxu0 0.0
  %v323 = vand.u32 %v41, 4294901760
  %v324 = vsub.f32 %v41, %v323
  %v325 = vand.u32 %v324, 4294901760
  %v326 = vsub.f32 %v324, %v325
  %v327 = vand.u32 %v326, 4294901760
  %328 = vmatpush1.msra.mxu0 %v327
  %329 = vmatprep.subr.mxu0 0.0
  %v330 = vand.u32 %v42, 4294901760
  %v331 = vsub.f32 %v42, %v330
  %v332 = vand.u32 %v331, 4294901760
  %v333 = vsub.f32 %v331, %v332
  %v334 = vand.u32 %v333, 4294901760
  %335 = vmatpush1.msra.mxu0 %v334
  %336 = vmatprep.subr.mxu0 0.0
  %v337 = vand.u32 %v43, 4294901760
  %v338 = vsub.f32 %v43, %v337
  %v339 = vand.u32 %v338, 4294901760
  %v340 = vsub.f32 %v338, %v339
  %v341 = vand.u32 %v340, 4294901760
  %342 = vmatpush1.msra.mxu0 %v341
  %343 = vmatprep.subr.mxu0 0.0
  %v344 = vand.u32 %v44, 4294901760
  %v345 = vsub.f32 %v44, %v344
  %v346 = vand.u32 %v345, 4294901760
  %v347 = vsub.f32 %v345, %v346
  %v348 = vand.u32 %v347, 4294901760
  %349 = vmatpush1.msra.mxu0 %v348
  %350 = vmatprep.subr.mxu0 0.0
  %v351 = vand.u32 %v45, 4294901760
  %v352 = vsub.f32 %v45, %v351
  %v353 = vand.u32 %v352, 4294901760
  %v354 = vsub.f32 %v352, %v353
  %v355 = vand.u32 %v354, 4294901760
  %356 = vmatpush1.msra.mxu0 %v355
  %357 = vmatprep.subr.mxu0 0.0
  %v358 = vand.u32 %v46, 4294901760
  %v359 = vsub.f32 %v46, %v358
  %v360 = vand.u32 %v359, 4294901760
  %v361 = vsub.f32 %v359, %v360
  %v362 = vand.u32 %v361, 4294901760
  %363 = vmatpush1.msra.mxu0 %v362
  %364 = vmatprep.subr.mxu0 0.0
  %v365 = vand.u32 %v47, 4294901760
  %v366 = vsub.f32 %v47, %v365
  %v367 = vand.u32 %v366, 4294901760
  %v368 = vsub.f32 %v366, %v367
  %v369 = vand.u32 %v368, 4294901760
  %370 = vmatpush1.msra.mxu0 %v369
  %371 = vmatprep.subr.mxu0 0.0
  %v372 = vand.u32 %v48, 4294901760
  %v373 = vsub.f32 %v48, %v372
  %v374 = vand.u32 %v373, 4294901760
  %v375 = vsub.f32 %v373, %v374
  %v376 = vand.u32 %v375, 4294901760
  %377 = vmatpush1.msra.mxu0 %v376
  %378 = vmatprep.subr.mxu0 0.0
  %v379 = vand.u32 %v49, 4294901760
  %v380 = vsub.f32 %v49, %v379
  %v381 = vand.u32 %v380, 4294901760
  %v382 = vsub.f32 %v380, %v381
  %v383 = vand.u32 %v382, 4294901760
  %384 = vmatpush1.msra.mxu0 %v383
  %385 = vmatprep.subr.mxu0 0.0
  %v386 = vand.u32 %v50, 4294901760
  %v387 = vsub.f32 %v50, %v386
  %v388 = vand.u32 %v387, 4294901760
  %v389 = vsub.f32 %v387, %v388
  %v390 = vand.u32 %v389, 4294901760
  %391 = vmatpush1.msra.mxu0 %v390
  %392 = vmatprep.subr.mxu0 0.0
  %v393 = vand.u32 %v51, 4294901760
  %v394 = vsub.f32 %v51, %v393
  %v395 = vand.u32 %v394, 4294901760
  %v396 = vsub.f32 %v394, %v395
  %v397 = vand.u32 %v396, 4294901760
  %398 = vmatpush1.msra.mxu0 %v397
  %399 = vmatprep.subr.mxu0 0.0
  %v400 = vand.u32 %v52, 4294901760
  %v401 = vsub.f32 %v52, %v400
  %v402 = vand.u32 %v401, 4294901760
  %v403 = vsub.f32 %v401, %v402
  %v404 = vand.u32 %v403, 4294901760
  %405 = vmatpush1.msra.mxu0 %v404
  %406 = vmatprep.subr.mxu0 0.0
  %v407 = vand.u32 %v53, 4294901760
  %v408 = vsub.f32 %v53, %v407
  %v409 = vand.u32 %v408, 4294901760
  %v410 = vsub.f32 %v408, %v409
  %v411 = vand.u32 %v410, 4294901760
  %412 = vmatpush1.msra.mxu0 %v411
  %413 = vmatprep.subr.mxu0 0.0
  %v414 = vand.u32 %v54, 4294901760
  %v415 = vsub.f32 %v54, %v414
  %v416 = vand.u32 %v415, 4294901760
  %v417 = vsub.f32 %v415, %v416
  %v418 = vand.u32 %v417, 4294901760
  %419 = vmatpush1.msra.mxu0 %v418
  %420 = vmatprep.subr.mxu0 0.0
  %v421 = vand.u32 %v55, 4294901760
  %v422 = vsub.f32 %v55, %v421
  %v423 = vand.u32 %v422, 4294901760
  %v424 = vsub.f32 %v422, %v423
  %v425 = vand.u32 %v424, 4294901760
  %426 = vmatpush1.msra.mxu0 %v425
  %427 = vmatprep.subr.mxu0 0.0
  %v428 = vand.u32 %v56, 4294901760
  %v429 = vsub.f32 %v56, %v428
  %v430 = vand.u32 %v429, 4294901760
  %v431 = vsub.f32 %v429, %v430
  %v432 = vand.u32 %v431, 4294901760
  %433 = vmatpush1.msra.mxu0 %v432
  %434 = vmatprep.subr.mxu0 0.0
  %v435 = vand.u32 %v57, 4294901760
  %v436 = vsub.f32 %v57, %v435
  %v437 = vand.u32 %v436, 4294901760
  %v438 = vsub.f32 %v436, %v437
  %v439 = vand.u32 %v438, 4294901760
  %440 = vmatpush1.msra.mxu0 %v439
  %441 = vmatprep.subr.mxu0 0.0
  %v442 = vand.u32 %v58, 4294901760
  %v443 = vsub.f32 %v58, %v442
  %v444 = vand.u32 %v443, 4294901760
  %v445 = vsub.f32 %v443, %v444
  %v446 = vand.u32 %v445, 4294901760
  %447 = vmatpush1.msra.mxu0 %v446
  %448 = vmatprep.subr.mxu0 0.0
  %v449 = vand.u32 %v59, 4294901760
  %v450 = vsub.f32 %v59, %v449
  %v451 = vand.u32 %v450, 4294901760
  %v452 = vsub.f32 %v450, %v451
  %v453 = vand.u32 %v452, 4294901760
  %454 = vmatpush1.msra.mxu0 %v453
  %455 = vmatprep.subr.mxu0 0.0
  %v456 = vand.u32 %v60, 4294901760
  %v457 = vsub.f32 %v60, %v456
  %v458 = vand.u32 %v457, 4294901760
  %v459 = vsub.f32 %v457, %v458
  %v460 = vand.u32 %v459, 4294901760
  %461 = vmatpush1.msra.mxu0 %v460
  %462 = vmatprep.subr.mxu0 0.0
  %v463 = vand.u32 %v61, 4294901760
  %v464 = vsub.f32 %v61, %v463
  %v465 = vand.u32 %v464, 4294901760
  %v466 = vsub.f32 %v464, %v465
  %v467 = vand.u32 %v466, 4294901760
  %468 = vmatpush1.msra.mxu0 %v467
  %469 = vmatprep.subr.mxu0 0.0
  %v470 = vand.u32 %v62, 4294901760
  %v471 = vsub.f32 %v62, %v470
  %v472 = vand.u32 %v471, 4294901760
  %v473 = vsub.f32 %v471, %v472
  %v474 = vand.u32 %v473, 4294901760
  %475 = vmatpush1.msra.mxu0 %v474
  %476 = vmatprep.subr.mxu0 0.0
  %v477 = vand.u32 %v63, 4294901760
  %v478 = vsub.f32 %v63, %v477
  %v479 = vand.u32 %v478, 4294901760
  %v480 = vsub.f32 %v478, %v479
  %v481 = vand.u32 %v480, 4294901760
  %482 = vmatpush1.msra.mxu0 %v481
  %483 = vmatprep.subr.mxu0 0.0
  %v484 = vand.u32 %v64, 4294901760
  %v485 = vsub.f32 %v64, %v484
  %v486 = vand.u32 %v485, 4294901760
  %v487 = vsub.f32 %v485, %v486
  %v488 = vand.u32 %v487, 4294901760
  %489 = vmatpush1.msra.mxu0 %v488
  %490 = vmatprep.subr.mxu0 0.0
  %v491 = vand.u32 %v65, 4294901760
  %v492 = vsub.f32 %v65, %v491
  %v493 = vand.u32 %v492, 4294901760
  %v494 = vsub.f32 %v492, %v493
  %v495 = vand.u32 %v494, 4294901760
  %496 = vmatpush1.msra.mxu0 %v495
  %v497 = vand.u32 %v21, 4294901760
  %498 = vmatprep.mubr.f32.mxu0 %v497
  %v499 = vand.u32 %v20, 4294901760
  %500 = vmatmul.mubr.f32.gmra.mrb[0].mxu0 %v499
  %v501 = vpop.f32.mrb[0].mxu0
  %v502 = vadd.f32 %v255, %v501
  %v503 = vpop.f32.mrb[0].mxu0
  %v504 = vand.u32 %v28, 4294901760
  %505 = vmatprep.mubr.f32.mxu0 %v504
  %v506 = vand.u32 %v27, 4294901760
  %507 = vmatmul.mubr.f32.gmra.mrb[0].mxu0 %v506
  %v508 = vpop.f32.mrb[0].mxu0
  %v509 = vadd.f32 %v270, %v508
  %v510 = vpop.f32.mrb[0].mxu0
  %511 = vdwg.mxu0
  %512 = vmatprep.subr.mxu0 0.0
  %v513 = vand.u32 %v34, 4294901760
  %v514 = vsub.f32 %v34, %v513
  %515 = vmatpush1.msra.mxu0 %v514
  %516 = vmatprep.subr.mxu0 0.0
  %v517 = vand.u32 %v35, 4294901760
  %v518 = vsub.f32 %v35, %v517
  %519 = vmatpush1.msra.mxu0 %v518
  %520 = vmatprep.subr.mxu0 0.0
  %v521 = vand.u32 %v36, 4294901760
  %v522 = vsub.f32 %v36, %v521
  %523 = vmatpush1.msra.mxu0 %v522
  %524 = vmatprep.subr.mxu0 0.0
  %v525 = vand.u32 %v37, 4294901760
  %v526 = vsub.f32 %v37, %v525
  %527 = vmatpush1.msra.mxu0 %v526
  %528 = vmatprep.subr.mxu0 0.0
  %v529 = vand.u32 %v38, 4294901760
  %v530 = vsub.f32 %v38, %v529
  %531 = vmatpush1.msra.mxu0 %v530
  %532 = vmatprep.subr.mxu0 0.0
  %v533 = vand.u32 %v39, 4294901760
  %v534 = vsub.f32 %v39, %v533
  %535 = vmatpush1.msra.mxu0 %v534
  %536 = vmatprep.subr.mxu0 0.0
  %v537 = vand.u32 %v40, 4294901760
  %v538 = vsub.f32 %v40, %v537
  %539 = vmatpush1.msra.mxu0 %v538
  %540 = vmatprep.subr.mxu0 0.0
  %v541 = vand.u32 %v41, 4294901760
  %v542 = vsub.f32 %v41, %v541
  %543 = vmatpush1.msra.mxu0 %v542
  %544 = vmatprep.subr.mxu0 0.0
  %v545 = vand.u32 %v42, 4294901760
  %v546 = vsub.f32 %v42, %v545
  %547 = vmatpush1.msra.mxu0 %v546
  %548 = vmatprep.subr.mxu0 0.0
  %v549 = vand.u32 %v43, 4294901760
  %v550 = vsub.f32 %v43, %v549
  %551 = vmatpush1.msra.mxu0 %v550
  %552 = vmatprep.subr.mxu0 0.0
  %v553 = vand.u32 %v44, 4294901760
  %v554 = vsub.f32 %v44, %v553
  %555 = vmatpush1.msra.mxu0 %v554
  %556 = vmatprep.subr.mxu0 0.0
  %v557 = vand.u32 %v45, 4294901760
  %v558 = vsub.f32 %v45, %v557
  %559 = vmatpush1.msra.mxu0 %v558
  %560 = vmatprep.subr.mxu0 0.0
  %v561 = vand.u32 %v46, 4294901760
  %v562 = vsub.f32 %v46, %v561
  %563 = vmatpush1.msra.mxu0 %v562
  %564 = vmatprep.subr.mxu0 0.0
  %v565 = vand.u32 %v47, 4294901760
  %v566 = vsub.f32 %v47, %v565
  %567 = vmatpush1.msra.mxu0 %v566
  %568 = vmatprep.subr.mxu0 0.0
  %v569 = vand.u32 %v48, 4294901760
  %v570 = vsub.f32 %v48, %v569
  %571 = vmatpush1.msra.mxu0 %v570
  %572 = vmatprep.subr.mxu0 0.0
  %v573 = vand.u32 %v49, 4294901760
  %v574 = vsub.f32 %v49, %v573
  %575 = vmatpush1.msra.mxu0 %v574
  %576 = vmatprep.subr.mxu0 0.0
  %v577 = vand.u32 %v50, 4294901760
  %v578 = vsub.f32 %v50, %v577
  %579 = vmatpush1.msra.mxu0 %v578
  %580 = vmatprep.subr.mxu0 0.0
  %v581 = vand.u32 %v51, 4294901760
  %v582 = vsub.f32 %v51, %v581
  %583 = vmatpush1.msra.mxu0 %v582
  %584 = vmatprep.subr.mxu0 0.0
  %v585 = vand.u32 %v52, 4294901760
  %v586 = vsub.f32 %v52, %v585
  %587 = vmatpush1.msra.mxu0 %v586
  %588 = vmatprep.subr.mxu0 0.0
  %v589 = vand.u32 %v53, 4294901760
  %v590 = vsub.f32 %v53, %v589
  %591 = vmatpush1.msra.mxu0 %v590
  %592 = vmatprep.subr.mxu0 0.0
  %v593 = vand.u32 %v54, 4294901760
  %v594 = vsub.f32 %v54, %v593
  %595 = vmatpush1.msra.mxu0 %v594
  %596 = vmatprep.subr.mxu0 0.0
  %v597 = vand.u32 %v55, 4294901760
  %v598 = vsub.f32 %v55, %v597
  %599 = vmatpush1.msra.mxu0 %v598
  %600 = vmatprep.subr.mxu0 0.0
  %v601 = vand.u32 %v56, 4294901760
  %v602 = vsub.f32 %v56, %v601
  %603 = vmatpush1.msra.mxu0 %v602
  %604 = vmatprep.subr.mxu0 0.0
  %v605 = vand.u32 %v57, 4294901760
  %v606 = vsub.f32 %v57, %v605
  %607 = vmatpush1.msra.mxu0 %v606
  %608 = vmatprep.subr.mxu0 0.0
  %v609 = vand.u32 %v58, 4294901760
  %v610 = vsub.f32 %v58, %v609
  %611 = vmatpush1.msra.mxu0 %v610
  %612 = vmatprep.subr.mxu0 0.0
  %v613 = vand.u32 %v59, 4294901760
  %v614 = vsub.f32 %v59, %v613
  %615 = vmatpush1.msra.mxu0 %v614
  %616 = vmatprep.subr.mxu0 0.0
  %v617 = vand.u32 %v60, 4294901760
  %v618 = vsub.f32 %v60, %v617
  %619 = vmatpush1.msra.mxu0 %v618
  %620 = vmatprep.subr.mxu0 0.0
  %v621 = vand.u32 %v61, 4294901760
  %v622 = vsub.f32 %v61, %v621
  %623 = vmatpush1.msra.mxu0 %v622
  %624 = vmatprep.subr.mxu0 0.0
  %v625 = vand.u32 %v62, 4294901760
  %v626 = vsub.f32 %v62, %v625
  %627 = vmatpush1.msra.mxu0 %v626
  %628 = vmatprep.subr.mxu0 0.0
  %v629 = vand.u32 %v63, 4294901760
  %v630 = vsub.f32 %v63, %v629
  %631 = vmatpush1.msra.mxu0 %v630
  %632 = vmatprep.subr.mxu0 0.0
  %v633 = vand.u32 %v64, 4294901760
  %v634 = vsub.f32 %v64, %v633
  %635 = vmatpush1.msra.mxu0 %v634
  %636 = vmatprep.subr.mxu0 0.0
  %v637 = vand.u32 %v65, 4294901760
  %v638 = vsub.f32 %v65, %v637
  %639 = vmatpush1.msra.mxu0 %v638
  %v640 = vand.u32 %v21, 4294901760
  %v641 = vsub.f32 %v21, %v640
  %642 = vmatprep.mubr.f32.mxu0 %v641
  %v643 = vand.u32 %v20, 4294901760
  %v644 = vsub.f32 %v20, %v643
  %645 = vmatmul.mubr.f32.gmra.mrb[0].mxu0 %v644
  %v646 = vpop.f32.mrb[0].mxu0
  %v647 = vadd.f32 %v502, %v646
  %v648 = vpop.f32.mrb[0].mxu0
  %v649 = vand.u32 %v28, 4294901760
  %v650 = vsub.f32 %v28, %v649
  %651 = vmatprep.mubr.f32.mxu0 %v650
  %v652 = vand.u32 %v27, 4294901760
  %v653 = vsub.f32 %v27, %v652
  %654 = vmatmul.mubr.f32.gmra.mrb[0].mxu0 %v653
  %v655 = vpop.f32.mrb[0].mxu0
  %v656 = vadd.f32 %v509, %v655
  %v657 = vpop.f32.mrb[0].mxu0
  %658 = vdwg.mxu0
  %659 = vmatprep.subr.mxu0 0.0
  %v660 = vand.u32 %v34, 4294901760
  %661 = vmatpush1.msra.mxu0 %v660
  %662 = vmatprep.subr.mxu0 0.0
  %v663 = vand.u32 %v35, 4294901760
  %664 = vmatpush1.msra.mxu0 %v663
  %665 = vmatprep.subr.mxu0 0.0
  %v666 = vand.u32 %v36, 4294901760
  %667 = vmatpush1.msra.mxu0 %v666
  %668 = vmatprep.subr.mxu0 0.0
  %v669 = vand.u32 %v37, 4294901760
  %670 = vmatpush1.msra.mxu0 %v669
  %671 = vmatprep.subr.mxu0 0.0
  %v672 = vand.u32 %v38, 4294901760
  %673 = vmatpush1.msra.mxu0 %v672
  %674 = vmatprep.subr.mxu0 0.0
  %v675 = vand.u32 %v39, 4294901760
  %676 = vmatpush1.msra.mxu0 %v675
  %677 = vmatprep.subr.mxu0 0.0
  %v678 = vand.u32 %v40, 4294901760
  %679 = vmatpush1.msra.mxu0 %v678
  %680 = vmatprep.subr.mxu0 0.0
  %v681 = vand.u32 %v41, 4294901760
  %682 = vmatpush1.msra.mxu0 %v681
  %683 = vmatprep.subr.mxu0 0.0
  %v684 = vand.u32 %v42, 4294901760
  %685 = vmatpush1.msra.mxu0 %v684
  %686 = vmatprep.subr.mxu0 0.0
  %v687 = vand.u32 %v43, 4294901760
  %688 = vmatpush1.msra.mxu0 %v687
  %689 = vmatprep.subr.mxu0 0.0
  %v690 = vand.u32 %v44, 4294901760
  %691 = vmatpush1.msra.mxu0 %v690
  %692 = vmatprep.subr.mxu0 0.0
  %v693 = vand.u32 %v45, 4294901760
  %694 = vmatpush1.msra.mxu0 %v693
  %695 = vmatprep.subr.mxu0 0.0
  %v696 = vand.u32 %v46, 4294901760
  %697 = vmatpush1.msra.mxu0 %v696
  %698 = vmatprep.subr.mxu0 0.0
  %v699 = vand.u32 %v47, 4294901760
  %700 = vmatpush1.msra.mxu0 %v699
  %701 = vmatprep.subr.mxu0 0.0
  %v702 = vand.u32 %v48, 4294901760
  %703 = vmatpush1.msra.mxu0 %v702
  %704 = vmatprep.subr.mxu0 0.0
  %v705 = vand.u32 %v49, 4294901760
  %706 = vmatpush1.msra.mxu0 %v705
  %707 = vmatprep.subr.mxu0 0.0
  %v708 = vand.u32 %v50, 4294901760
  %709 = vmatpush1.msra.mxu0 %v708
  %710 = vmatprep.subr.mxu0 0.0
  %v711 = vand.u32 %v51, 4294901760
  %712 = vmatpush1.msra.mxu0 %v711
  %713 = vmatprep.subr.mxu0 0.0
  %v714 = vand.u32 %v52, 4294901760
  %715 = vmatpush1.msra.mxu0 %v714
  %716 = vmatprep.subr.mxu0 0.0
  %v717 = vand.u32 %v53, 4294901760
  %718 = vmatpush1.msra.mxu0 %v717
  %719 = vmatprep.subr.mxu0 0.0
  %v720 = vand.u32 %v54, 4294901760
  %721 = vmatpush1.msra.mxu0 %v720
  %722 = vmatprep.subr.mxu0 0.0
  %v723 = vand.u32 %v55, 4294901760
  %724 = vmatpush1.msra.mxu0 %v723
  %725 = vmatprep.subr.mxu0 0.0
  %v726 = vand.u32 %v56, 4294901760
  %727 = vmatpush1.msra.mxu0 %v726
  %728 = vmatprep.subr.mxu0 0.0
  %v729 = vand.u32 %v57, 4294901760
  %730 = vmatpush1.msra.mxu0 %v729
  %731 = vmatprep.subr.mxu0 0.0
  %v732 = vand.u32 %v58, 4294901760
  %733 = vmatpush1.msra.mxu0 %v732
  %734 = vmatprep.subr.mxu0 0.0
  %v735 = vand.u32 %v59, 4294901760
  %736 = vmatpush1.msra.mxu0 %v735
  %737 = vmatprep.subr.mxu0 0.0
  %v738 = vand.u32 %v60, 4294901760
  %739 = vmatpush1.msra.mxu0 %v738
  %740 = vmatprep.subr.mxu0 0.0
  %v741 = vand.u32 %v61, 4294901760
  %742 = vmatpush1.msra.mxu0 %v741
  %743 = vmatprep.subr.mxu0 0.0
  %v744 = vand.u32 %v62, 4294901760
  %745 = vmatpush1.msra.mxu0 %v744
  %746 = vmatprep.subr.mxu0 0.0
  %v747 = vand.u32 %v63, 4294901760
  %748 = vmatpush1.msra.mxu0 %v747
  %749 = vmatprep.subr.mxu0 0.0
  %v750 = vand.u32 %v64, 4294901760
  %751 = vmatpush1.msra.mxu0 %v750
  %752 = vmatprep.subr.mxu0 0.0
  %v753 = vand.u32 %v65, 4294901760
  %754 = vmatpush1.msra.mxu0 %v753
  %v755 = vand.u32 %v21, 4294901760
  %v756 = vsub.f32 %v21, %v755
  %v757 = vand.u32 %v756, 4294901760
  %758 = vmatprep.mubr.f32.mxu0 %v757
  %v759 = vand.u32 %v20, 4294901760
  %v760 = vsub.f32 %v20, %v759
  %v761 = vand.u32 %v760, 4294901760
  %762 = vmatmul.mubr.f32.gmra.mrb[0].mxu0 %v761
  %v763 = vpop.f32.mrb[0].mxu0
  %v764 = vadd.f32 %v647, %v763
  %v765 = vpop.f32.mrb[0].mxu0
  %v766 = vand.u32 %v28, 4294901760
  %v767 = vsub.f32 %v28, %v766
  %v768 = vand.u32 %v767, 4294901760
  %769 = vmatprep.mubr.f32.mxu0 %v768
  %v770 = vand.u32 %v27, 4294901760
  %v771 = vsub.f32 %v27, %v770
  %v772 = vand.u32 %v771, 4294901760
  %773 = vmatmul.mubr.f32.gmra.mrb[0].mxu0 %v772
  %v774 = vpop.f32.mrb[0].mxu0
  %v775 = vadd.f32 %v656, %v774
  %v776 = vpop.f32.mrb[0].mxu0
  %777 = vdwg.mxu0
  %778 = vmatprep.subr.mxu0 0.0
  %v779 = vand.u32 %v34, 4294901760
  %v780 = vsub.f32 %v34, %v779
  %v781 = vand.u32 %v780, 4294901760
  %782 = vmatpush1.msra.mxu0 %v781
  %783 = vmatprep.subr.mxu0 0.0
  %v784 = vand.u32 %v35, 4294901760
  %v785 = vsub.f32 %v35, %v784
  %v786 = vand.u32 %v785, 4294901760
  %787 = vmatpush1.msra.mxu0 %v786
  %788 = vmatprep.subr.mxu0 0.0
  %v789 = vand.u32 %v36, 4294901760
  %v790 = vsub.f32 %v36, %v789
  %v791 = vand.u32 %v790, 4294901760
  %792 = vmatpush1.msra.mxu0 %v791
  %793 = vmatprep.subr.mxu0 0.0
  %v794 = vand.u32 %v37, 4294901760
  %v795 = vsub.f32 %v37, %v794
  %v796 = vand.u32 %v795, 4294901760
  %797 = vmatpush1.msra.mxu0 %v796
  %798 = vmatprep.subr.mxu0 0.0
  %v799 = vand.u32 %v38, 4294901760
  %v800 = vsub.f32 %v38, %v799
  %v801 = vand.u32 %v800, 4294901760
  %802 = vmatpush1.msra.mxu0 %v801
  %803 = vmatprep.subr.mxu0 0.0
  %v804 = vand.u32 %v39, 4294901760
  %v805 = vsub.f32 %v39, %v804
  %v806 = vand.u32 %v805, 4294901760
  %807 = vmatpush1.msra.mxu0 %v806
  %808 = vmatprep.subr.mxu0 0.0
  %v809 = vand.u32 %v40, 4294901760
  %v810 = vsub.f32 %v40, %v809
  %v811 = vand.u32 %v810, 4294901760
  %812 = vmatpush1.msra.mxu0 %v811
  %813 = vmatprep.subr.mxu0 0.0
  %v814 = vand.u32 %v41, 4294901760
  %v815 = vsub.f32 %v41, %v814
  %v816 = vand.u32 %v815, 4294901760
  %817 = vmatpush1.msra.mxu0 %v816
  %818 = vmatprep.subr.mxu0 0.0
  %v819 = vand.u32 %v42, 4294901760
  %v820 = vsub.f32 %v42, %v819
  %v821 = vand.u32 %v820, 4294901760
  %822 = vmatpush1.msra.mxu0 %v821
  %823 = vmatprep.subr.mxu0 0.0
  %v824 = vand.u32 %v43, 4294901760
  %v825 = vsub.f32 %v43, %v824
  %v826 = vand.u32 %v825, 4294901760
  %827 = vmatpush1.msra.mxu0 %v826
  %828 = vmatprep.subr.mxu0 0.0
  %v829 = vand.u32 %v44, 4294901760
  %v830 = vsub.f32 %v44, %v829
  %v831 = vand.u32 %v830, 4294901760
  %832 = vmatpush1.msra.mxu0 %v831
  %833 = vmatprep.subr.mxu0 0.0
  %v834 = vand.u32 %v45, 4294901760
  %v835 = vsub.f32 %v45, %v834
  %v836 = vand.u32 %v835, 4294901760
  %837 = vmatpush1.msra.mxu0 %v836
  %838 = vmatprep.subr.mxu0 0.0
  %v839 = vand.u32 %v46, 4294901760
  %v840 = vsub.f32 %v46, %v839
  %v841 = vand.u32 %v840, 4294901760
  %842 = vmatpush1.msra.mxu0 %v841
  %843 = vmatprep.subr.mxu0 0.0
  %v844 = vand.u32 %v47, 4294901760
  %v845 = vsub.f32 %v47, %v844
  %v846 = vand.u32 %v845, 4294901760
  %847 = vmatpush1.msra.mxu0 %v846
  %848 = vmatprep.subr.mxu0 0.0
  %v849 = vand.u32 %v48, 4294901760
  %v850 = vsub.f32 %v48, %v849
  %v851 = vand.u32 %v850, 4294901760
  %852 = vmatpush1.msra.mxu0 %v851
  %853 = vmatprep.subr.mxu0 0.0
  %v854 = vand.u32 %v49, 4294901760
  %v855 = vsub.f32 %v49, %v854
  %v856 = vand.u32 %v855, 4294901760
  %857 = vmatpush1.msra.mxu0 %v856
  %858 = vmatprep.subr.mxu0 0.0
  %v859 = vand.u32 %v50, 4294901760
  %v860 = vsub.f32 %v50, %v859
  %v861 = vand.u32 %v860, 4294901760
  %862 = vmatpush1.msra.mxu0 %v861
  %863 = vmatprep.subr.mxu0 0.0
  %v864 = vand.u32 %v51, 4294901760
  %v865 = vsub.f32 %v51, %v864
  %v866 = vand.u32 %v865, 4294901760
  %867 = vmatpush1.msra.mxu0 %v866
  %868 = vmatprep.subr.mxu0 0.0
  %v869 = vand.u32 %v52, 4294901760
  %v870 = vsub.f32 %v52, %v869
  %v871 = vand.u32 %v870, 4294901760
  %872 = vmatpush1.msra.mxu0 %v871
  %873 = vmatprep.subr.mxu0 0.0
  %v874 = vand.u32 %v53, 4294901760
  %v875 = vsub.f32 %v53, %v874
  %v876 = vand.u32 %v875, 4294901760
  %877 = vmatpush1.msra.mxu0 %v876
  %878 = vmatprep.subr.mxu0 0.0
  %v879 = vand.u32 %v54, 4294901760
  %v880 = vsub.f32 %v54, %v879
  %v881 = vand.u32 %v880, 4294901760
  %882 = vmatpush1.msra.mxu0 %v881
  %883 = vmatprep.subr.mxu0 0.0
  %v884 = vand.u32 %v55, 4294901760
  %v885 = vsub.f32 %v55, %v884
  %v886 = vand.u32 %v885, 4294901760
  %887 = vmatpush1.msra.mxu0 %v886
  %888 = vmatprep.subr.mxu0 0.0
  %v889 = vand.u32 %v56, 4294901760
  %v890 = vsub.f32 %v56, %v889
  %v891 = vand.u32 %v890, 4294901760
  %892 = vmatpush1.msra.mxu0 %v891
  %893 = vmatprep.subr.mxu0 0.0
  %v894 = vand.u32 %v57, 4294901760
  %v895 = vsub.f32 %v57, %v894
  %v896 = vand.u32 %v895, 4294901760
  %897 = vmatpush1.msra.mxu0 %v896
  %898 = vmatprep.subr.mxu0 0.0
  %v899 = vand.u32 %v58, 4294901760
  %v900 = vsub.f32 %v58, %v899
  %v901 = vand.u32 %v900, 4294901760
  %902 = vmatpush1.msra.mxu0 %v901
  %903 = vmatprep.subr.mxu0 0.0
  %v904 = vand.u32 %v59, 4294901760
  %v905 = vsub.f32 %v59, %v904
  %v906 = vand.u32 %v905, 4294901760
  %907 = vmatpush1.msra.mxu0 %v906
  %908 = vmatprep.subr.mxu0 0.0
  %v909 = vand.u32 %v60, 4294901760
  %v910 = vsub.f32 %v60, %v909
  %v911 = vand.u32 %v910, 4294901760
  %912 = vmatpush1.msra.mxu0 %v911
  %913 = vmatprep.subr.mxu0 0.0
  %v914 = vand.u32 %v61, 4294901760
  %v915 = vsub.f32 %v61, %v914
  %v916 = vand.u32 %v915, 4294901760
  %917 = vmatpush1.msra.mxu0 %v916
  %918 = vmatprep.subr.mxu0 0.0
  %v919 = vand.u32 %v62, 4294901760
  %v920 = vsub.f32 %v62, %v919
  %v921 = vand.u32 %v920, 4294901760
  %922 = vmatpush1.msra.mxu0 %v921
  %923 = vmatprep.subr.mxu0 0.0
  %v924 = vand.u32 %v63, 4294901760
  %v925 = vsub.f32 %v63, %v924
  %v926 = vand.u32 %v925, 4294901760
  %927 = vmatpush1.msra.mxu0 %v926
  %928 = vmatprep.subr.mxu0 0.0
  %v929 = vand.u32 %v64, 4294901760
  %v930 = vsub.f32 %v64, %v929
  %v931 = vand.u32 %v930, 4294901760
  %932 = vmatpush1.msra.mxu0 %v931
  %933 = vmatprep.subr.mxu0 0.0
  %v934 = vand.u32 %v65, 4294901760
  %v935 = vsub.f32 %v65, %v934
  %v936 = vand.u32 %v935, 4294901760
  %937 = vmatpush1.msra.mxu0 %v936
  %v938 = vand.u32 %v21, 4294901760
  %939 = vmatprep.mubr.f32.mxu0 %v938
  %v940 = vand.u32 %v20, 4294901760
  %941 = vmatmul.mubr.f32.gmra.mrb[0].mxu0 %v940
  %v942 = vpop.f32.mrb[0].mxu0
  %v943 = vadd.f32 %v764, %v942
  %v944 = vpop.f32.mrb[0].mxu0
  %v945 = vand.u32 %v28, 4294901760
  %946 = vmatprep.mubr.f32.mxu0 %v945
  %v947 = vand.u32 %v27, 4294901760
  %948 = vmatmul.mubr.f32.gmra.mrb[0].mxu0 %v947
  %v949 = vpop.f32.mrb[0].mxu0
  %v950 = vadd.f32 %v775, %v949
  %v951 = vpop.f32.mrb[0].mxu0
  %952 = vdwg.mxu0
  %953 = vmatprep.subr.mxu0 0.0
  %v954 = vand.u32 %v34, 4294901760
  %955 = vmatpush1.msra.mxu0 %v954
  %956 = vmatprep.subr.mxu0 0.0
  %v957 = vand.u32 %v35, 4294901760
  %958 = vmatpush1.msra.mxu0 %v957
  %959 = vmatprep.subr.mxu0 0.0
  %v960 = vand.u32 %v36, 4294901760
  %961 = vmatpush1.msra.mxu0 %v960
  %962 = vmatprep.subr.mxu0 0.0
  %v963 = vand.u32 %v37, 4294901760
  %964 = vmatpush1.msra.mxu0 %v963
  %965 = vmatprep.subr.mxu0 0.0
  %v966 = vand.u32 %v38, 4294901760
  %967 = vmatpush1.msra.mxu0 %v966
  %968 = vmatprep.subr.mxu0 0.0
  %v969 = vand.u32 %v39, 4294901760
  %970 = vmatpush1.msra.mxu0 %v969
  %971 = vmatprep.subr.mxu0 0.0
  %v972 = vand.u32 %v40, 4294901760
  %973 = vmatpush1.msra.mxu0 %v972
  %974 = vmatprep.subr.mxu0 0.0
  %v975 = vand.u32 %v41, 4294901760
  %976 = vmatpush1.msra.mxu0 %v975
  %977 = vmatprep.subr.mxu0 0.0
  %v978 = vand.u32 %v42, 4294901760
  %979 = vmatpush1.msra.mxu0 %v978
  %980 = vmatprep.subr.mxu0 0.0
  %v981 = vand.u32 %v43, 4294901760
  %982 = vmatpush1.msra.mxu0 %v981
  %983 = vmatprep.subr.mxu0 0.0
  %v984 = vand.u32 %v44, 4294901760
  %985 = vmatpush1.msra.mxu0 %v984
  %986 = vmatprep.subr.mxu0 0.0
  %v987 = vand.u32 %v45, 4294901760
  %988 = vmatpush1.msra.mxu0 %v987
  %989 = vmatprep.subr.mxu0 0.0
  %v990 = vand.u32 %v46, 4294901760
  %991 = vmatpush1.msra.mxu0 %v990
  %992 = vmatprep.subr.mxu0 0.0
  %v993 = vand.u32 %v47, 4294901760
  %994 = vmatpush1.msra.mxu0 %v993
  %995 = vmatprep.subr.mxu0 0.0
  %v996 = vand.u32 %v48, 4294901760
  %997 = vmatpush1.msra.mxu0 %v996
  %998 = vmatprep.subr.mxu0 0.0
  %v999 = vand.u32 %v49, 4294901760
  %1000 = vmatpush1.msra.mxu0 %v999
  %1001 = vmatprep.subr.mxu0 0.0
  %v1002 = vand.u32 %v50, 4294901760
  %1003 = vmatpush1.msra.mxu0 %v1002
  %1004 = vmatprep.subr.mxu0 0.0
  %v1005 = vand.u32 %v51, 4294901760
  %1006 = vmatpush1.msra.mxu0 %v1005
  %1007 = vmatprep.subr.mxu0 0.0
  %v1008 = vand.u32 %v52, 4294901760
  %1009 = vmatpush1.msra.mxu0 %v1008
  %1010 = vmatprep.subr.mxu0 0.0
  %v1011 = vand.u32 %v53, 4294901760
  %1012 = vmatpush1.msra.mxu0 %v1011
  %1013 = vmatprep.subr.mxu0 0.0
  %v1014 = vand.u32 %v54, 4294901760
  %1015 = vmatpush1.msra.mxu0 %v1014
  %1016 = vmatprep.subr.mxu0 0.0
  %v1017 = vand.u32 %v55, 4294901760
  %1018 = vmatpush1.msra.mxu0 %v1017
  %1019 = vmatprep.subr.mxu0 0.0
  %v1020 = vand.u32 %v56, 4294901760
  %1021 = vmatpush1.msra.mxu0 %v1020
  %1022 = vmatprep.subr.mxu0 0.0
  %v1023 = vand.u32 %v57, 4294901760
  %1024 = vmatpush1.msra.mxu0 %v1023
  %1025 = vmatprep.subr.mxu0 0.0
  %v1026 = vand.u32 %v58, 4294901760
  %1027 = vmatpush1.msra.mxu0 %v1026
  %1028 = vmatprep.subr.mxu0 0.0
  %v1029 = vand.u32 %v59, 4294901760
  %1030 = vmatpush1.msra.mxu0 %v1029
  %1031 = vmatprep.subr.mxu0 0.0
  %v1032 = vand.u32 %v60, 4294901760
  %1033 = vmatpush1.msra.mxu0 %v1032
  %1034 = vmatprep.subr.mxu0 0.0
  %v1035 = vand.u32 %v61, 4294901760
  %1036 = vmatpush1.msra.mxu0 %v1035
  %1037 = vmatprep.subr.mxu0 0.0
  %v1038 = vand.u32 %v62, 4294901760
  %1039 = vmatpush1.msra.mxu0 %v1038
  %1040 = vmatprep.subr.mxu0 0.0
  %v1041 = vand.u32 %v63, 4294901760
  %1042 = vmatpush1.msra.mxu0 %v1041
  %1043 = vmatprep.subr.mxu0 0.0
  %v1044 = vand.u32 %v64, 4294901760
  %1045 = vmatpush1.msra.mxu0 %v1044
  %1046 = vmatprep.subr.mxu0 0.0
  %v1047 = vand.u32 %v65, 4294901760
  %1048 = vmatpush1.msra.mxu0 %v1047
  %v1049 = vand.u32 %v21, 4294901760
  %1050 = vmatprep.mubr.f32.mxu0 %v1049
  %v1051 = vand.u32 %v20, 4294901760
  %1052 = vmatmul.mubr.f32.gmra.mrb[0].mxu0 %v1051
  %v1053 = vpop.f32.mrb[0].mxu0
  %v1054 = vadd.f32 %v943, %v1053
  %v1055 = vpop.f32.mrb[0].mxu0
  %v1056 = vand.u32 %v28, 4294901760
  %1057 = vmatprep.mubr.f32.mxu0 %v1056
  %v1058 = vand.u32 %v27, 4294901760
  %1059 = vmatmul.mubr.f32.gmra.mrb[0].mxu0 %v1058
  %v1060 = vpop.f32.mrb[0].mxu0
  %v1061 = vadd.f32 %v950, %v1060
  %v1062 = vpop.f32.mrb[0].mxu0
  %1063 = vdwg.mxu0
  %1064 = vmatprep.subr.mxu0 0.0
  %v1065 = vand.u32 %v66, 4294901760
  %1066 = vmatpush1.msra.mxu0 %v1065
  %1067 = vmatprep.subr.mxu0 0.0
  %v1068 = vand.u32 %v67, 4294901760
  %1069 = vmatpush1.msra.mxu0 %v1068
  %1070 = vmatprep.subr.mxu0 0.0
  %v1071 = vand.u32 %v68, 4294901760
  %1072 = vmatpush1.msra.mxu0 %v1071
  %1073 = vmatprep.subr.mxu0 0.0
  %v1074 = vand.u32 %v69, 4294901760
  %1075 = vmatpush1.msra.mxu0 %v1074
  %1076 = vmatprep.subr.mxu0 0.0
  %v1077 = vand.u32 %v70, 4294901760
  %1078 = vmatpush1.msra.mxu0 %v1077
  %1079 = vmatprep.subr.mxu0 0.0
  %v1080 = vand.u32 %v71, 4294901760
  %1081 = vmatpush1.msra.mxu0 %v1080
  %1082 = vmatprep.subr.mxu0 0.0
  %v1083 = vand.u32 %v72, 4294901760
  %1084 = vmatpush1.msra.mxu0 %v1083
  %1085 = vmatprep.subr.mxu0 0.0
  %v1086 = vand.u32 %v73, 4294901760
  %1087 = vmatpush1.msra.mxu0 %v1086
  %1088 = vmatprep.subr.mxu0 0.0
  %v1089 = vand.u32 %v74, 4294901760
  %1090 = vmatpush1.msra.mxu0 %v1089
  %1091 = vmatprep.subr.mxu0 0.0
  %v1092 = vand.u32 %v75, 4294901760
  %1093 = vmatpush1.msra.mxu0 %v1092
  %1094 = vmatprep.subr.mxu0 0.0
  %v1095 = vand.u32 %v76, 4294901760
  %1096 = vmatpush1.msra.mxu0 %v1095
  %1097 = vmatprep.subr.mxu0 0.0
  %v1098 = vand.u32 %v77, 4294901760
  %1099 = vmatpush1.msra.mxu0 %v1098
  %1100 = vmatprep.subr.mxu0 0.0
  %v1101 = vand.u32 %v78, 4294901760
  %1102 = vmatpush1.msra.mxu0 %v1101
  %1103 = vmatprep.subr.mxu0 0.0
  %v1104 = vand.u32 %v79, 4294901760
  %1105 = vmatpush1.msra.mxu0 %v1104
  %1106 = vmatprep.subr.mxu0 0.0
  %v1107 = vand.u32 %v80, 4294901760
  %1108 = vmatpush1.msra.mxu0 %v1107
  %1109 = vmatprep.subr.mxu0 0.0
  %v1110 = vand.u32 %v81, 4294901760
  %1111 = vmatpush1.msra.mxu0 %v1110
  %1112 = vmatprep.subr.mxu0 0.0
  %v1113 = vand.u32 %v82, 4294901760
  %1114 = vmatpush1.msra.mxu0 %v1113
  %1115 = vmatprep.subr.mxu0 0.0
  %v1116 = vand.u32 %v83, 4294901760
  %1117 = vmatpush1.msra.mxu0 %v1116
  %1118 = vmatprep.subr.mxu0 0.0
  %v1119 = vand.u32 %v84, 4294901760
  %1120 = vmatpush1.msra.mxu0 %v1119
  %1121 = vmatprep.subr.mxu0 0.0
  %v1122 = vand.u32 %v85, 4294901760
  %1123 = vmatpush1.msra.mxu0 %v1122
  %1124 = vmatprep.subr.mxu0 0.0
  %v1125 = vand.u32 %v86, 4294901760
  %1126 = vmatpush1.msra.mxu0 %v1125
  %1127 = vmatprep.subr.mxu0 0.0
  %v1128 = vand.u32 %v87, 4294901760
  %1129 = vmatpush1.msra.mxu0 %v1128
  %1130 = vmatprep.subr.mxu0 0.0
  %v1131 = vand.u32 %v88, 4294901760
  %1132 = vmatpush1.msra.mxu0 %v1131
  %1133 = vmatprep.subr.mxu0 0.0
  %v1134 = vand.u32 %v89, 4294901760
  %1135 = vmatpush1.msra.mxu0 %v1134
  %1136 = vmatprep.subr.mxu0 0.0
  %v1137 = vand.u32 %v90, 4294901760
  %1138 = vmatpush1.msra.mxu0 %v1137
  %1139 = vmatprep.subr.mxu0 0.0
  %v1140 = vand.u32 %v91, 4294901760
  %1141 = vmatpush1.msra.mxu0 %v1140
  %1142 = vmatprep.subr.mxu0 0.0
  %v1143 = vand.u32 %v92, 4294901760
  %1144 = vmatpush1.msra.mxu0 %v1143
  %1145 = vmatprep.subr.mxu0 0.0
  %v1146 = vand.u32 %v93, 4294901760
  %1147 = vmatpush1.msra.mxu0 %v1146
  %1148 = vmatprep.subr.mxu0 0.0
  %v1149 = vand.u32 %v94, 4294901760
  %1150 = vmatpush1.msra.mxu0 %v1149
  %1151 = vmatprep.subr.mxu0 0.0
  %v1152 = vand.u32 %v95, 4294901760
  %1153 = vmatpush1.msra.mxu0 %v1152
  %1154 = vmatprep.subr.mxu0 0.0
  %v1155 = vand.u32 %v96, 4294901760
  %1156 = vmatpush1.msra.mxu0 %v1155
  %1157 = vmatprep.subr.mxu0 0.0
  %v1158 = vand.u32 %v97, 4294901760
  %1159 = vmatpush1.msra.mxu0 %v1158
  %v1160 = vand.u32 %v23, 4294901760
  %v1161 = vsub.f32 %v23, %v1160
  %v1162 = vand.u32 %v1161, 4294901760
  %v1163 = vsub.f32 %v1161, %v1162
  %v1164 = vand.u32 %v1163, 4294901760
  %1165 = vmatprep.mubr.f32.mxu0 %v1164
  %v1166 = vand.u32 %v22, 4294901760
  %v1167 = vsub.f32 %v22, %v1166
  %v1168 = vand.u32 %v1167, 4294901760
  %v1169 = vsub.f32 %v1167, %v1168
  %v1170 = vand.u32 %v1169, 4294901760
  %1171 = vmatmul.mubr.f32.gmra.mrb[0].mxu0 %v1170
  %v1172 = vpop.f32.mrb[0].mxu0
  %v1173 = vadd.f32 %v1054, %v1172
  %v1174 = vpop.f32.mrb[0].mxu0
  %v1175 = vand.u32 %v30, 4294901760
  %v1176 = vsub.f32 %v30, %v1175
  %v1177 = vand.u32 %v1176, 4294901760
  %v1178 = vsub.f32 %v1176, %v1177
  %v1179 = vand.u32 %v1178, 4294901760
  %1180 = vmatprep.mubr.f32.mxu0 %v1179
  %v1181 = vand.u32 %v29, 4294901760
  %v1182 = vsub.f32 %v29, %v1181
  %v1183 = vand.u32 %v1182, 4294901760
  %v1184 = vsub.f32 %v1182, %v1183
  %v1185 = vand.u32 %v1184, 4294901760
  %1186 = vmatmul.mubr.f32.gmra.mrb[0].mxu0 %v1185
  %v1187 = vpop.f32.mrb[0].mxu0
  %v1188 = vadd.f32 %v1061, %v1187
  %v1189 = vpop.f32.mrb[0].mxu0
  %1190 = vdwg.mxu0
  %1191 = vmatprep.subr.mxu0 0.0
  %v1192 = vand.u32 %v66, 4294901760
  %v1193 = vsub.f32 %v66, %v1192
  %v1194 = vand.u32 %v1193, 4294901760
  %v1195 = vsub.f32 %v1193, %v1194
  %v1196 = vand.u32 %v1195, 4294901760
  %1197 = vmatpush1.msra.mxu0 %v1196
  %1198 = vmatprep.subr.mxu0 0.0
  %v1199 = vand.u32 %v67, 4294901760
  %v1200 = vsub.f32 %v67, %v1199
  %v1201 = vand.u32 %v1200, 4294901760
  %v1202 = vsub.f32 %v1200, %v1201
  %v1203 = vand.u32 %v1202, 4294901760
  %1204 = vmatpush1.msra.mxu0 %v1203
  %1205 = vmatprep.subr.mxu0 0.0
  %v1206 = vand.u32 %v68, 4294901760
  %v1207 = vsub.f32 %v68, %v1206
  %v1208 = vand.u32 %v1207, 4294901760
  %v1209 = vsub.f32 %v1207, %v1208
  %v1210 = vand.u32 %v1209, 4294901760
  %1211 = vmatpush1.msra.mxu0 %v1210
  %1212 = vmatprep.subr.mxu0 0.0
  %v1213 = vand.u32 %v69, 4294901760
  %v1214 = vsub.f32 %v69, %v1213
  %v1215 = vand.u32 %v1214, 4294901760
  %v1216 = vsub.f32 %v1214, %v1215
  %v1217 = vand.u32 %v1216, 4294901760
  %1218 = vmatpush1.msra.mxu0 %v1217
  %1219 = vmatprep.subr.mxu0 0.0
  %v1220 = vand.u32 %v70, 4294901760
  %v1221 = vsub.f32 %v70, %v1220
  %v1222 = vand.u32 %v1221, 4294901760
  %v1223 = vsub.f32 %v1221, %v1222
  %v1224 = vand.u32 %v1223, 4294901760
  %1225 = vmatpush1.msra.mxu0 %v1224
  %1226 = vmatprep.subr.mxu0 0.0
  %v1227 = vand.u32 %v71, 4294901760
  %v1228 = vsub.f32 %v71, %v1227
  %v1229 = vand.u32 %v1228, 4294901760
  %v1230 = vsub.f32 %v1228, %v1229
  %v1231 = vand.u32 %v1230, 4294901760
  %1232 = vmatpush1.msra.mxu0 %v1231
  %1233 = vmatprep.subr.mxu0 0.0
  %v1234 = vand.u32 %v72, 4294901760
  %v1235 = vsub.f32 %v72, %v1234
  %v1236 = vand.u32 %v1235, 4294901760
  %v1237 = vsub.f32 %v1235, %v1236
  %v1238 = vand.u32 %v1237, 4294901760
  %1239 = vmatpush1.msra.mxu0 %v1238
  %1240 = vmatprep.subr.mxu0 0.0
  %v1241 = vand.u32 %v73, 4294901760
  %v1242 = vsub.f32 %v73, %v1241
  %v1243 = vand.u32 %v1242, 4294901760
  %v1244 = vsub.f32 %v1242, %v1243
  %v1245 = vand.u32 %v1244, 4294901760
  %1246 = vmatpush1.msra.mxu0 %v1245
  %1247 = vmatprep.subr.mxu0 0.0
  %v1248 = vand.u32 %v74, 4294901760
  %v1249 = vsub.f32 %v74, %v1248
  %v1250 = vand.u32 %v1249, 4294901760
  %v1251 = vsub.f32 %v1249, %v1250
  %v1252 = vand.u32 %v1251, 4294901760
  %1253 = vmatpush1.msra.mxu0 %v1252
  %1254 = vmatprep.subr.mxu0 0.0
  %v1255 = vand.u32 %v75, 4294901760
  %v1256 = vsub.f32 %v75, %v1255
  %v1257 = vand.u32 %v1256, 4294901760
  %v1258 = vsub.f32 %v1256, %v1257
  %v1259 = vand.u32 %v1258, 4294901760
  %1260 = vmatpush1.msra.mxu0 %v1259
  %1261 = vmatprep.subr.mxu0 0.0
  %v1262 = vand.u32 %v76, 4294901760
  %v1263 = vsub.f32 %v76, %v1262
  %v1264 = vand.u32 %v1263, 4294901760
  %v1265 = vsub.f32 %v1263, %v1264
  %v1266 = vand.u32 %v1265, 4294901760
  %1267 = vmatpush1.msra.mxu0 %v1266
  %1268 = vmatprep.subr.mxu0 0.0
  %v1269 = vand.u32 %v77, 4294901760
  %v1270 = vsub.f32 %v77, %v1269
  %v1271 = vand.u32 %v1270, 4294901760
  %v1272 = vsub.f32 %v1270, %v1271
  %v1273 = vand.u32 %v1272, 4294901760
  %1274 = vmatpush1.msra.mxu0 %v1273
  %1275 = vmatprep.subr.mxu0 0.0
  %v1276 = vand.u32 %v78, 4294901760
  %v1277 = vsub.f32 %v78, %v1276
  %v1278 = vand.u32 %v1277, 4294901760
  %v1279 = vsub.f32 %v1277, %v1278
  %v1280 = vand.u32 %v1279, 4294901760
  %1281 = vmatpush1.msra.mxu0 %v1280
  %1282 = vmatprep.subr.mxu0 0.0
  %v1283 = vand.u32 %v79, 4294901760
  %v1284 = vsub.f32 %v79, %v1283
  %v1285 = vand.u32 %v1284, 4294901760
  %v1286 = vsub.f32 %v1284, %v1285
  %v1287 = vand.u32 %v1286, 4294901760
  %1288 = vmatpush1.msra.mxu0 %v1287
  %1289 = vmatprep.subr.mxu0 0.0
  %v1290 = vand.u32 %v80, 4294901760
  %v1291 = vsub.f32 %v80, %v1290
  %v1292 = vand.u32 %v1291, 4294901760
  %v1293 = vsub.f32 %v1291, %v1292
  %v1294 = vand.u32 %v1293, 4294901760
  %1295 = vmatpush1.msra.mxu0 %v1294
  %1296 = vmatprep.subr.mxu0 0.0
  %v1297 = vand.u32 %v81, 4294901760
  %v1298 = vsub.f32 %v81, %v1297
  %v1299 = vand.u32 %v1298, 4294901760
  %v1300 = vsub.f32 %v1298, %v1299
  %v1301 = vand.u32 %v1300, 4294901760
  %1302 = vmatpush1.msra.mxu0 %v1301
  %1303 = vmatprep.subr.mxu0 0.0
  %v1304 = vand.u32 %v82, 4294901760
  %v1305 = vsub.f32 %v82, %v1304
  %v1306 = vand.u32 %v1305, 4294901760
  %v1307 = vsub.f32 %v1305, %v1306
  %v1308 = vand.u32 %v1307, 4294901760
  %1309 = vmatpush1.msra.mxu0 %v1308
  %1310 = vmatprep.subr.mxu0 0.0
  %v1311 = vand.u32 %v83, 4294901760
  %v1312 = vsub.f32 %v83, %v1311
  %v1313 = vand.u32 %v1312, 4294901760
  %v1314 = vsub.f32 %v1312, %v1313
  %v1315 = vand.u32 %v1314, 4294901760
  %1316 = vmatpush1.msra.mxu0 %v1315
  %1317 = vmatprep.subr.mxu0 0.0
  %v1318 = vand.u32 %v84, 4294901760
  %v1319 = vsub.f32 %v84, %v1318
  %v1320 = vand.u32 %v1319, 4294901760
  %v1321 = vsub.f32 %v1319, %v1320
  %v1322 = vand.u32 %v1321, 4294901760
  %1323 = vmatpush1.msra.mxu0 %v1322
  %1324 = vmatprep.subr.mxu0 0.0
  %v1325 = vand.u32 %v85, 4294901760
  %v1326 = vsub.f32 %v85, %v1325
  %v1327 = vand.u32 %v1326, 4294901760
  %v1328 = vsub.f32 %v1326, %v1327
  %v1329 = vand.u32 %v1328, 4294901760
  %1330 = vmatpush1.msra.mxu0 %v1329
  %1331 = vmatprep.subr.mxu0 0.0
  %v1332 = vand.u32 %v86, 4294901760
  %v1333 = vsub.f32 %v86, %v1332
  %v1334 = vand.u32 %v1333, 4294901760
  %v1335 = vsub.f32 %v1333, %v1334
  %v1336 = vand.u32 %v1335, 4294901760
  %1337 = vmatpush1.msra.mxu0 %v1336
  %1338 = vmatprep.subr.mxu0 0.0
  %v1339 = vand.u32 %v87, 4294901760
  %v1340 = vsub.f32 %v87, %v1339
  %v1341 = vand.u32 %v1340, 4294901760
  %v1342 = vsub.f32 %v1340, %v1341
  %v1343 = vand.u32 %v1342, 4294901760
  %1344 = vmatpush1.msra.mxu0 %v1343
  %1345 = vmatprep.subr.mxu0 0.0
  %v1346 = vand.u32 %v88, 4294901760
  %v1347 = vsub.f32 %v88, %v1346
  %v1348 = vand.u32 %v1347, 4294901760
  %v1349 = vsub.f32 %v1347, %v1348
  %v1350 = vand.u32 %v1349, 4294901760
  %1351 = vmatpush1.msra.mxu0 %v1350
  %1352 = vmatprep.subr.mxu0 0.0
  %v1353 = vand.u32 %v89, 4294901760
  %v1354 = vsub.f32 %v89, %v1353
  %v1355 = vand.u32 %v1354, 4294901760
  %v1356 = vsub.f32 %v1354, %v1355
  %v1357 = vand.u32 %v1356, 4294901760
  %1358 = vmatpush1.msra.mxu0 %v1357
  %1359 = vmatprep.subr.mxu0 0.0
  %v1360 = vand.u32 %v90, 4294901760
  %v1361 = vsub.f32 %v90, %v1360
  %v1362 = vand.u32 %v1361, 4294901760
  %v1363 = vsub.f32 %v1361, %v1362
  %v1364 = vand.u32 %v1363, 4294901760
  %1365 = vmatpush1.msra.mxu0 %v1364
  %1366 = vmatprep.subr.mxu0 0.0
  %v1367 = vand.u32 %v91, 4294901760
  %v1368 = vsub.f32 %v91, %v1367
  %v1369 = vand.u32 %v1368, 4294901760
  %v1370 = vsub.f32 %v1368, %v1369
  %v1371 = vand.u32 %v1370, 4294901760
  %1372 = vmatpush1.msra.mxu0 %v1371
  %1373 = vmatprep.subr.mxu0 0.0
  %v1374 = vand.u32 %v92, 4294901760
  %v1375 = vsub.f32 %v92, %v1374
  %v1376 = vand.u32 %v1375, 4294901760
  %v1377 = vsub.f32 %v1375, %v1376
  %v1378 = vand.u32 %v1377, 4294901760
  %1379 = vmatpush1.msra.mxu0 %v1378
  %1380 = vmatprep.subr.mxu0 0.0
  %v1381 = vand.u32 %v93, 4294901760
  %v1382 = vsub.f32 %v93, %v1381
  %v1383 = vand.u32 %v1382, 4294901760
  %v1384 = vsub.f32 %v1382, %v1383
  %v1385 = vand.u32 %v1384, 4294901760
  %1386 = vmatpush1.msra.mxu0 %v1385
  %1387 = vmatprep.subr.mxu0 0.0
  %v1388 = vand.u32 %v94, 4294901760
  %v1389 = vsub.f32 %v94, %v1388
  %v1390 = vand.u32 %v1389, 4294901760
  %v1391 = vsub.f32 %v1389, %v1390
  %v1392 = vand.u32 %v1391, 4294901760
  %1393 = vmatpush1.msra.mxu0 %v1392
  %1394 = vmatprep.subr.mxu0 0.0
  %v1395 = vand.u32 %v95, 4294901760
  %v1396 = vsub.f32 %v95, %v1395
  %v1397 = vand.u32 %v1396, 4294901760
  %v1398 = vsub.f32 %v1396, %v1397
  %v1399 = vand.u32 %v1398, 4294901760
  %1400 = vmatpush1.msra.mxu0 %v1399
  %1401 = vmatprep.subr.mxu0 0.0
  %v1402 = vand.u32 %v96, 4294901760
  %v1403 = vsub.f32 %v96, %v1402
  %v1404 = vand.u32 %v1403, 4294901760
  %v1405 = vsub.f32 %v1403, %v1404
  %v1406 = vand.u32 %v1405, 4294901760
  %1407 = vmatpush1.msra.mxu0 %v1406
  %1408 = vmatprep.subr.mxu0 0.0
  %v1409 = vand.u32 %v97, 4294901760
  %v1410 = vsub.f32 %v97, %v1409
  %v1411 = vand.u32 %v1410, 4294901760
  %v1412 = vsub.f32 %v1410, %v1411
  %v1413 = vand.u32 %v1412, 4294901760
  %1414 = vmatpush1.msra.mxu0 %v1413
  %v1415 = vand.u32 %v23, 4294901760
  %1416 = vmatprep.mubr.f32.mxu0 %v1415
  %v1417 = vand.u32 %v22, 4294901760
  %1418 = vmatmul.mubr.f32.gmra.mrb[0].mxu0 %v1417
  %v1419 = vpop.f32.mrb[0].mxu0
  %v1420 = vadd.f32 %v1173, %v1419
  %v1421 = vpop.f32.mrb[0].mxu0
  %v1422 = vand.u32 %v30, 4294901760
  %1423 = vmatprep.mubr.f32.mxu0 %v1422
  %v1424 = vand.u32 %v29, 4294901760
  %1425 = vmatmul.mubr.f32.gmra.mrb[0].mxu0 %v1424
  %v1426 = vpop.f32.mrb[0].mxu0
  %v1427 = vadd.f32 %v1188, %v1426
  %v1428 = vpop.f32.mrb[0].mxu0
  %1429 = vdwg.mxu0
  %1430 = vmatprep.subr.mxu0 0.0
  %v1431 = vand.u32 %v66, 4294901760
  %v1432 = vsub.f32 %v66, %v1431
  %1433 = vmatpush1.msra.mxu0 %v1432
  %1434 = vmatprep.subr.mxu0 0.0
  %v1435 = vand.u32 %v67, 4294901760
  %v1436 = vsub.f32 %v67, %v1435
  %1437 = vmatpush1.msra.mxu0 %v1436
  %1438 = vmatprep.subr.mxu0 0.0
  %v1439 = vand.u32 %v68, 4294901760
  %v1440 = vsub.f32 %v68, %v1439
  %1441 = vmatpush1.msra.mxu0 %v1440
  %1442 = vmatprep.subr.mxu0 0.0
  %v1443 = vand.u32 %v69, 4294901760
  %v1444 = vsub.f32 %v69, %v1443
  %1445 = vmatpush1.msra.mxu0 %v1444
  %1446 = vmatprep.subr.mxu0 0.0
  %v1447 = vand.u32 %v70, 4294901760
  %v1448 = vsub.f32 %v70, %v1447
  %1449 = vmatpush1.msra.mxu0 %v1448
  %1450 = vmatprep.subr.mxu0 0.0
  %v1451 = vand.u32 %v71, 4294901760
  %v1452 = vsub.f32 %v71, %v1451
  %1453 = vmatpush1.msra.mxu0 %v1452
  %1454 = vmatprep.subr.mxu0 0.0
  %v1455 = vand.u32 %v72, 4294901760
  %v1456 = vsub.f32 %v72, %v1455
  %1457 = vmatpush1.msra.mxu0 %v1456
  %1458 = vmatprep.subr.mxu0 0.0
  %v1459 = vand.u32 %v73, 4294901760
  %v1460 = vsub.f32 %v73, %v1459
  %1461 = vmatpush1.msra.mxu0 %v1460
  %1462 = vmatprep.subr.mxu0 0.0
  %v1463 = vand.u32 %v74, 4294901760
  %v1464 = vsub.f32 %v74, %v1463
  %1465 = vmatpush1.msra.mxu0 %v1464
  %1466 = vmatprep.subr.mxu0 0.0
  %v1467 = vand.u32 %v75, 4294901760
  %v1468 = vsub.f32 %v75, %v1467
  %1469 = vmatpush1.msra.mxu0 %v1468
  %1470 = vmatprep.subr.mxu0 0.0
  %v1471 = vand.u32 %v76, 4294901760
  %v1472 = vsub.f32 %v76, %v1471
  %1473 = vmatpush1.msra.mxu0 %v1472
  %1474 = vmatprep.subr.mxu0 0.0
  %v1475 = vand.u32 %v77, 4294901760
  %v1476 = vsub.f32 %v77, %v1475
  %1477 = vmatpush1.msra.mxu0 %v1476
  %1478 = vmatprep.subr.mxu0 0.0
  %v1479 = vand.u32 %v78, 4294901760
  %v1480 = vsub.f32 %v78, %v1479
  %1481 = vmatpush1.msra.mxu0 %v1480
  %1482 = vmatprep.subr.mxu0 0.0
  %v1483 = vand.u32 %v79, 4294901760
  %v1484 = vsub.f32 %v79, %v1483
  %1485 = vmatpush1.msra.mxu0 %v1484
  %1486 = vmatprep.subr.mxu0 0.0
  %v1487 = vand.u32 %v80, 4294901760
  %v1488 = vsub.f32 %v80, %v1487
  %1489 = vmatpush1.msra.mxu0 %v1488
  %1490 = vmatprep.subr.mxu0 0.0
  %v1491 = vand.u32 %v81, 4294901760
  %v1492 = vsub.f32 %v81, %v1491
  %1493 = vmatpush1.msra.mxu0 %v1492
  %1494 = vmatprep.subr.mxu0 0.0
  %v1495 = vand.u32 %v82, 4294901760
  %v1496 = vsub.f32 %v82, %v1495
  %1497 = vmatpush1.msra.mxu0 %v1496
  %1498 = vmatprep.subr.mxu0 0.0
  %v1499 = vand.u32 %v83, 4294901760
  %v1500 = vsub.f32 %v83, %v1499
  %1501 = vmatpush1.msra.mxu0 %v1500
  %1502 = vmatprep.subr.mxu0 0.0
  %v1503 = vand.u32 %v84, 4294901760
  %v1504 = vsub.f32 %v84, %v1503
  %1505 = vmatpush1.msra.mxu0 %v1504
  %1506 = vmatprep.subr.mxu0 0.0
  %v1507 = vand.u32 %v85, 4294901760
  %v1508 = vsub.f32 %v85, %v1507
  %1509 = vmatpush1.msra.mxu0 %v1508
  %1510 = vmatprep.subr.mxu0 0.0
  %v1511 = vand.u32 %v86, 4294901760
  %v1512 = vsub.f32 %v86, %v1511
  %1513 = vmatpush1.msra.mxu0 %v1512
  %1514 = vmatprep.subr.mxu0 0.0
  %v1515 = vand.u32 %v87, 4294901760
  %v1516 = vsub.f32 %v87, %v1515
  %1517 = vmatpush1.msra.mxu0 %v1516
  %1518 = vmatprep.subr.mxu0 0.0
  %v1519 = vand.u32 %v88, 4294901760
  %v1520 = vsub.f32 %v88, %v1519
  %1521 = vmatpush1.msra.mxu0 %v1520
  %1522 = vmatprep.subr.mxu0 0.0
  %v1523 = vand.u32 %v89, 4294901760
  %v1524 = vsub.f32 %v89, %v1523
  %1525 = vmatpush1.msra.mxu0 %v1524
  %1526 = vmatprep.subr.mxu0 0.0
  %v1527 = vand.u32 %v90, 4294901760
  %v1528 = vsub.f32 %v90, %v1527
  %1529 = vmatpush1.msra.mxu0 %v1528
  %1530 = vmatprep.subr.mxu0 0.0
  %v1531 = vand.u32 %v91, 4294901760
  %v1532 = vsub.f32 %v91, %v1531
  %1533 = vmatpush1.msra.mxu0 %v1532
  %1534 = vmatprep.subr.mxu0 0.0
  %v1535 = vand.u32 %v92, 4294901760
  %v1536 = vsub.f32 %v92, %v1535
  %1537 = vmatpush1.msra.mxu0 %v1536
  %1538 = vmatprep.subr.mxu0 0.0
  %v1539 = vand.u32 %v93, 4294901760
  %v1540 = vsub.f32 %v93, %v1539
  %1541 = vmatpush1.msra.mxu0 %v1540
  %1542 = vmatprep.subr.mxu0 0.0
  %v1543 = vand.u32 %v94, 4294901760
  %v1544 = vsub.f32 %v94, %v1543
  %1545 = vmatpush1.msra.mxu0 %v1544
  %1546 = vmatprep.subr.mxu0 0.0
  %v1547 = vand.u32 %v95, 4294901760
  %v1548 = vsub.f32 %v95, %v1547
  %1549 = vmatpush1.msra.mxu0 %v1548
  %1550 = vmatprep.subr.mxu0 0.0
  %v1551 = vand.u32 %v96, 4294901760
  %v1552 = vsub.f32 %v96, %v1551
  %1553 = vmatpush1.msra.mxu0 %v1552
  %1554 = vmatprep.subr.mxu0 0.0
  %v1555 = vand.u32 %v97, 4294901760
  %v1556 = vsub.f32 %v97, %v1555
  %1557 = vmatpush1.msra.mxu0 %v1556
  %v1558 = vand.u32 %v23, 4294901760
  %v1559 = vsub.f32 %v23, %v1558
  %1560 = vmatprep.mubr.f32.mxu0 %v1559
  %v1561 = vand.u32 %v22, 4294901760
  %v1562 = vsub.f32 %v22, %v1561
  %1563 = vmatmul.mubr.f32.gmra.mrb[0].mxu0 %v1562
  %v1564 = vpop.f32.mrb[0].mxu0
  %v1565 = vadd.f32 %v1420, %v1564
  %v1566 = vpop.f32.mrb[0].mxu0
  %v1567 = vand.u32 %v30, 4294901760
  %v1568 = vsub.f32 %v30, %v1567
  %1569 = vmatprep.mubr.f32.mxu0 %v1568
  %v1570 = vand.u32 %v29, 4294901760
  %v1571 = vsub.f32 %v29, %v1570
  %1572 = vmatmul.mubr.f32.gmra.mrb[0].mxu0 %v1571
  %v1573 = vpop.f32.mrb[0].mxu0
  %v1574 = vadd.f32 %v1427, %v1573
  %v1575 = vpop.f32.mrb[0].mxu0
  %1576 = vdwg.mxu0
  %1577 = vmatprep.subr.mxu0 0.0
  %v1578 = vand.u32 %v66, 4294901760
  %1579 = vmatpush1.msra.mxu0 %v1578
  %1580 = vmatprep.subr.mxu0 0.0
  %v1581 = vand.u32 %v67, 4294901760
  %1582 = vmatpush1.msra.mxu0 %v1581
  %1583 = vmatprep.subr.mxu0 0.0
  %v1584 = vand.u32 %v68, 4294901760
  %1585 = vmatpush1.msra.mxu0 %v1584
  %1586 = vmatprep.subr.mxu0 0.0
  %v1587 = vand.u32 %v69, 4294901760
  %1588 = vmatpush1.msra.mxu0 %v1587
  %1589 = vmatprep.subr.mxu0 0.0
  %v1590 = vand.u32 %v70, 4294901760
  %1591 = vmatpush1.msra.mxu0 %v1590
  %1592 = vmatprep.subr.mxu0 0.0
  %v1593 = vand.u32 %v71, 4294901760
  %1594 = vmatpush1.msra.mxu0 %v1593
  %1595 = vmatprep.subr.mxu0 0.0
  %v1596 = vand.u32 %v72, 4294901760
  %1597 = vmatpush1.msra.mxu0 %v1596
  %1598 = vmatprep.subr.mxu0 0.0
  %v1599 = vand.u32 %v73, 4294901760
  %1600 = vmatpush1.msra.mxu0 %v1599
  %1601 = vmatprep.subr.mxu0 0.0
  %v1602 = vand.u32 %v74, 4294901760
  %1603 = vmatpush1.msra.mxu0 %v1602
  %1604 = vmatprep.subr.mxu0 0.0
  %v1605 = vand.u32 %v75, 4294901760
  %1606 = vmatpush1.msra.mxu0 %v1605
  %1607 = vmatprep.subr.mxu0 0.0
  %v1608 = vand.u32 %v76, 4294901760
  %1609 = vmatpush1.msra.mxu0 %v1608
  %1610 = vmatprep.subr.mxu0 0.0
  %v1611 = vand.u32 %v77, 4294901760
  %1612 = vmatpush1.msra.mxu0 %v1611
  %1613 = vmatprep.subr.mxu0 0.0
  %v1614 = vand.u32 %v78, 4294901760
  %1615 = vmatpush1.msra.mxu0 %v1614
  %1616 = vmatprep.subr.mxu0 0.0
  %v1617 = vand.u32 %v79, 4294901760
  %1618 = vmatpush1.msra.mxu0 %v1617
  %1619 = vmatprep.subr.mxu0 0.0
  %v1620 = vand.u32 %v80, 4294901760
  %1621 = vmatpush1.msra.mxu0 %v1620
  %1622 = vmatprep.subr.mxu0 0.0
  %v1623 = vand.u32 %v81, 4294901760
  %1624 = vmatpush1.msra.mxu0 %v1623
  %1625 = vmatprep.subr.mxu0 0.0
  %v1626 = vand.u32 %v82, 4294901760
  %1627 = vmatpush1.msra.mxu0 %v1626
  %1628 = vmatprep.subr.mxu0 0.0
  %v1629 = vand.u32 %v83, 4294901760
  %1630 = vmatpush1.msra.mxu0 %v1629
  %1631 = vmatprep.subr.mxu0 0.0
  %v1632 = vand.u32 %v84, 4294901760
  %1633 = vmatpush1.msra.mxu0 %v1632
  %1634 = vmatprep.subr.mxu0 0.0
  %v1635 = vand.u32 %v85, 4294901760
  %1636 = vmatpush1.msra.mxu0 %v1635
  %1637 = vmatprep.subr.mxu0 0.0
  %v1638 = vand.u32 %v86, 4294901760
  %1639 = vmatpush1.msra.mxu0 %v1638
  %1640 = vmatprep.subr.mxu0 0.0
  %v1641 = vand.u32 %v87, 4294901760
  %1642 = vmatpush1.msra.mxu0 %v1641
  %1643 = vmatprep.subr.mxu0 0.0
  %v1644 = vand.u32 %v88, 4294901760
  %1645 = vmatpush1.msra.mxu0 %v1644
  %1646 = vmatprep.subr.mxu0 0.0
  %v1647 = vand.u32 %v89, 4294901760
  %1648 = vmatpush1.msra.mxu0 %v1647
  %1649 = vmatprep.subr.mxu0 0.0
  %v1650 = vand.u32 %v90, 4294901760
  %1651 = vmatpush1.msra.mxu0 %v1650
  %1652 = vmatprep.subr.mxu0 0.0
  %v1653 = vand.u32 %v91, 4294901760
  %1654 = vmatpush1.msra.mxu0 %v1653
  %1655 = vmatprep.subr.mxu0 0.0
  %v1656 = vand.u32 %v92, 4294901760
  %1657 = vmatpush1.msra.mxu0 %v1656
  %1658 = vmatprep.subr.mxu0 0.0
  %v1659 = vand.u32 %v93, 4294901760
  %1660 = vmatpush1.msra.mxu0 %v1659
  %1661 = vmatprep.subr.mxu0 0.0
  %v1662 = vand.u32 %v94, 4294901760
  %1663 = vmatpush1.msra.mxu0 %v1662
  %1664 = vmatprep.subr.mxu0 0.0
  %v1665 = vand.u32 %v95, 4294901760
  %1666 = vmatpush1.msra.mxu0 %v1665
  %1667 = vmatprep.subr.mxu0 0.0
  %v1668 = vand.u32 %v96, 4294901760
  %1669 = vmatpush1.msra.mxu0 %v1668
  %1670 = vmatprep.subr.mxu0 0.0
  %v1671 = vand.u32 %v97, 4294901760
  %1672 = vmatpush1.msra.mxu0 %v1671
  %v1673 = vand.u32 %v23, 4294901760
  %v1674 = vsub.f32 %v23, %v1673
  %v1675 = vand.u32 %v1674, 4294901760
  %1676 = vmatprep.mubr.f32.mxu0 %v1675
  %v1677 = vand.u32 %v22, 4294901760
  %v1678 = vsub.f32 %v22, %v1677
  %v1679 = vand.u32 %v1678, 4294901760
  %1680 = vmatmul.mubr.f32.gmra.mrb[0].mxu0 %v1679
  %v1681 = vpop.f32.mrb[0].mxu0
  %v1682 = vadd.f32 %v1565, %v1681
  %v1683 = vpop.f32.mrb[0].mxu0
  %v1684 = vand.u32 %v30, 4294901760
  %v1685 = vsub.f32 %v30, %v1684
  %v1686 = vand.u32 %v1685, 4294901760
  %1687 = vmatprep.mubr.f32.mxu0 %v1686
  %v1688 = vand.u32 %v29, 4294901760
  %v1689 = vsub.f32 %v29, %v1688
  %v1690 = vand.u32 %v1689, 4294901760
  %1691 = vmatmul.mubr.f32.gmra.mrb[0].mxu0 %v1690
  %v1692 = vpop.f32.mrb[0].mxu0
  %v1693 = vadd.f32 %v1574, %v1692
  %v1694 = vpop.f32.mrb[0].mxu0
  %1695 = vdwg.mxu0
  %1696 = vmatprep.subr.mxu0 0.0
  %v1697 = vand.u32 %v66, 4294901760
  %v1698 = vsub.f32 %v66, %v1697
  %v1699 = vand.u32 %v1698, 4294901760
  %1700 = vmatpush1.msra.mxu0 %v1699
  %1701 = vmatprep.subr.mxu0 0.0
  %v1702 = vand.u32 %v67, 4294901760
  %v1703 = vsub.f32 %v67, %v1702
  %v1704 = vand.u32 %v1703, 4294901760
  %1705 = vmatpush1.msra.mxu0 %v1704
  %1706 = vmatprep.subr.mxu0 0.0
  %v1707 = vand.u32 %v68, 4294901760
  %v1708 = vsub.f32 %v68, %v1707
  %v1709 = vand.u32 %v1708, 4294901760
  %1710 = vmatpush1.msra.mxu0 %v1709
  %1711 = vmatprep.subr.mxu0 0.0
  %v1712 = vand.u32 %v69, 4294901760
  %v1713 = vsub.f32 %v69, %v1712
  %v1714 = vand.u32 %v1713, 4294901760
  %1715 = vmatpush1.msra.mxu0 %v1714
  %1716 = vmatprep.subr.mxu0 0.0
  %v1717 = vand.u32 %v70, 4294901760
  %v1718 = vsub.f32 %v70, %v1717
  %v1719 = vand.u32 %v1718, 4294901760
  %1720 = vmatpush1.msra.mxu0 %v1719
  %1721 = vmatprep.subr.mxu0 0.0
  %v1722 = vand.u32 %v71, 4294901760
  %v1723 = vsub.f32 %v71, %v1722
  %v1724 = vand.u32 %v1723, 4294901760
  %1725 = vmatpush1.msra.mxu0 %v1724
  %1726 = vmatprep.subr.mxu0 0.0
  %v1727 = vand.u32 %v72, 4294901760
  %v1728 = vsub.f32 %v72, %v1727
  %v1729 = vand.u32 %v1728, 4294901760
  %1730 = vmatpush1.msra.mxu0 %v1729
  %1731 = vmatprep.subr.mxu0 0.0
  %v1732 = vand.u32 %v73, 4294901760
  %v1733 = vsub.f32 %v73, %v1732
  %v1734 = vand.u32 %v1733, 4294901760
  %1735 = vmatpush1.msra.mxu0 %v1734
  %1736 = vmatprep.subr.mxu0 0.0
  %v1737 = vand.u32 %v74, 4294901760
  %v1738 = vsub.f32 %v74, %v1737
  %v1739 = vand.u32 %v1738, 4294901760
  %1740 = vmatpush1.msra.mxu0 %v1739
  %1741 = vmatprep.subr.mxu0 0.0
  %v1742 = vand.u32 %v75, 4294901760
  %v1743 = vsub.f32 %v75, %v1742
  %v1744 = vand.u32 %v1743, 4294901760
  %1745 = vmatpush1.msra.mxu0 %v1744
  %1746 = vmatprep.subr.mxu0 0.0
  %v1747 = vand.u32 %v76, 4294901760
  %v1748 = vsub.f32 %v76, %v1747
  %v1749 = vand.u32 %v1748, 4294901760
  %1750 = vmatpush1.msra.mxu0 %v1749
  %1751 = vmatprep.subr.mxu0 0.0
  %v1752 = vand.u32 %v77, 4294901760
  %v1753 = vsub.f32 %v77, %v1752
  %v1754 = vand.u32 %v1753, 4294901760
  %1755 = vmatpush1.msra.mxu0 %v1754
  %1756 = vmatprep.subr.mxu0 0.0
  %v1757 = vand.u32 %v78, 4294901760
  %v1758 = vsub.f32 %v78, %v1757
  %v1759 = vand.u32 %v1758, 4294901760
  %1760 = vmatpush1.msra.mxu0 %v1759
  %1761 = vmatprep.subr.mxu0 0.0
  %v1762 = vand.u32 %v79, 4294901760
  %v1763 = vsub.f32 %v79, %v1762
  %v1764 = vand.u32 %v1763, 4294901760
  %1765 = vmatpush1.msra.mxu0 %v1764
  %1766 = vmatprep.subr.mxu0 0.0
  %v1767 = vand.u32 %v80, 4294901760
  %v1768 = vsub.f32 %v80, %v1767
  %v1769 = vand.u32 %v1768, 4294901760
  %1770 = vmatpush1.msra.mxu0 %v1769
  %1771 = vmatprep.subr.mxu0 0.0
  %v1772 = vand.u32 %v81, 4294901760
  %v1773 = vsub.f32 %v81, %v1772
  %v1774 = vand.u32 %v1773, 4294901760
  %1775 = vmatpush1.msra.mxu0 %v1774
  %1776 = vmatprep.subr.mxu0 0.0
  %v1777 = vand.u32 %v82, 4294901760
  %v1778 = vsub.f32 %v82, %v1777
  %v1779 = vand.u32 %v1778, 4294901760
  %1780 = vmatpush1.msra.mxu0 %v1779
  %1781 = vmatprep.subr.mxu0 0.0
  %v1782 = vand.u32 %v83, 4294901760
  %v1783 = vsub.f32 %v83, %v1782
  %v1784 = vand.u32 %v1783, 4294901760
  %1785 = vmatpush1.msra.mxu0 %v1784
  %1786 = vmatprep.subr.mxu0 0.0
  %v1787 = vand.u32 %v84, 4294901760
  %v1788 = vsub.f32 %v84, %v1787
  %v1789 = vand.u32 %v1788, 4294901760
  %1790 = vmatpush1.msra.mxu0 %v1789
  %1791 = vmatprep.subr.mxu0 0.0
  %v1792 = vand.u32 %v85, 4294901760
  %v1793 = vsub.f32 %v85, %v1792
  %v1794 = vand.u32 %v1793, 4294901760
  %1795 = vmatpush1.msra.mxu0 %v1794
  %1796 = vmatprep.subr.mxu0 0.0
  %v1797 = vand.u32 %v86, 4294901760
  %v1798 = vsub.f32 %v86, %v1797
  %v1799 = vand.u32 %v1798, 4294901760
  %1800 = vmatpush1.msra.mxu0 %v1799
  %1801 = vmatprep.subr.mxu0 0.0
  %v1802 = vand.u32 %v87, 4294901760
  %v1803 = vsub.f32 %v87, %v1802
  %v1804 = vand.u32 %v1803, 4294901760
  %1805 = vmatpush1.msra.mxu0 %v1804
  %1806 = vmatprep.subr.mxu0 0.0
  %v1807 = vand.u32 %v88, 4294901760
  %v1808 = vsub.f32 %v88, %v1807
  %v1809 = vand.u32 %v1808, 4294901760
  %1810 = vmatpush1.msra.mxu0 %v1809
  %1811 = vmatprep.subr.mxu0 0.0
  %v1812 = vand.u32 %v89, 4294901760
  %v1813 = vsub.f32 %v89, %v1812
  %v1814 = vand.u32 %v1813, 4294901760
  %1815 = vmatpush1.msra.mxu0 %v1814
  %1816 = vmatprep.subr.mxu0 0.0
  %v1817 = vand.u32 %v90, 4294901760
  %v1818 = vsub.f32 %v90, %v1817
  %v1819 = vand.u32 %v1818, 4294901760
  %1820 = vmatpush1.msra.mxu0 %v1819
  %1821 = vmatprep.subr.mxu0 0.0
  %v1822 = vand.u32 %v91, 4294901760
  %v1823 = vsub.f32 %v91, %v1822
  %v1824 = vand.u32 %v1823, 4294901760
  %1825 = vmatpush1.msra.mxu0 %v1824
  %1826 = vmatprep.subr.mxu0 0.0
  %v1827 = vand.u32 %v92, 4294901760
  %v1828 = vsub.f32 %v92, %v1827
  %v1829 = vand.u32 %v1828, 4294901760
  %1830 = vmatpush1.msra.mxu0 %v1829
  %1831 = vmatprep.subr.mxu0 0.0
  %v1832 = vand.u32 %v93, 4294901760
  %v1833 = vsub.f32 %v93, %v1832
  %v1834 = vand.u32 %v1833, 4294901760
  %1835 = vmatpush1.msra.mxu0 %v1834
  %1836 = vmatprep.subr.mxu0 0.0
  %v1837 = vand.u32 %v94, 4294901760
  %v1838 = vsub.f32 %v94, %v1837
  %v1839 = vand.u32 %v1838, 4294901760
  %1840 = vmatpush1.msra.mxu0 %v1839
  %1841 = vmatprep.subr.mxu0 0.0
  %v1842 = vand.u32 %v95, 4294901760
  %v1843 = vsub.f32 %v95, %v1842
  %v1844 = vand.u32 %v1843, 4294901760
  %1845 = vmatpush1.msra.mxu0 %v1844
  %1846 = vmatprep.subr.mxu0 0.0
  %v1847 = vand.u32 %v96, 4294901760
  %v1848 = vsub.f32 %v96, %v1847
  %v1849 = vand.u32 %v1848, 4294901760
  %1850 = vmatpush1.msra.mxu0 %v1849
  %1851 = vmatprep.subr.mxu0 0.0
  %v1852 = vand.u32 %v97, 4294901760
  %v1853 = vsub.f32 %v97, %v1852
  %v1854 = vand.u32 %v1853, 4294901760
  %1855 = vmatpush1.msra.mxu0 %v1854
  %v1856 = vand.u32 %v23, 4294901760
  %1857 = vmatprep.mubr.f32.mxu0 %v1856
  %v1858 = vand.u32 %v22, 4294901760
  %1859 = vmatmul.mubr.f32.gmra.mrb[0].mxu0 %v1858
  %v1860 = vpop.f32.mrb[0].mxu0
  %v1861 = vadd.f32 %v1682, %v1860
  %v1862 = vpop.f32.mrb[0].mxu0
  %v1863 = vand.u32 %v30, 4294901760
  %1864 = vmatprep.mubr.f32.mxu0 %v1863
  %v1865 = vand.u32 %v29, 4294901760
  %1866 = vmatmul.mubr.f32.gmra.mrb[0].mxu0 %v1865
  %v1867 = vpop.f32.mrb[0].mxu0
  %v1868 = vadd.f32 %v1693, %v1867
  %v1869 = vpop.f32.mrb[0].mxu0
  %1870 = vdwg.mxu0
  %1871 = vmatprep.subr.mxu0 0.0
  %v1872 = vand.u32 %v66, 4294901760
  %1873 = vmatpush1.msra.mxu0 %v1872
  %1874 = vmatprep.subr.mxu0 0.0
  %v1875 = vand.u32 %v67, 4294901760
  %1876 = vmatpush1.msra.mxu0 %v1875
  %1877 = vmatprep.subr.mxu0 0.0
  %v1878 = vand.u32 %v68, 4294901760
  %1879 = vmatpush1.msra.mxu0 %v1878
  %1880 = vmatprep.subr.mxu0 0.0
  %v1881 = vand.u32 %v69, 4294901760
  %1882 = vmatpush1.msra.mxu0 %v1881
  %1883 = vmatprep.subr.mxu0 0.0
  %v1884 = vand.u32 %v70, 4294901760
  %1885 = vmatpush1.msra.mxu0 %v1884
  %1886 = vmatprep.subr.mxu0 0.0
  %v1887 = vand.u32 %v71, 4294901760
  %1888 = vmatpush1.msra.mxu0 %v1887
  %1889 = vmatprep.subr.mxu0 0.0
  %v1890 = vand.u32 %v72, 4294901760
  %1891 = vmatpush1.msra.mxu0 %v1890
  %1892 = vmatprep.subr.mxu0 0.0
  %v1893 = vand.u32 %v73, 4294901760
  %1894 = vmatpush1.msra.mxu0 %v1893
  %1895 = vmatprep.subr.mxu0 0.0
  %v1896 = vand.u32 %v74, 4294901760
  %1897 = vmatpush1.msra.mxu0 %v1896
  %1898 = vmatprep.subr.mxu0 0.0
  %v1899 = vand.u32 %v75, 4294901760
  %1900 = vmatpush1.msra.mxu0 %v1899
  %1901 = vmatprep.subr.mxu0 0.0
  %v1902 = vand.u32 %v76, 4294901760
  %1903 = vmatpush1.msra.mxu0 %v1902
  %1904 = vmatprep.subr.mxu0 0.0
  %v1905 = vand.u32 %v77, 4294901760
  %1906 = vmatpush1.msra.mxu0 %v1905
  %1907 = vmatprep.subr.mxu0 0.0
  %v1908 = vand.u32 %v78, 4294901760
  %1909 = vmatpush1.msra.mxu0 %v1908
  %1910 = vmatprep.subr.mxu0 0.0
  %v1911 = vand.u32 %v79, 4294901760
  %1912 = vmatpush1.msra.mxu0 %v1911
  %1913 = vmatprep.subr.mxu0 0.0
  %v1914 = vand.u32 %v80, 4294901760
  %1915 = vmatpush1.msra.mxu0 %v1914
  %1916 = vmatprep.subr.mxu0 0.0
  %v1917 = vand.u32 %v81, 4294901760
  %1918 = vmatpush1.msra.mxu0 %v1917
  %1919 = vmatprep.subr.mxu0 0.0
  %v1920 = vand.u32 %v82, 4294901760
  %1921 = vmatpush1.msra.mxu0 %v1920
  %1922 = vmatprep.subr.mxu0 0.0
  %v1923 = vand.u32 %v83, 4294901760
  %1924 = vmatpush1.msra.mxu0 %v1923
  %1925 = vmatprep.subr.mxu0 0.0
  %v1926 = vand.u32 %v84, 4294901760
  %1927 = vmatpush1.msra.mxu0 %v1926
  %1928 = vmatprep.subr.mxu0 0.0
  %v1929 = vand.u32 %v85, 4294901760
  %1930 = vmatpush1.msra.mxu0 %v1929
  %1931 = vmatprep.subr.mxu0 0.0
  %v1932 = vand.u32 %v86, 4294901760
  %1933 = vmatpush1.msra.mxu0 %v1932
  %1934 = vmatprep.subr.mxu0 0.0
  %v1935 = vand.u32 %v87, 4294901760
  %1936 = vmatpush1.msra.mxu0 %v1935
  %1937 = vmatprep.subr.mxu0 0.0
  %v1938 = vand.u32 %v88, 4294901760
  %1939 = vmatpush1.msra.mxu0 %v1938
  %1940 = vmatprep.subr.mxu0 0.0
  %v1941 = vand.u32 %v89, 4294901760
  %1942 = vmatpush1.msra.mxu0 %v1941
  %1943 = vmatprep.subr.mxu0 0.0
  %v1944 = vand.u32 %v90, 4294901760
  %1945 = vmatpush1.msra.mxu0 %v1944
  %1946 = vmatprep.subr.mxu0 0.0
  %v1947 = vand.u32 %v91, 4294901760
  %1948 = vmatpush1.msra.mxu0 %v1947
  %1949 = vmatprep.subr.mxu0 0.0
  %v1950 = vand.u32 %v92, 4294901760
  %1951 = vmatpush1.msra.mxu0 %v1950
  %1952 = vmatprep.subr.mxu0 0.0
  %v1953 = vand.u32 %v93, 4294901760
  %1954 = vmatpush1.msra.mxu0 %v1953
  %1955 = vmatprep.subr.mxu0 0.0
  %v1956 = vand.u32 %v94, 4294901760
  %1957 = vmatpush1.msra.mxu0 %v1956
  %1958 = vmatprep.subr.mxu0 0.0
  %v1959 = vand.u32 %v95, 4294901760
  %1960 = vmatpush1.msra.mxu0 %v1959
  %1961 = vmatprep.subr.mxu0 0.0
  %v1962 = vand.u32 %v96, 4294901760
  %1963 = vmatpush1.msra.mxu0 %v1962
  %1964 = vmatprep.subr.mxu0 0.0
  %v1965 = vand.u32 %v97, 4294901760
  %1966 = vmatpush1.msra.mxu0 %v1965
  %v1967 = vand.u32 %v23, 4294901760
  %1968 = vmatprep.mubr.f32.mxu0 %v1967
  %v1969 = vand.u32 %v22, 4294901760
  %1970 = vmatmul.mubr.f32.gmra.mrb[0].mxu0 %v1969
  %v1971 = vpop.f32.mrb[0].mxu0
  %v1972 = vadd.f32 %v1861, %v1971
  %v1973 = vpop.f32.mrb[0].mxu0
  %v1974 = vand.u32 %v30, 4294901760
  %1975 = vmatprep.mubr.f32.mxu0 %v1974
  %v1976 = vand.u32 %v29, 4294901760
  %1977 = vmatmul.mubr.f32.gmra.mrb[0].mxu0 %v1976
  %v1978 = vpop.f32.mrb[0].mxu0
  %v1979 = vadd.f32 %v1868, %v1978
  %v1980 = vpop.f32.mrb[0].mxu0
  %1981 = vdwg.mxu0
  %1982 = vmatprep.subr.mxu0 0.0
  %v1983 = vand.u32 %v98, 4294901760
  %1984 = vmatpush1.msra.mxu0 %v1983
  %1985 = vmatprep.subr.mxu0 0.0
  %v1986 = vand.u32 %v99, 4294901760
  %1987 = vmatpush1.msra.mxu0 %v1986
  %1988 = vmatprep.subr.mxu0 0.0
  %v1989 = vand.u32 %v100, 4294901760
  %1990 = vmatpush1.msra.mxu0 %v1989
  %1991 = vmatprep.subr.mxu0 0.0
  %v1992 = vand.u32 %v101, 4294901760
  %1993 = vmatpush1.msra.mxu0 %v1992
  %1994 = vmatprep.subr.mxu0 0.0
  %v1995 = vand.u32 %v102, 4294901760
  %1996 = vmatpush1.msra.mxu0 %v1995
  %1997 = vmatprep.subr.mxu0 0.0
  %v1998 = vand.u32 %v103, 4294901760
  %1999 = vmatpush1.msra.mxu0 %v1998
  %2000 = vmatprep.subr.mxu0 0.0
  %v2001 = vand.u32 %v104, 4294901760
  %2002 = vmatpush1.msra.mxu0 %v2001
  %2003 = vmatprep.subr.mxu0 0.0
  %v2004 = vand.u32 %v105, 4294901760
  %2005 = vmatpush1.msra.mxu0 %v2004
  %2006 = vmatprep.subr.mxu0 0.0
  %v2007 = vand.u32 %v106, 4294901760
  %2008 = vmatpush1.msra.mxu0 %v2007
  %2009 = vmatprep.subr.mxu0 0.0
  %v2010 = vand.u32 %v107, 4294901760
  %2011 = vmatpush1.msra.mxu0 %v2010
  %2012 = vmatprep.subr.mxu0 0.0
  %v2013 = vand.u32 %v108, 4294901760
  %2014 = vmatpush1.msra.mxu0 %v2013
  %2015 = vmatprep.subr.mxu0 0.0
  %v2016 = vand.u32 %v109, 4294901760
  %2017 = vmatpush1.msra.mxu0 %v2016
  %2018 = vmatprep.subr.mxu0 0.0
  %v2019 = vand.u32 %v110, 4294901760
  %2020 = vmatpush1.msra.mxu0 %v2019
  %2021 = vmatprep.subr.mxu0 0.0
  %v2022 = vand.u32 %v111, 4294901760
  %2023 = vmatpush1.msra.mxu0 %v2022
  %2024 = vmatprep.subr.mxu0 0.0
  %v2025 = vand.u32 %v112, 4294901760
  %2026 = vmatpush1.msra.mxu0 %v2025
  %2027 = vmatprep.subr.mxu0 0.0
  %v2028 = vand.u32 %v113, 4294901760
  %2029 = vmatpush1.msra.mxu0 %v2028
  %2030 = vmatprep.subr.mxu0 0.0
  %v2031 = vand.u32 %v114, 4294901760
  %2032 = vmatpush1.msra.mxu0 %v2031
  %2033 = vmatprep.subr.mxu0 0.0
  %v2034 = vand.u32 %v115, 4294901760
  %2035 = vmatpush1.msra.mxu0 %v2034
  %2036 = vmatprep.subr.mxu0 0.0
  %v2037 = vand.u32 %v116, 4294901760
  %2038 = vmatpush1.msra.mxu0 %v2037
  %2039 = vmatprep.subr.mxu0 0.0
  %v2040 = vand.u32 %v117, 4294901760
  %2041 = vmatpush1.msra.mxu0 %v2040
  %2042 = vmatprep.subr.mxu0 0.0
  %v2043 = vand.u32 %v118, 4294901760
  %2044 = vmatpush1.msra.mxu0 %v2043
  %2045 = vmatprep.subr.mxu0 0.0
  %v2046 = vand.u32 %v119, 4294901760
  %2047 = vmatpush1.msra.mxu0 %v2046
  %2048 = vmatprep.subr.mxu0 0.0
  %v2049 = vand.u32 %v120, 4294901760
  %2050 = vmatpush1.msra.mxu0 %v2049
  %2051 = vmatprep.subr.mxu0 0.0
  %v2052 = vand.u32 %v121, 4294901760
  %2053 = vmatpush1.msra.mxu0 %v2052
  %2054 = vmatprep.subr.mxu0 0.0
  %v2055 = vand.u32 %v122, 4294901760
  %2056 = vmatpush1.msra.mxu0 %v2055
  %2057 = vmatprep.subr.mxu0 0.0
  %v2058 = vand.u32 %v123, 4294901760
  %2059 = vmatpush1.msra.mxu0 %v2058
  %2060 = vmatprep.subr.mxu0 0.0
  %v2061 = vand.u32 %v124, 4294901760
  %2062 = vmatpush1.msra.mxu0 %v2061
  %2063 = vmatprep.subr.mxu0 0.0
  %v2064 = vand.u32 %v125, 4294901760
  %2065 = vmatpush1.msra.mxu0 %v2064
  %2066 = vmatprep.subr.mxu0 0.0
  %v2067 = vand.u32 %v126, 4294901760
  %2068 = vmatpush1.msra.mxu0 %v2067
  %2069 = vmatprep.subr.mxu0 0.0
  %v2070 = vand.u32 %v127, 4294901760
  %2071 = vmatpush1.msra.mxu0 %v2070
  %2072 = vmatprep.subr.mxu0 0.0
  %v2073 = vand.u32 %v128, 4294901760
  %2074 = vmatpush1.msra.mxu0 %v2073
  %2075 = vmatprep.subr.mxu0 0.0
  %v2076 = vand.u32 %v129, 4294901760
  %2077 = vmatpush1.msra.mxu0 %v2076
  %v2078 = vand.u32 %v25, 4294901760
  %v2079 = vsub.f32 %v25, %v2078
  %v2080 = vand.u32 %v2079, 4294901760
  %v2081 = vsub.f32 %v2079, %v2080
  %v2082 = vand.u32 %v2081, 4294901760
  %2083 = vmatprep.mubr.f32.mxu0 %v2082
  %v2084 = vand.u32 %v24, 4294901760
  %v2085 = vsub.f32 %v24, %v2084
  %v2086 = vand.u32 %v2085, 4294901760
  %v2087 = vsub.f32 %v2085, %v2086
  %v2088 = vand.u32 %v2087, 4294901760
  %2089 = vmatmul.mubr.f32.gmra.mrb[0].mxu0 %v2088
  %v2090 = vpop.f32.mrb[0].mxu0
  %v2091 = vadd.f32 %v1972, %v2090
  %v2092 = vpop.f32.mrb[0].mxu0
  %v2093 = vand.u32 %v32, 4294901760
  %v2094 = vsub.f32 %v32, %v2093
  %v2095 = vand.u32 %v2094, 4294901760
  %v2096 = vsub.f32 %v2094, %v2095
  %v2097 = vand.u32 %v2096, 4294901760
  %2098 = vmatprep.mubr.f32.mxu0 %v2097
  %v2099 = vand.u32 %v31, 4294901760
  %v2100 = vsub.f32 %v31, %v2099
  %v2101 = vand.u32 %v2100, 4294901760
  %v2102 = vsub.f32 %v2100, %v2101
  %v2103 = vand.u32 %v2102, 4294901760
  %2104 = vmatmul.mubr.f32.gmra.mrb[0].mxu0 %v2103
  %v2105 = vpop.f32.mrb[0].mxu0
  %v2106 = vadd.f32 %v1979, %v2105
  %v2107 = vpop.f32.mrb[0].mxu0
  %2108 = vdwg.mxu0
  %2109 = vmatprep.subr.mxu0 0.0
  %v2110 = vand.u32 %v98, 4294901760
  %v2111 = vsub.f32 %v98, %v2110
  %v2112 = vand.u32 %v2111, 4294901760
  %v2113 = vsub.f32 %v2111, %v2112
  %v2114 = vand.u32 %v2113, 4294901760
  %2115 = vmatpush1.msra.mxu0 %v2114
  %2116 = vmatprep.subr.mxu0 0.0
  %v2117 = vand.u32 %v99, 4294901760
  %v2118 = vsub.f32 %v99, %v2117
  %v2119 = vand.u32 %v2118, 4294901760
  %v2120 = vsub.f32 %v2118, %v2119
  %v2121 = vand.u32 %v2120, 4294901760
  %2122 = vmatpush1.msra.mxu0 %v2121
  %2123 = vmatprep.subr.mxu0 0.0
  %v2124 = vand.u32 %v100, 4294901760
  %v2125 = vsub.f32 %v100, %v2124
  %v2126 = vand.u32 %v2125, 4294901760
  %v2127 = vsub.f32 %v2125, %v2126
  %v2128 = vand.u32 %v2127, 4294901760
  %2129 = vmatpush1.msra.mxu0 %v2128
  %2130 = vmatprep.subr.mxu0 0.0
  %v2131 = vand.u32 %v101, 4294901760
  %v2132 = vsub.f32 %v101, %v2131
  %v2133 = vand.u32 %v2132, 4294901760
  %v2134 = vsub.f32 %v2132, %v2133
  %v2135 = vand.u32 %v2134, 4294901760
  %2136 = vmatpush1.msra.mxu0 %v2135
  %2137 = vmatprep.subr.mxu0 0.0
  %v2138 = vand.u32 %v102, 4294901760
  %v2139 = vsub.f32 %v102, %v2138
  %v2140 = vand.u32 %v2139, 4294901760
  %v2141 = vsub.f32 %v2139, %v2140
  %v2142 = vand.u32 %v2141, 4294901760
  %2143 = vmatpush1.msra.mxu0 %v2142
  %2144 = vmatprep.subr.mxu0 0.0
  %v2145 = vand.u32 %v103, 4294901760
  %v2146 = vsub.f32 %v103, %v2145
  %v2147 = vand.u32 %v2146, 4294901760
  %v2148 = vsub.f32 %v2146, %v2147
  %v2149 = vand.u32 %v2148, 4294901760
  %2150 = vmatpush1.msra.mxu0 %v2149
  %2151 = vmatprep.subr.mxu0 0.0
  %v2152 = vand.u32 %v104, 4294901760
  %v2153 = vsub.f32 %v104, %v2152
  %v2154 = vand.u32 %v2153, 4294901760
  %v2155 = vsub.f32 %v2153, %v2154
  %v2156 = vand.u32 %v2155, 4294901760
  %2157 = vmatpush1.msra.mxu0 %v2156
  %2158 = vmatprep.subr.mxu0 0.0
  %v2159 = vand.u32 %v105, 4294901760
  %v2160 = vsub.f32 %v105, %v2159
  %v2161 = vand.u32 %v2160, 4294901760
  %v2162 = vsub.f32 %v2160, %v2161
  %v2163 = vand.u32 %v2162, 4294901760
  %2164 = vmatpush1.msra.mxu0 %v2163
  %2165 = vmatprep.subr.mxu0 0.0
  %v2166 = vand.u32 %v106, 4294901760
  %v2167 = vsub.f32 %v106, %v2166
  %v2168 = vand.u32 %v2167, 4294901760
  %v2169 = vsub.f32 %v2167, %v2168
  %v2170 = vand.u32 %v2169, 4294901760
  %2171 = vmatpush1.msra.mxu0 %v2170
  %2172 = vmatprep.subr.mxu0 0.0
  %v2173 = vand.u32 %v107, 4294901760
  %v2174 = vsub.f32 %v107, %v2173
  %v2175 = vand.u32 %v2174, 4294901760
  %v2176 = vsub.f32 %v2174, %v2175
  %v2177 = vand.u32 %v2176, 4294901760
  %2178 = vmatpush1.msra.mxu0 %v2177
  %2179 = vmatprep.subr.mxu0 0.0
  %v2180 = vand.u32 %v108, 4294901760
  %v2181 = vsub.f32 %v108, %v2180
  %v2182 = vand.u32 %v2181, 4294901760
  %v2183 = vsub.f32 %v2181, %v2182
  %v2184 = vand.u32 %v2183, 4294901760
  %2185 = vmatpush1.msra.mxu0 %v2184
  %2186 = vmatprep.subr.mxu0 0.0
  %v2187 = vand.u32 %v109, 4294901760
  %v2188 = vsub.f32 %v109, %v2187
  %v2189 = vand.u32 %v2188, 4294901760
  %v2190 = vsub.f32 %v2188, %v2189
  %v2191 = vand.u32 %v2190, 4294901760
  %2192 = vmatpush1.msra.mxu0 %v2191
  %2193 = vmatprep.subr.mxu0 0.0
  %v2194 = vand.u32 %v110, 4294901760
  %v2195 = vsub.f32 %v110, %v2194
  %v2196 = vand.u32 %v2195, 4294901760
  %v2197 = vsub.f32 %v2195, %v2196
  %v2198 = vand.u32 %v2197, 4294901760
  %2199 = vmatpush1.msra.mxu0 %v2198
  %2200 = vmatprep.subr.mxu0 0.0
  %v2201 = vand.u32 %v111, 4294901760
  %v2202 = vsub.f32 %v111, %v2201
  %v2203 = vand.u32 %v2202, 4294901760
  %v2204 = vsub.f32 %v2202, %v2203
  %v2205 = vand.u32 %v2204, 4294901760
  %2206 = vmatpush1.msra.mxu0 %v2205
  %2207 = vmatprep.subr.mxu0 0.0
  %v2208 = vand.u32 %v112, 4294901760
  %v2209 = vsub.f32 %v112, %v2208
  %v2210 = vand.u32 %v2209, 4294901760
  %v2211 = vsub.f32 %v2209, %v2210
  %v2212 = vand.u32 %v2211, 4294901760
  %2213 = vmatpush1.msra.mxu0 %v2212
  %2214 = vmatprep.subr.mxu0 0.0
  %v2215 = vand.u32 %v113, 4294901760
  %v2216 = vsub.f32 %v113, %v2215
  %v2217 = vand.u32 %v2216, 4294901760
  %v2218 = vsub.f32 %v2216, %v2217
  %v2219 = vand.u32 %v2218, 4294901760
  %2220 = vmatpush1.msra.mxu0 %v2219
  %2221 = vmatprep.subr.mxu0 0.0
  %v2222 = vand.u32 %v114, 4294901760
  %v2223 = vsub.f32 %v114, %v2222
  %v2224 = vand.u32 %v2223, 4294901760
  %v2225 = vsub.f32 %v2223, %v2224
  %v2226 = vand.u32 %v2225, 4294901760
  %2227 = vmatpush1.msra.mxu0 %v2226
  %2228 = vmatprep.subr.mxu0 0.0
  %v2229 = vand.u32 %v115, 4294901760
  %v2230 = vsub.f32 %v115, %v2229
  %v2231 = vand.u32 %v2230, 4294901760
  %v2232 = vsub.f32 %v2230, %v2231
  %v2233 = vand.u32 %v2232, 4294901760
  %2234 = vmatpush1.msra.mxu0 %v2233
  %2235 = vmatprep.subr.mxu0 0.0
  %v2236 = vand.u32 %v116, 4294901760
  %v2237 = vsub.f32 %v116, %v2236
  %v2238 = vand.u32 %v2237, 4294901760
  %v2239 = vsub.f32 %v2237, %v2238
  %v2240 = vand.u32 %v2239, 4294901760
  %2241 = vmatpush1.msra.mxu0 %v2240
  %2242 = vmatprep.subr.mxu0 0.0
  %v2243 = vand.u32 %v117, 4294901760
  %v2244 = vsub.f32 %v117, %v2243
  %v2245 = vand.u32 %v2244, 4294901760
  %v2246 = vsub.f32 %v2244, %v2245
  %v2247 = vand.u32 %v2246, 4294901760
  %2248 = vmatpush1.msra.mxu0 %v2247
  %2249 = vmatprep.subr.mxu0 0.0
  %v2250 = vand.u32 %v118, 4294901760
  %v2251 = vsub.f32 %v118, %v2250
  %v2252 = vand.u32 %v2251, 4294901760
  %v2253 = vsub.f32 %v2251, %v2252
  %v2254 = vand.u32 %v2253, 4294901760
  %2255 = vmatpush1.msra.mxu0 %v2254
  %2256 = vmatprep.subr.mxu0 0.0
  %v2257 = vand.u32 %v119, 4294901760
  %v2258 = vsub.f32 %v119, %v2257
  %v2259 = vand.u32 %v2258, 4294901760
  %v2260 = vsub.f32 %v2258, %v2259
  %v2261 = vand.u32 %v2260, 4294901760
  %2262 = vmatpush1.msra.mxu0 %v2261
  %2263 = vmatprep.subr.mxu0 0.0
  %v2264 = vand.u32 %v120, 4294901760
  %v2265 = vsub.f32 %v120, %v2264
  %v2266 = vand.u32 %v2265, 4294901760
  %v2267 = vsub.f32 %v2265, %v2266
  %v2268 = vand.u32 %v2267, 4294901760
  %2269 = vmatpush1.msra.mxu0 %v2268
  %2270 = vmatprep.subr.mxu0 0.0
  %v2271 = vand.u32 %v121, 4294901760
  %v2272 = vsub.f32 %v121, %v2271
  %v2273 = vand.u32 %v2272, 4294901760
  %v2274 = vsub.f32 %v2272, %v2273
  %v2275 = vand.u32 %v2274, 4294901760
  %2276 = vmatpush1.msra.mxu0 %v2275
  %2277 = vmatprep.subr.mxu0 0.0
  %v2278 = vand.u32 %v122, 4294901760
  %v2279 = vsub.f32 %v122, %v2278
  %v2280 = vand.u32 %v2279, 4294901760
  %v2281 = vsub.f32 %v2279, %v2280
  %v2282 = vand.u32 %v2281, 4294901760
  %2283 = vmatpush1.msra.mxu0 %v2282
  %2284 = vmatprep.subr.mxu0 0.0
  %v2285 = vand.u32 %v123, 4294901760
  %v2286 = vsub.f32 %v123, %v2285
  %v2287 = vand.u32 %v2286, 4294901760
  %v2288 = vsub.f32 %v2286, %v2287
  %v2289 = vand.u32 %v2288, 4294901760
  %2290 = vmatpush1.msra.mxu0 %v2289
  %2291 = vmatprep.subr.mxu0 0.0
  %v2292 = vand.u32 %v124, 4294901760
  %v2293 = vsub.f32 %v124, %v2292
  %v2294 = vand.u32 %v2293, 4294901760
  %v2295 = vsub.f32 %v2293, %v2294
  %v2296 = vand.u32 %v2295, 4294901760
  %2297 = vmatpush1.msra.mxu0 %v2296
  %2298 = vmatprep.subr.mxu0 0.0
  %v2299 = vand.u32 %v125, 4294901760
  %v2300 = vsub.f32 %v125, %v2299
  %v2301 = vand.u32 %v2300, 4294901760
  %v2302 = vsub.f32 %v2300, %v2301
  %v2303 = vand.u32 %v2302, 4294901760
  %2304 = vmatpush1.msra.mxu0 %v2303
  %2305 = vmatprep.subr.mxu0 0.0
  %v2306 = vand.u32 %v126, 4294901760
  %v2307 = vsub.f32 %v126, %v2306
  %v2308 = vand.u32 %v2307, 4294901760
  %v2309 = vsub.f32 %v2307, %v2308
  %v2310 = vand.u32 %v2309, 4294901760
  %2311 = vmatpush1.msra.mxu0 %v2310
  %2312 = vmatprep.subr.mxu0 0.0
  %v2313 = vand.u32 %v127, 4294901760
  %v2314 = vsub.f32 %v127, %v2313
  %v2315 = vand.u32 %v2314, 4294901760
  %v2316 = vsub.f32 %v2314, %v2315
  %v2317 = vand.u32 %v2316, 4294901760
  %2318 = vmatpush1.msra.mxu0 %v2317
  %2319 = vmatprep.subr.mxu0 0.0
  %v2320 = vand.u32 %v128, 4294901760
  %v2321 = vsub.f32 %v128, %v2320
  %v2322 = vand.u32 %v2321, 4294901760
  %v2323 = vsub.f32 %v2321, %v2322
  %v2324 = vand.u32 %v2323, 4294901760
  %2325 = vmatpush1.msra.mxu0 %v2324
  %2326 = vmatprep.subr.mxu0 0.0
  %v2327 = vand.u32 %v129, 4294901760
  %v2328 = vsub.f32 %v129, %v2327
  %v2329 = vand.u32 %v2328, 4294901760
  %v2330 = vsub.f32 %v2328, %v2329
  %v2331 = vand.u32 %v2330, 4294901760
  %2332 = vmatpush1.msra.mxu0 %v2331
  %v2333 = vand.u32 %v25, 4294901760
  %2334 = vmatprep.mubr.f32.mxu0 %v2333
  %v2335 = vand.u32 %v24, 4294901760
  %2336 = vmatmul.mubr.f32.gmra.mrb[0].mxu0 %v2335
  %v2337 = vpop.f32.mrb[0].mxu0
  %v2338 = vadd.f32 %v2091, %v2337
  %v2339 = vpop.f32.mrb[0].mxu0
  %v2340 = vand.u32 %v32, 4294901760
  %2341 = vmatprep.mubr.f32.mxu0 %v2340
  %v2342 = vand.u32 %v31, 4294901760
  %2343 = vmatmul.mubr.f32.gmra.mrb[0].mxu0 %v2342
  %v2344 = vpop.f32.mrb[0].mxu0
  %v2345 = vadd.f32 %v2106, %v2344
  %v2346 = vpop.f32.mrb[0].mxu0
  %2347 = vdwg.mxu0
  %2348 = vmatprep.subr.mxu0 0.0
  %v2349 = vand.u32 %v98, 4294901760
  %v2350 = vsub.f32 %v98, %v2349
  %2351 = vmatpush1.msra.mxu0 %v2350
  %2352 = vmatprep.subr.mxu0 0.0
  %v2353 = vand.u32 %v99, 4294901760
  %v2354 = vsub.f32 %v99, %v2353
  %2355 = vmatpush1.msra.mxu0 %v2354
  %2356 = vmatprep.subr.mxu0 0.0
  %v2357 = vand.u32 %v100, 4294901760
  %v2358 = vsub.f32 %v100, %v2357
  %2359 = vmatpush1.msra.mxu0 %v2358
  %2360 = vmatprep.subr.mxu0 0.0
  %v2361 = vand.u32 %v101, 4294901760
  %v2362 = vsub.f32 %v101, %v2361
  %2363 = vmatpush1.msra.mxu0 %v2362
  %2364 = vmatprep.subr.mxu0 0.0
  %v2365 = vand.u32 %v102, 4294901760
  %v2366 = vsub.f32 %v102, %v2365
  %2367 = vmatpush1.msra.mxu0 %v2366
  %2368 = vmatprep.subr.mxu0 0.0
  %v2369 = vand.u32 %v103, 4294901760
  %v2370 = vsub.f32 %v103, %v2369
  %2371 = vmatpush1.msra.mxu0 %v2370
  %2372 = vmatprep.subr.mxu0 0.0
  %v2373 = vand.u32 %v104, 4294901760
  %v2374 = vsub.f32 %v104, %v2373
  %2375 = vmatpush1.msra.mxu0 %v2374
  %2376 = vmatprep.subr.mxu0 0.0
  %v2377 = vand.u32 %v105, 4294901760
  %v2378 = vsub.f32 %v105, %v2377
  %2379 = vmatpush1.msra.mxu0 %v2378
  %2380 = vmatprep.subr.mxu0 0.0
  %v2381 = vand.u32 %v106, 4294901760
  %v2382 = vsub.f32 %v106, %v2381
  %2383 = vmatpush1.msra.mxu0 %v2382
  %2384 = vmatprep.subr.mxu0 0.0
  %v2385 = vand.u32 %v107, 4294901760
  %v2386 = vsub.f32 %v107, %v2385
  %2387 = vmatpush1.msra.mxu0 %v2386
  %2388 = vmatprep.subr.mxu0 0.0
  %v2389 = vand.u32 %v108, 4294901760
  %v2390 = vsub.f32 %v108, %v2389
  %2391 = vmatpush1.msra.mxu0 %v2390
  %2392 = vmatprep.subr.mxu0 0.0
  %v2393 = vand.u32 %v109, 4294901760
  %v2394 = vsub.f32 %v109, %v2393
  %2395 = vmatpush1.msra.mxu0 %v2394
  %2396 = vmatprep.subr.mxu0 0.0
  %v2397 = vand.u32 %v110, 4294901760
  %v2398 = vsub.f32 %v110, %v2397
  %2399 = vmatpush1.msra.mxu0 %v2398
  %2400 = vmatprep.subr.mxu0 0.0
  %v2401 = vand.u32 %v111, 4294901760
  %v2402 = vsub.f32 %v111, %v2401
  %2403 = vmatpush1.msra.mxu0 %v2402
  %2404 = vmatprep.subr.mxu0 0.0
  %v2405 = vand.u32 %v112, 4294901760
  %v2406 = vsub.f32 %v112, %v2405
  %2407 = vmatpush1.msra.mxu0 %v2406
  %2408 = vmatprep.subr.mxu0 0.0
  %v2409 = vand.u32 %v113, 4294901760
  %v2410 = vsub.f32 %v113, %v2409
  %2411 = vmatpush1.msra.mxu0 %v2410
  %2412 = vmatprep.subr.mxu0 0.0
  %v2413 = vand.u32 %v114, 4294901760
  %v2414 = vsub.f32 %v114, %v2413
  %2415 = vmatpush1.msra.mxu0 %v2414
  %2416 = vmatprep.subr.mxu0 0.0
  %v2417 = vand.u32 %v115, 4294901760
  %v2418 = vsub.f32 %v115, %v2417
  %2419 = vmatpush1.msra.mxu0 %v2418
  %2420 = vmatprep.subr.mxu0 0.0
  %v2421 = vand.u32 %v116, 4294901760
  %v2422 = vsub.f32 %v116, %v2421
  %2423 = vmatpush1.msra.mxu0 %v2422
  %2424 = vmatprep.subr.mxu0 0.0
  %v2425 = vand.u32 %v117, 4294901760
  %v2426 = vsub.f32 %v117, %v2425
  %2427 = vmatpush1.msra.mxu0 %v2426
  %2428 = vmatprep.subr.mxu0 0.0
  %v2429 = vand.u32 %v118, 4294901760
  %v2430 = vsub.f32 %v118, %v2429
  %2431 = vmatpush1.msra.mxu0 %v2430
  %2432 = vmatprep.subr.mxu0 0.0
  %v2433 = vand.u32 %v119, 4294901760
  %v2434 = vsub.f32 %v119, %v2433
  %2435 = vmatpush1.msra.mxu0 %v2434
  %2436 = vmatprep.subr.mxu0 0.0
  %v2437 = vand.u32 %v120, 4294901760
  %v2438 = vsub.f32 %v120, %v2437
  %2439 = vmatpush1.msra.mxu0 %v2438
  %2440 = vmatprep.subr.mxu0 0.0
  %v2441 = vand.u32 %v121, 4294901760
  %v2442 = vsub.f32 %v121, %v2441
  %2443 = vmatpush1.msra.mxu0 %v2442
  %2444 = vmatprep.subr.mxu0 0.0
  %v2445 = vand.u32 %v122, 4294901760
  %v2446 = vsub.f32 %v122, %v2445
  %2447 = vmatpush1.msra.mxu0 %v2446
  %2448 = vmatprep.subr.mxu0 0.0
  %v2449 = vand.u32 %v123, 4294901760
  %v2450 = vsub.f32 %v123, %v2449
  %2451 = vmatpush1.msra.mxu0 %v2450
  %2452 = vmatprep.subr.mxu0 0.0
  %v2453 = vand.u32 %v124, 4294901760
  %v2454 = vsub.f32 %v124, %v2453
  %2455 = vmatpush1.msra.mxu0 %v2454
  %2456 = vmatprep.subr.mxu0 0.0
  %v2457 = vand.u32 %v125, 4294901760
  %v2458 = vsub.f32 %v125, %v2457
  %2459 = vmatpush1.msra.mxu0 %v2458
  %2460 = vmatprep.subr.mxu0 0.0
  %v2461 = vand.u32 %v126, 4294901760
  %v2462 = vsub.f32 %v126, %v2461
  %2463 = vmatpush1.msra.mxu0 %v2462
  %2464 = vmatprep.subr.mxu0 0.0
  %v2465 = vand.u32 %v127, 4294901760
  %v2466 = vsub.f32 %v127, %v2465
  %2467 = vmatpush1.msra.mxu0 %v2466
  %2468 = vmatprep.subr.mxu0 0.0
  %v2469 = vand.u32 %v128, 4294901760
  %v2470 = vsub.f32 %v128, %v2469
  %2471 = vmatpush1.msra.mxu0 %v2470
  %2472 = vmatprep.subr.mxu0 0.0
  %v2473 = vand.u32 %v129, 4294901760
  %v2474 = vsub.f32 %v129, %v2473
  %2475 = vmatpush1.msra.mxu0 %v2474
  %v2476 = vand.u32 %v25, 4294901760
  %v2477 = vsub.f32 %v25, %v2476
  %2478 = vmatprep.mubr.f32.mxu0 %v2477
  %v2479 = vand.u32 %v24, 4294901760
  %v2480 = vsub.f32 %v24, %v2479
  %2481 = vmatmul.mubr.f32.gmra.mrb[0].mxu0 %v2480
  %v2482 = vpop.f32.mrb[0].mxu0
  %v2483 = vadd.f32 %v2338, %v2482
  %v2484 = vpop.f32.mrb[0].mxu0
  %v2485 = vand.u32 %v32, 4294901760
  %v2486 = vsub.f32 %v32, %v2485
  %2487 = vmatprep.mubr.f32.mxu0 %v2486
  %v2488 = vand.u32 %v31, 4294901760
  %v2489 = vsub.f32 %v31, %v2488
  %2490 = vmatmul.mubr.f32.gmra.mrb[0].mxu0 %v2489
  %v2491 = vpop.f32.mrb[0].mxu0
  %v2492 = vadd.f32 %v2345, %v2491
  %v2493 = vpop.f32.mrb[0].mxu0
  %2494 = vdwg.mxu0
  %2495 = vmatprep.subr.mxu0 0.0
  %v2496 = vand.u32 %v98, 4294901760
  %2497 = vmatpush1.msra.mxu0 %v2496
  %2498 = vmatprep.subr.mxu0 0.0
  %v2499 = vand.u32 %v99, 4294901760
  %2500 = vmatpush1.msra.mxu0 %v2499
  %2501 = vmatprep.subr.mxu0 0.0
  %v2502 = vand.u32 %v100, 4294901760
  %2503 = vmatpush1.msra.mxu0 %v2502
  %2504 = vmatprep.subr.mxu0 0.0
  %v2505 = vand.u32 %v101, 4294901760
  %2506 = vmatpush1.msra.mxu0 %v2505
  %2507 = vmatprep.subr.mxu0 0.0
  %v2508 = vand.u32 %v102, 4294901760
  %2509 = vmatpush1.msra.mxu0 %v2508
  %2510 = vmatprep.subr.mxu0 0.0
  %v2511 = vand.u32 %v103, 4294901760
  %2512 = vmatpush1.msra.mxu0 %v2511
  %2513 = vmatprep.subr.mxu0 0.0
  %v2514 = vand.u32 %v104, 4294901760
  %2515 = vmatpush1.msra.mxu0 %v2514
  %2516 = vmatprep.subr.mxu0 0.0
  %v2517 = vand.u32 %v105, 4294901760
  %2518 = vmatpush1.msra.mxu0 %v2517
  %2519 = vmatprep.subr.mxu0 0.0
  %v2520 = vand.u32 %v106, 4294901760
  %2521 = vmatpush1.msra.mxu0 %v2520
  %2522 = vmatprep.subr.mxu0 0.0
  %v2523 = vand.u32 %v107, 4294901760
  %2524 = vmatpush1.msra.mxu0 %v2523
  %2525 = vmatprep.subr.mxu0 0.0
  %v2526 = vand.u32 %v108, 4294901760
  %2527 = vmatpush1.msra.mxu0 %v2526
  %2528 = vmatprep.subr.mxu0 0.0
  %v2529 = vand.u32 %v109, 4294901760
  %2530 = vmatpush1.msra.mxu0 %v2529
  %2531 = vmatprep.subr.mxu0 0.0
  %v2532 = vand.u32 %v110, 4294901760
  %2533 = vmatpush1.msra.mxu0 %v2532
  %2534 = vmatprep.subr.mxu0 0.0
  %v2535 = vand.u32 %v111, 4294901760
  %2536 = vmatpush1.msra.mxu0 %v2535
  %2537 = vmatprep.subr.mxu0 0.0
  %v2538 = vand.u32 %v112, 4294901760
  %2539 = vmatpush1.msra.mxu0 %v2538
  %2540 = vmatprep.subr.mxu0 0.0
  %v2541 = vand.u32 %v113, 4294901760
  %2542 = vmatpush1.msra.mxu0 %v2541
  %2543 = vmatprep.subr.mxu0 0.0
  %v2544 = vand.u32 %v114, 4294901760
  %2545 = vmatpush1.msra.mxu0 %v2544
  %2546 = vmatprep.subr.mxu0 0.0
  %v2547 = vand.u32 %v115, 4294901760
  %2548 = vmatpush1.msra.mxu0 %v2547
  %2549 = vmatprep.subr.mxu0 0.0
  %v2550 = vand.u32 %v116, 4294901760
  %2551 = vmatpush1.msra.mxu0 %v2550
  %2552 = vmatprep.subr.mxu0 0.0
  %v2553 = vand.u32 %v117, 4294901760
  %2554 = vmatpush1.msra.mxu0 %v2553
  %2555 = vmatprep.subr.mxu0 0.0
  %v2556 = vand.u32 %v118, 4294901760
  %2557 = vmatpush1.msra.mxu0 %v2556
  %2558 = vmatprep.subr.mxu0 0.0
  %v2559 = vand.u32 %v119, 4294901760
  %2560 = vmatpush1.msra.mxu0 %v2559
  %2561 = vmatprep.subr.mxu0 0.0
  %v2562 = vand.u32 %v120, 4294901760
  %2563 = vmatpush1.msra.mxu0 %v2562
  %2564 = vmatprep.subr.mxu0 0.0
  %v2565 = vand.u32 %v121, 4294901760
  %2566 = vmatpush1.msra.mxu0 %v2565
  %2567 = vmatprep.subr.mxu0 0.0
  %v2568 = vand.u32 %v122, 4294901760
  %2569 = vmatpush1.msra.mxu0 %v2568
  %2570 = vmatprep.subr.mxu0 0.0
  %v2571 = vand.u32 %v123, 4294901760
  %2572 = vmatpush1.msra.mxu0 %v2571
  %2573 = vmatprep.subr.mxu0 0.0
  %v2574 = vand.u32 %v124, 4294901760
  %2575 = vmatpush1.msra.mxu0 %v2574
  %2576 = vmatprep.subr.mxu0 0.0
  %v2577 = vand.u32 %v125, 4294901760
  %2578 = vmatpush1.msra.mxu0 %v2577
  %2579 = vmatprep.subr.mxu0 0.0
  %v2580 = vand.u32 %v126, 4294901760
  %2581 = vmatpush1.msra.mxu0 %v2580
  %2582 = vmatprep.subr.mxu0 0.0
  %v2583 = vand.u32 %v127, 4294901760
  %2584 = vmatpush1.msra.mxu0 %v2583
  %2585 = vmatprep.subr.mxu0 0.0
  %v2586 = vand.u32 %v128, 4294901760
  %2587 = vmatpush1.msra.mxu0 %v2586
  %2588 = vmatprep.subr.mxu0 0.0
  %v2589 = vand.u32 %v129, 4294901760
  %2590 = vmatpush1.msra.mxu0 %v2589
  %v2591 = vand.u32 %v25, 4294901760
  %v2592 = vsub.f32 %v25, %v2591
  %v2593 = vand.u32 %v2592, 4294901760
  %2594 = vmatprep.mubr.f32.mxu0 %v2593
  %v2595 = vand.u32 %v24, 4294901760
  %v2596 = vsub.f32 %v24, %v2595
  %v2597 = vand.u32 %v2596, 4294901760
  %2598 = vmatmul.mubr.f32.gmra.mrb[0].mxu0 %v2597
  %v2599 = vpop.f32.mrb[0].mxu0
  %v2600 = vadd.f32 %v2483, %v2599
  %v2601 = vpop.f32.mrb[0].mxu0
  %v2602 = vand.u32 %v32, 4294901760
  %v2603 = vsub.f32 %v32, %v2602
  %v2604 = vand.u32 %v2603, 4294901760
  %2605 = vmatprep.mubr.f32.mxu0 %v2604
  %v2606 = vand.u32 %v31, 4294901760
  %v2607 = vsub.f32 %v31, %v2606
  %v2608 = vand.u32 %v2607, 4294901760
  %2609 = vmatmul.mubr.f32.gmra.mrb[0].mxu0 %v2608
  %v2610 = vpop.f32.mrb[0].mxu0
  %v2611 = vadd.f32 %v2492, %v2610
  %v2612 = vpop.f32.mrb[0].mxu0
  %2613 = vdwg.mxu0
  %2614 = vmatprep.subr.mxu0 0.0
  %v2615 = vand.u32 %v98, 4294901760
  %v2616 = vsub.f32 %v98, %v2615
  %v2617 = vand.u32 %v2616, 4294901760
  %2618 = vmatpush1.msra.mxu0 %v2617
  %2619 = vmatprep.subr.mxu0 0.0
  %v2620 = vand.u32 %v99, 4294901760
  %v2621 = vsub.f32 %v99, %v2620
  %v2622 = vand.u32 %v2621, 4294901760
  %2623 = vmatpush1.msra.mxu0 %v2622
  %2624 = vmatprep.subr.mxu0 0.0
  %v2625 = vand.u32 %v100, 4294901760
  %v2626 = vsub.f32 %v100, %v2625
  %v2627 = vand.u32 %v2626, 4294901760
  %2628 = vmatpush1.msra.mxu0 %v2627
  %2629 = vmatprep.subr.mxu0 0.0
  %v2630 = vand.u32 %v101, 4294901760
  %v2631 = vsub.f32 %v101, %v2630
  %v2632 = vand.u32 %v2631, 4294901760
  %2633 = vmatpush1.msra.mxu0 %v2632
  %2634 = vmatprep.subr.mxu0 0.0
  %v2635 = vand.u32 %v102, 4294901760
  %v2636 = vsub.f32 %v102, %v2635
  %v2637 = vand.u32 %v2636, 4294901760
  %2638 = vmatpush1.msra.mxu0 %v2637
  %2639 = vmatprep.subr.mxu0 0.0
  %v2640 = vand.u32 %v103, 4294901760
  %v2641 = vsub.f32 %v103, %v2640
  %v2642 = vand.u32 %v2641, 4294901760
  %2643 = vmatpush1.msra.mxu0 %v2642
  %2644 = vmatprep.subr.mxu0 0.0
  %v2645 = vand.u32 %v104, 4294901760
  %v2646 = vsub.f32 %v104, %v2645
  %v2647 = vand.u32 %v2646, 4294901760
  %2648 = vmatpush1.msra.mxu0 %v2647
  %2649 = vmatprep.subr.mxu0 0.0
  %v2650 = vand.u32 %v105, 4294901760
  %v2651 = vsub.f32 %v105, %v2650
  %v2652 = vand.u32 %v2651, 4294901760
  %2653 = vmatpush1.msra.mxu0 %v2652
  %2654 = vmatprep.subr.mxu0 0.0
  %v2655 = vand.u32 %v106, 4294901760
  %v2656 = vsub.f32 %v106, %v2655
  %v2657 = vand.u32 %v2656, 4294901760
  %2658 = vmatpush1.msra.mxu0 %v2657
  %2659 = vmatprep.subr.mxu0 0.0
  %v2660 = vand.u32 %v107, 4294901760
  %v2661 = vsub.f32 %v107, %v2660
  %v2662 = vand.u32 %v2661, 4294901760
  %2663 = vmatpush1.msra.mxu0 %v2662
  %2664 = vmatprep.subr.mxu0 0.0
  %v2665 = vand.u32 %v108, 4294901760
  %v2666 = vsub.f32 %v108, %v2665
  %v2667 = vand.u32 %v2666, 4294901760
  %2668 = vmatpush1.msra.mxu0 %v2667
  %2669 = vmatprep.subr.mxu0 0.0
  %v2670 = vand.u32 %v109, 4294901760
  %v2671 = vsub.f32 %v109, %v2670
  %v2672 = vand.u32 %v2671, 4294901760
  %2673 = vmatpush1.msra.mxu0 %v2672
  %2674 = vmatprep.subr.mxu0 0.0
  %v2675 = vand.u32 %v110, 4294901760
  %v2676 = vsub.f32 %v110, %v2675
  %v2677 = vand.u32 %v2676, 4294901760
  %2678 = vmatpush1.msra.mxu0 %v2677
  %2679 = vmatprep.subr.mxu0 0.0
  %v2680 = vand.u32 %v111, 4294901760
  %v2681 = vsub.f32 %v111, %v2680
  %v2682 = vand.u32 %v2681, 4294901760
  %2683 = vmatpush1.msra.mxu0 %v2682
  %2684 = vmatprep.subr.mxu0 0.0
  %v2685 = vand.u32 %v112, 4294901760
  %v2686 = vsub.f32 %v112, %v2685
  %v2687 = vand.u32 %v2686, 4294901760
  %2688 = vmatpush1.msra.mxu0 %v2687
  %2689 = vmatprep.subr.mxu0 0.0
  %v2690 = vand.u32 %v113, 4294901760
  %v2691 = vsub.f32 %v113, %v2690
  %v2692 = vand.u32 %v2691, 4294901760
  %2693 = vmatpush1.msra.mxu0 %v2692
  %2694 = vmatprep.subr.mxu0 0.0
  %v2695 = vand.u32 %v114, 4294901760
  %v2696 = vsub.f32 %v114, %v2695
  %v2697 = vand.u32 %v2696, 4294901760
  %2698 = vmatpush1.msra.mxu0 %v2697
  %2699 = vmatprep.subr.mxu0 0.0
  %v2700 = vand.u32 %v115, 4294901760
  %v2701 = vsub.f32 %v115, %v2700
  %v2702 = vand.u32 %v2701, 4294901760
  %2703 = vmatpush1.msra.mxu0 %v2702
  %2704 = vmatprep.subr.mxu0 0.0
  %v2705 = vand.u32 %v116, 4294901760
  %v2706 = vsub.f32 %v116, %v2705
  %v2707 = vand.u32 %v2706, 4294901760
  %2708 = vmatpush1.msra.mxu0 %v2707
  %2709 = vmatprep.subr.mxu0 0.0
  %v2710 = vand.u32 %v117, 4294901760
  %v2711 = vsub.f32 %v117, %v2710
  %v2712 = vand.u32 %v2711, 4294901760
  %2713 = vmatpush1.msra.mxu0 %v2712
  %2714 = vmatprep.subr.mxu0 0.0
  %v2715 = vand.u32 %v118, 4294901760
  %v2716 = vsub.f32 %v118, %v2715
  %v2717 = vand.u32 %v2716, 4294901760
  %2718 = vmatpush1.msra.mxu0 %v2717
  %2719 = vmatprep.subr.mxu0 0.0
  %v2720 = vand.u32 %v119, 4294901760
  %v2721 = vsub.f32 %v119, %v2720
  %v2722 = vand.u32 %v2721, 4294901760
  %2723 = vmatpush1.msra.mxu0 %v2722
  %2724 = vmatprep.subr.mxu0 0.0
  %v2725 = vand.u32 %v120, 4294901760
  %v2726 = vsub.f32 %v120, %v2725
  %v2727 = vand.u32 %v2726, 4294901760
  %2728 = vmatpush1.msra.mxu0 %v2727
  %2729 = vmatprep.subr.mxu0 0.0
  %v2730 = vand.u32 %v121, 4294901760
  %v2731 = vsub.f32 %v121, %v2730
  %v2732 = vand.u32 %v2731, 4294901760
  %2733 = vmatpush1.msra.mxu0 %v2732
  %2734 = vmatprep.subr.mxu0 0.0
  %v2735 = vand.u32 %v122, 4294901760
  %v2736 = vsub.f32 %v122, %v2735
  %v2737 = vand.u32 %v2736, 4294901760
  %2738 = vmatpush1.msra.mxu0 %v2737
  %2739 = vmatprep.subr.mxu0 0.0
  %v2740 = vand.u32 %v123, 4294901760
  %v2741 = vsub.f32 %v123, %v2740
  %v2742 = vand.u32 %v2741, 4294901760
  %2743 = vmatpush1.msra.mxu0 %v2742
  %2744 = vmatprep.subr.mxu0 0.0
  %v2745 = vand.u32 %v124, 4294901760
  %v2746 = vsub.f32 %v124, %v2745
  %v2747 = vand.u32 %v2746, 4294901760
  %2748 = vmatpush1.msra.mxu0 %v2747
  %2749 = vmatprep.subr.mxu0 0.0
  %v2750 = vand.u32 %v125, 4294901760
  %v2751 = vsub.f32 %v125, %v2750
  %v2752 = vand.u32 %v2751, 4294901760
  %2753 = vmatpush1.msra.mxu0 %v2752
  %2754 = vmatprep.subr.mxu0 0.0
  %v2755 = vand.u32 %v126, 4294901760
  %v2756 = vsub.f32 %v126, %v2755
  %v2757 = vand.u32 %v2756, 4294901760
  %2758 = vmatpush1.msra.mxu0 %v2757
  %2759 = vmatprep.subr.mxu0 0.0
  %v2760 = vand.u32 %v127, 4294901760
  %v2761 = vsub.f32 %v127, %v2760
  %v2762 = vand.u32 %v2761, 4294901760
  %2763 = vmatpush1.msra.mxu0 %v2762
  %2764 = vmatprep.subr.mxu0 0.0
  %v2765 = vand.u32 %v128, 4294901760
  %v2766 = vsub.f32 %v128, %v2765
  %v2767 = vand.u32 %v2766, 4294901760
  %2768 = vmatpush1.msra.mxu0 %v2767
  %2769 = vmatprep.subr.mxu0 0.0
  %v2770 = vand.u32 %v129, 4294901760
  %v2771 = vsub.f32 %v129, %v2770
  %v2772 = vand.u32 %v2771, 4294901760
  %2773 = vmatpush1.msra.mxu0 %v2772
  %v2774 = vand.u32 %v25, 4294901760
  %2775 = vmatprep.mubr.f32.mxu0 %v2774
  %v2776 = vand.u32 %v24, 4294901760
  %2777 = vmatmul.mubr.f32.gmra.mrb[0].mxu0 %v2776
  %v2778 = vpop.f32.mrb[0].mxu0
  %v2779 = vadd.f32 %v2600, %v2778
  %v2780 = vpop.f32.mrb[0].mxu0
  %v2781 = vand.u32 %v32, 4294901760
  %2782 = vmatprep.mubr.f32.mxu0 %v2781
  %v2783 = vand.u32 %v31, 4294901760
  %2784 = vmatmul.mubr.f32.gmra.mrb[0].mxu0 %v2783
  %v2785 = vpop.f32.mrb[0].mxu0
  %v2786 = vadd.f32 %v2611, %v2785
  %v2787 = vpop.f32.mrb[0].mxu0
  %2788 = vdwg.mxu0
  %2789 = vmatprep.subr.mxu0 0.0
  %v2790 = vand.u32 %v98, 4294901760
  %2791 = vmatpush1.msra.mxu0 %v2790
  %2792 = vmatprep.subr.mxu0 0.0
  %v2793 = vand.u32 %v99, 4294901760
  %2794 = vmatpush1.msra.mxu0 %v2793
  %2795 = vmatprep.subr.mxu0 0.0
  %v2796 = vand.u32 %v100, 4294901760
  %2797 = vmatpush1.msra.mxu0 %v2796
  %2798 = vmatprep.subr.mxu0 0.0
  %v2799 = vand.u32 %v101, 4294901760
  %2800 = vmatpush1.msra.mxu0 %v2799
  %2801 = vmatprep.subr.mxu0 0.0
  %v2802 = vand.u32 %v102, 4294901760
  %2803 = vmatpush1.msra.mxu0 %v2802
  %2804 = vmatprep.subr.mxu0 0.0
  %v2805 = vand.u32 %v103, 4294901760
  %2806 = vmatpush1.msra.mxu0 %v2805
  %2807 = vmatprep.subr.mxu0 0.0
  %v2808 = vand.u32 %v104, 4294901760
  %2809 = vmatpush1.msra.mxu0 %v2808
  %2810 = vmatprep.subr.mxu0 0.0
  %v2811 = vand.u32 %v105, 4294901760
  %2812 = vmatpush1.msra.mxu0 %v2811
  %2813 = vmatprep.subr.mxu0 0.0
  %v2814 = vand.u32 %v106, 4294901760
  %2815 = vmatpush1.msra.mxu0 %v2814
  %2816 = vmatprep.subr.mxu0 0.0
  %v2817 = vand.u32 %v107, 4294901760
  %2818 = vmatpush1.msra.mxu0 %v2817
  %2819 = vmatprep.subr.mxu0 0.0
  %v2820 = vand.u32 %v108, 4294901760
  %2821 = vmatpush1.msra.mxu0 %v2820
  %2822 = vmatprep.subr.mxu0 0.0
  %v2823 = vand.u32 %v109, 4294901760
  %2824 = vmatpush1.msra.mxu0 %v2823
  %2825 = vmatprep.subr.mxu0 0.0
  %v2826 = vand.u32 %v110, 4294901760
  %2827 = vmatpush1.msra.mxu0 %v2826
  %2828 = vmatprep.subr.mxu0 0.0
  %v2829 = vand.u32 %v111, 4294901760
  %2830 = vmatpush1.msra.mxu0 %v2829
  %2831 = vmatprep.subr.mxu0 0.0
  %v2832 = vand.u32 %v112, 4294901760
  %2833 = vmatpush1.msra.mxu0 %v2832
  %2834 = vmatprep.subr.mxu0 0.0
  %v2835 = vand.u32 %v113, 4294901760
  %2836 = vmatpush1.msra.mxu0 %v2835
  %2837 = vmatprep.subr.mxu0 0.0
  %v2838 = vand.u32 %v114, 4294901760
  %2839 = vmatpush1.msra.mxu0 %v2838
  %2840 = vmatprep.subr.mxu0 0.0
  %v2841 = vand.u32 %v115, 4294901760
  %2842 = vmatpush1.msra.mxu0 %v2841
  %2843 = vmatprep.subr.mxu0 0.0
  %v2844 = vand.u32 %v116, 4294901760
  %2845 = vmatpush1.msra.mxu0 %v2844
  %2846 = vmatprep.subr.mxu0 0.0
  %v2847 = vand.u32 %v117, 4294901760
  %2848 = vmatpush1.msra.mxu0 %v2847
  %2849 = vmatprep.subr.mxu0 0.0
  %v2850 = vand.u32 %v118, 4294901760
  %2851 = vmatpush1.msra.mxu0 %v2850
  %2852 = vmatprep.subr.mxu0 0.0
  %v2853 = vand.u32 %v119, 4294901760
  %2854 = vmatpush1.msra.mxu0 %v2853
  %2855 = vmatprep.subr.mxu0 0.0
  %v2856 = vand.u32 %v120, 4294901760
  %2857 = vmatpush1.msra.mxu0 %v2856
  %2858 = vmatprep.subr.mxu0 0.0
  %v2859 = vand.u32 %v121, 4294901760
  %2860 = vmatpush1.msra.mxu0 %v2859
  %2861 = vmatprep.subr.mxu0 0.0
  %v2862 = vand.u32 %v122, 4294901760
  %2863 = vmatpush1.msra.mxu0 %v2862
  %2864 = vmatprep.subr.mxu0 0.0
  %v2865 = vand.u32 %v123, 4294901760
  %2866 = vmatpush1.msra.mxu0 %v2865
  %2867 = vmatprep.subr.mxu0 0.0
  %v2868 = vand.u32 %v124, 4294901760
  %2869 = vmatpush1.msra.mxu0 %v2868
  %2870 = vmatprep.subr.mxu0 0.0
  %v2871 = vand.u32 %v125, 4294901760
  %2872 = vmatpush1.msra.mxu0 %v2871
  %2873 = vmatprep.subr.mxu0 0.0
  %v2874 = vand.u32 %v126, 4294901760
  %2875 = vmatpush1.msra.mxu0 %v2874
  %2876 = vmatprep.subr.mxu0 0.0
  %v2877 = vand.u32 %v127, 4294901760
  %2878 = vmatpush1.msra.mxu0 %v2877
  %2879 = vmatprep.subr.mxu0 0.0
  %v2880 = vand.u32 %v128, 4294901760
  %2881 = vmatpush1.msra.mxu0 %v2880
  %2882 = vmatprep.subr.mxu0 0.0
  %v2883 = vand.u32 %v129, 4294901760
  %2884 = vmatpush1.msra.mxu0 %v2883
  %v2885 = vand.u32 %v25, 4294901760
  %2886 = vmatprep.mubr.f32.mxu0 %v2885
  %v2887 = vand.u32 %v24, 4294901760
  %2888 = vmatmul.mubr.f32.gmra.mrb[0].mxu0 %v2887
  %v2889 = vpop.f32.mrb[0].mxu0
  %v2890 = vadd.f32 %v2779, %v2889
  %v2891 = vpop.f32.mrb[0].mxu0
  %v2892 = vand.u32 %v32, 4294901760
  %2893 = vmatprep.mubr.f32.mxu0 %v2892
  %v2894 = vand.u32 %v31, 4294901760
  %2895 = vmatmul.mubr.f32.gmra.mrb[0].mxu0 %v2894
  %v2896 = vpop.f32.mrb[0].mxu0
  %v2897 = vadd.f32 %v2786, %v2896
  %v2898 = vpop.f32.mrb[0].mxu0
  %2899 = vdwg.mxu0
  %2900 = vmatprep.subr.mxu0 0.0
  %v2901 = vand.u32 %v130, 4294901760
  %2902 = vmatpush1.msra.mxu0 %v2901
  %2903 = vmatprep.subr.mxu0 0.0
  %v2904 = vand.u32 %v131, 4294901760
  %2905 = vmatpush1.msra.mxu0 %v2904
  %2906 = vmatprep.subr.mxu0 0.0
  %2907 = vmatpush1.msra.mxu0 0.0
  %2908 = vmatprep.subr.mxu0 0.0
  %2909 = vmatpush1.msra.mxu0 0.0
  %2910 = vmatprep.subr.mxu0 0.0
  %2911 = vmatpush1.msra.mxu0 0.0
  %2912 = vmatprep.subr.mxu0 0.0
  %2913 = vmatpush1.msra.mxu0 0.0
  %2914 = vmatprep.subr.mxu0 0.0
  %2915 = vmatpush1.msra.mxu0 0.0
  %2916 = vmatprep.subr.mxu0 0.0
  %2917 = vmatpush1.msra.mxu0 0.0
  %2918 = vmatprep.subr.mxu0 0.0
  %2919 = vmatpush1.msra.mxu0 0.0
  %2920 = vmatprep.subr.mxu0 0.0
  %2921 = vmatpush1.msra.mxu0 0.0
  %2922 = vmatprep.subr.mxu0 0.0
  %2923 = vmatpush1.msra.mxu0 0.0
  %2924 = vmatprep.subr.mxu0 0.0
  %2925 = vmatpush1.msra.mxu0 0.0
  %2926 = vmatprep.subr.mxu0 0.0
  %2927 = vmatpush1.msra.mxu0 0.0
  %2928 = vmatprep.subr.mxu0 0.0
  %2929 = vmatpush1.msra.mxu0 0.0
  %2930 = vmatprep.subr.mxu0 0.0
  %2931 = vmatpush1.msra.mxu0 0.0
  %2932 = vmatprep.subr.mxu0 0.0
  %2933 = vmatpush1.msra.mxu0 0.0
  %2934 = vmatprep.subr.mxu0 0.0
  %2935 = vmatpush1.msra.mxu0 0.0
  %2936 = vmatprep.subr.mxu0 0.0
  %2937 = vmatpush1.msra.mxu0 0.0
  %2938 = vmatprep.subr.mxu0 0.0
  %2939 = vmatpush1.msra.mxu0 0.0
  %2940 = vmatprep.subr.mxu0 0.0
  %2941 = vmatpush1.msra.mxu0 0.0
  %2942 = vmatprep.subr.mxu0 0.0
  %2943 = vmatpush1.msra.mxu0 0.0
  %2944 = vmatprep.subr.mxu0 0.0
  %2945 = vmatpush1.msra.mxu0 0.0
  %2946 = vmatprep.subr.mxu0 0.0
  %2947 = vmatpush1.msra.mxu0 0.0
  %2948 = vmatprep.subr.mxu0 0.0
  %2949 = vmatpush1.msra.mxu0 0.0
  %2950 = vmatprep.subr.mxu0 0.0
  %2951 = vmatpush1.msra.mxu0 0.0
  %2952 = vmatprep.subr.mxu0 0.0
  %2953 = vmatpush1.msra.mxu0 0.0
  %2954 = vmatprep.subr.mxu0 0.0
  %2955 = vmatpush1.msra.mxu0 0.0
  %2956 = vmatprep.subr.mxu0 0.0
  %2957 = vmatpush1.msra.mxu0 0.0
  %2958 = vmatprep.subr.mxu0 0.0
  %2959 = vmatpush1.msra.mxu0 0.0
  %2960 = vmatprep.subr.mxu0 0.0
  %2961 = vmatpush1.msra.mxu0 0.0
  %2962 = vmatprep.subr.mxu0 0.0
  %2963 = vmatpush1.msra.mxu0 0.0
  %2964 = vmatprep.subr.mxu0 0.0
  %2965 = vmatpush1.msra.mxu0 0.0
  %2966 = vmatprep.mubr.f32.mxu0 0.0
  %v2967 = vand.u32 %v141, 4294901760
  %v2968 = vsub.f32 %v141, %v2967
  %v2969 = vand.u32 %v2968, 4294901760
  %v2970 = vsub.f32 %v2968, %v2969
  %v2971 = vand.u32 %v2970, 4294901760
  %2972 = vmatmul.mubr.f32.gmra.mrb[0].mxu0 %v2971
  %v2973 = vpop.f32.mrb[0].mxu0
  %v2974 = vadd.f32 %v2890, %v2973
  %v2975 = vpop.f32.mrb[0].mxu0
  %2976 = vmatprep.mubr.f32.mxu0 0.0
  %v2977 = vand.u32 %v144, 4294901760
  %v2978 = vsub.f32 %v144, %v2977
  %v2979 = vand.u32 %v2978, 4294901760
  %v2980 = vsub.f32 %v2978, %v2979
  %v2981 = vand.u32 %v2980, 4294901760
  %2982 = vmatmul.mubr.f32.gmra.mrb[0].mxu0 %v2981
  %v2983 = vpop.f32.mrb[0].mxu0
  %v2984 = vadd.f32 %v2897, %v2983
  %v2985 = vpop.f32.mrb[0].mxu0
  %2986 = vdwg.mxu0
  %2987 = vmatprep.subr.mxu0 0.0
  %v2988 = vand.u32 %v130, 4294901760
  %v2989 = vsub.f32 %v130, %v2988
  %v2990 = vand.u32 %v2989, 4294901760
  %v2991 = vsub.f32 %v2989, %v2990
  %v2992 = vand.u32 %v2991, 4294901760
  %2993 = vmatpush1.msra.mxu0 %v2992
  %2994 = vmatprep.subr.mxu0 0.0
  %v2995 = vand.u32 %v131, 4294901760
  %v2996 = vsub.f32 %v131, %v2995
  %v2997 = vand.u32 %v2996, 4294901760
  %v2998 = vsub.f32 %v2996, %v2997
  %v2999 = vand.u32 %v2998, 4294901760
  %3000 = vmatpush1.msra.mxu0 %v2999
  %3001 = vmatprep.subr.mxu0 0.0
  %3002 = vmatpush1.msra.mxu0 0.0
  %3003 = vmatprep.subr.mxu0 0.0
  %3004 = vmatpush1.msra.mxu0 0.0
  %3005 = vmatprep.subr.mxu0 0.0
  %3006 = vmatpush1.msra.mxu0 0.0
  %3007 = vmatprep.subr.mxu0 0.0
  %3008 = vmatpush1.msra.mxu0 0.0
  %3009 = vmatprep.subr.mxu0 0.0
  %3010 = vmatpush1.msra.mxu0 0.0
  %3011 = vmatprep.subr.mxu0 0.0
  %3012 = vmatpush1.msra.mxu0 0.0
  %3013 = vmatprep.subr.mxu0 0.0
  %3014 = vmatpush1.msra.mxu0 0.0
  %3015 = vmatprep.subr.mxu0 0.0
  %3016 = vmatpush1.msra.mxu0 0.0
  %3017 = vmatprep.subr.mxu0 0.0
  %3018 = vmatpush1.msra.mxu0 0.0
  %3019 = vmatprep.subr.mxu0 0.0
  %3020 = vmatpush1.msra.mxu0 0.0
  %3021 = vmatprep.subr.mxu0 0.0
  %3022 = vmatpush1.msra.mxu0 0.0
  %3023 = vmatprep.subr.mxu0 0.0
  %3024 = vmatpush1.msra.mxu0 0.0
  %3025 = vmatprep.subr.mxu0 0.0
  %3026 = vmatpush1.msra.mxu0 0.0
  %3027 = vmatprep.subr.mxu0 0.0
  %3028 = vmatpush1.msra.mxu0 0.0
  %3029 = vmatprep.subr.mxu0 0.0
  %3030 = vmatpush1.msra.mxu0 0.0
  %3031 = vmatprep.subr.mxu0 0.0
  %3032 = vmatpush1.msra.mxu0 0.0
  %3033 = vmatprep.subr.mxu0 0.0
  %3034 = vmatpush1.msra.mxu0 0.0
  %3035 = vmatprep.subr.mxu0 0.0
  %3036 = vmatpush1.msra.mxu0 0.0
  %3037 = vmatprep.subr.mxu0 0.0
  %3038 = vmatpush1.msra.mxu0 0.0
  %3039 = vmatprep.subr.mxu0 0.0
  %3040 = vmatpush1.msra.mxu0 0.0
  %3041 = vmatprep.subr.mxu0 0.0
  %3042 = vmatpush1.msra.mxu0 0.0
  %3043 = vmatprep.subr.mxu0 0.0
  %3044 = vmatpush1.msra.mxu0 0.0
  %3045 = vmatprep.subr.mxu0 0.0
  %3046 = vmatpush1.msra.mxu0 0.0
  %3047 = vmatprep.subr.mxu0 0.0
  %3048 = vmatpush1.msra.mxu0 0.0
  %3049 = vmatprep.subr.mxu0 0.0
  %3050 = vmatpush1.msra.mxu0 0.0
  %3051 = vmatprep.subr.mxu0 0.0
  %3052 = vmatpush1.msra.mxu0 0.0
  %3053 = vmatprep.subr.mxu0 0.0
  %3054 = vmatpush1.msra.mxu0 0.0
  %3055 = vmatprep.subr.mxu0 0.0
  %3056 = vmatpush1.msra.mxu0 0.0
  %3057 = vmatprep.subr.mxu0 0.0
  %3058 = vmatpush1.msra.mxu0 0.0
  %3059 = vmatprep.subr.mxu0 0.0
  %3060 = vmatpush1.msra.mxu0 0.0
  %3061 = vmatprep.mubr.f32.mxu0 0.0
  %v3062 = vand.u32 %v141, 4294901760
  %3063 = vmatmul.mubr.f32.gmra.mrb[0].mxu0 %v3062
  %v3064 = vpop.f32.mrb[0].mxu0
  %v3065 = vadd.f32 %v2974, %v3064
  %v3066 = vpop.f32.mrb[0].mxu0
  %3067 = vmatprep.mubr.f32.mxu0 0.0
  %v3068 = vand.u32 %v144, 4294901760
  %3069 = vmatmul.mubr.f32.gmra.mrb[0].mxu0 %v3068
  %v3070 = vpop.f32.mrb[0].mxu0
  %v3071 = vadd.f32 %v2984, %v3070
  %v3072 = vpop.f32.mrb[0].mxu0
  %3073 = vdwg.mxu0
  %3074 = vmatprep.subr.mxu0 0.0
  %v3075 = vand.u32 %v130, 4294901760
  %v3076 = vsub.f32 %v130, %v3075
  %3077 = vmatpush1.msra.mxu0 %v3076
  %3078 = vmatprep.subr.mxu0 0.0
  %v3079 = vand.u32 %v131, 4294901760
  %v3080 = vsub.f32 %v131, %v3079
  %3081 = vmatpush1.msra.mxu0 %v3080
  %3082 = vmatprep.subr.mxu0 0.0
  %3083 = vmatpush1.msra.mxu0 0.0
  %3084 = vmatprep.subr.mxu0 0.0
  %3085 = vmatpush1.msra.mxu0 0.0
  %3086 = vmatprep.subr.mxu0 0.0
  %3087 = vmatpush1.msra.mxu0 0.0
  %3088 = vmatprep.subr.mxu0 0.0
  %3089 = vmatpush1.msra.mxu0 0.0
  %3090 = vmatprep.subr.mxu0 0.0
  %3091 = vmatpush1.msra.mxu0 0.0
  %3092 = vmatprep.subr.mxu0 0.0
  %3093 = vmatpush1.msra.mxu0 0.0
  %3094 = vmatprep.subr.mxu0 0.0
  %3095 = vmatpush1.msra.mxu0 0.0
  %3096 = vmatprep.subr.mxu0 0.0
  %3097 = vmatpush1.msra.mxu0 0.0
  %3098 = vmatprep.subr.mxu0 0.0
  %3099 = vmatpush1.msra.mxu0 0.0
  %3100 = vmatprep.subr.mxu0 0.0
  %3101 = vmatpush1.msra.mxu0 0.0
  %3102 = vmatprep.subr.mxu0 0.0
  %3103 = vmatpush1.msra.mxu0 0.0
  %3104 = vmatprep.subr.mxu0 0.0
  %3105 = vmatpush1.msra.mxu0 0.0
  %3106 = vmatprep.subr.mxu0 0.0
  %3107 = vmatpush1.msra.mxu0 0.0
  %3108 = vmatprep.subr.mxu0 0.0
  %3109 = vmatpush1.msra.mxu0 0.0
  %3110 = vmatprep.subr.mxu0 0.0
  %3111 = vmatpush1.msra.mxu0 0.0
  %3112 = vmatprep.subr.mxu0 0.0
  %3113 = vmatpush1.msra.mxu0 0.0
  %3114 = vmatprep.subr.mxu0 0.0
  %3115 = vmatpush1.msra.mxu0 0.0
  %3116 = vmatprep.subr.mxu0 0.0
  %3117 = vmatpush1.msra.mxu0 0.0
  %3118 = vmatprep.subr.mxu0 0.0
  %3119 = vmatpush1.msra.mxu0 0.0
  %3120 = vmatprep.subr.mxu0 0.0
  %3121 = vmatpush1.msra.mxu0 0.0
  %3122 = vmatprep.subr.mxu0 0.0
  %3123 = vmatpush1.msra.mxu0 0.0
  %3124 = vmatprep.subr.mxu0 0.0
  %3125 = vmatpush1.msra.mxu0 0.0
  %3126 = vmatprep.subr.mxu0 0.0
  %3127 = vmatpush1.msra.mxu0 0.0
  %3128 = vmatprep.subr.mxu0 0.0
  %3129 = vmatpush1.msra.mxu0 0.0
  %3130 = vmatprep.subr.mxu0 0.0
  %3131 = vmatpush1.msra.mxu0 0.0
  %3132 = vmatprep.subr.mxu0 0.0
  %3133 = vmatpush1.msra.mxu0 0.0
  %3134 = vmatprep.subr.mxu0 0.0
  %3135 = vmatpush1.msra.mxu0 0.0
  %3136 = vmatprep.subr.mxu0 0.0
  %3137 = vmatpush1.msra.mxu0 0.0
  %3138 = vmatprep.subr.mxu0 0.0
  %3139 = vmatpush1.msra.mxu0 0.0
  %3140 = vmatprep.subr.mxu0 0.0
  %3141 = vmatpush1.msra.mxu0 0.0
  %3142 = vmatprep.mubr.f32.mxu0 0.0
  %v3143 = vand.u32 %v141, 4294901760
  %v3144 = vsub.f32 %v141, %v3143
  %3145 = vmatmul.mubr.f32.gmra.mrb[0].mxu0 %v3144
  %v3146 = vpop.f32.mrb[0].mxu0
  %v3147 = vadd.f32 %v3065, %v3146
  %v3148 = vpop.f32.mrb[0].mxu0
  %3149 = vmatprep.mubr.f32.mxu0 0.0
  %v3150 = vand.u32 %v144, 4294901760
  %v3151 = vsub.f32 %v144, %v3150
  %3152 = vmatmul.mubr.f32.gmra.mrb[0].mxu0 %v3151
  %v3153 = vpop.f32.mrb[0].mxu0
  %v3154 = vadd.f32 %v3071, %v3153
  %v3155 = vpop.f32.mrb[0].mxu0
  %3156 = vdwg.mxu0
  %3157 = vmatprep.subr.mxu0 0.0
  %v3158 = vand.u32 %v130, 4294901760
  %3159 = vmatpush1.msra.mxu0 %v3158
  %3160 = vmatprep.subr.mxu0 0.0
  %v3161 = vand.u32 %v131, 4294901760
  %3162 = vmatpush1.msra.mxu0 %v3161
  %3163 = vmatprep.subr.mxu0 0.0
  %3164 = vmatpush1.msra.mxu0 0.0
  %3165 = vmatprep.subr.mxu0 0.0
  %3166 = vmatpush1.msra.mxu0 0.0
  %3167 = vmatprep.subr.mxu0 0.0
  %3168 = vmatpush1.msra.mxu0 0.0
  %3169 = vmatprep.subr.mxu0 0.0
  %3170 = vmatpush1.msra.mxu0 0.0
  %3171 = vmatprep.subr.mxu0 0.0
  %3172 = vmatpush1.msra.mxu0 0.0
  %3173 = vmatprep.subr.mxu0 0.0
  %3174 = vmatpush1.msra.mxu0 0.0
  %3175 = vmatprep.subr.mxu0 0.0
  %3176 = vmatpush1.msra.mxu0 0.0
  %3177 = vmatprep.subr.mxu0 0.0
  %3178 = vmatpush1.msra.mxu0 0.0
  %3179 = vmatprep.subr.mxu0 0.0
  %3180 = vmatpush1.msra.mxu0 0.0
  %3181 = vmatprep.subr.mxu0 0.0
  %3182 = vmatpush1.msra.mxu0 0.0
  %3183 = vmatprep.subr.mxu0 0.0
  %3184 = vmatpush1.msra.mxu0 0.0
  %3185 = vmatprep.subr.mxu0 0.0
  %3186 = vmatpush1.msra.mxu0 0.0
  %3187 = vmatprep.subr.mxu0 0.0
  %3188 = vmatpush1.msra.mxu0 0.0
  %3189 = vmatprep.subr.mxu0 0.0
  %3190 = vmatpush1.msra.mxu0 0.0
  %3191 = vmatprep.subr.mxu0 0.0
  %3192 = vmatpush1.msra.mxu0 0.0
  %3193 = vmatprep.subr.mxu0 0.0
  %3194 = vmatpush1.msra.mxu0 0.0
  %3195 = vmatprep.subr.mxu0 0.0
  %3196 = vmatpush1.msra.mxu0 0.0
  %3197 = vmatprep.subr.mxu0 0.0
  %3198 = vmatpush1.msra.mxu0 0.0
  %3199 = vmatprep.subr.mxu0 0.0
  %3200 = vmatpush1.msra.mxu0 0.0
  %3201 = vmatprep.subr.mxu0 0.0
  %3202 = vmatpush1.msra.mxu0 0.0
  %3203 = vmatprep.subr.mxu0 0.0
  %3204 = vmatpush1.msra.mxu0 0.0
  %3205 = vmatprep.subr.mxu0 0.0
  %3206 = vmatpush1.msra.mxu0 0.0
  %3207 = vmatprep.subr.mxu0 0.0
  %3208 = vmatpush1.msra.mxu0 0.0
  %3209 = vmatprep.subr.mxu0 0.0
  %3210 = vmatpush1.msra.mxu0 0.0
  %3211 = vmatprep.subr.mxu0 0.0
  %3212 = vmatpush1.msra.mxu0 0.0
  %3213 = vmatprep.subr.mxu0 0.0
  %3214 = vmatpush1.msra.mxu0 0.0
  %3215 = vmatprep.subr.mxu0 0.0
  %3216 = vmatpush1.msra.mxu0 0.0
  %3217 = vmatprep.subr.mxu0 0.0
  %3218 = vmatpush1.msra.mxu0 0.0
  %3219 = vmatprep.subr.mxu0 0.0
  %3220 = vmatpush1.msra.mxu0 0.0
  %3221 = vmatprep.subr.mxu0 0.0
  %3222 = vmatpush1.msra.mxu0 0.0
  %3223 = vmatprep.mubr.f32.mxu0 0.0
  %v3224 = vand.u32 %v141, 4294901760
  %v3225 = vsub.f32 %v141, %v3224
  %v3226 = vand.u32 %v3225, 4294901760
  %3227 = vmatmul.mubr.f32.gmra.mrb[0].mxu0 %v3226
  %v3228 = vpop.f32.mrb[0].mxu0
  %v3229 = vadd.f32 %v3147, %v3228
  %v3230 = vpop.f32.mrb[0].mxu0
  %3231 = vmatprep.mubr.f32.mxu0 0.0
  %v3232 = vand.u32 %v144, 4294901760
  %v3233 = vsub.f32 %v144, %v3232
  %v3234 = vand.u32 %v3233, 4294901760
  %3235 = vmatmul.mubr.f32.gmra.mrb[0].mxu0 %v3234
  %v3236 = vpop.f32.mrb[0].mxu0
  %v3237 = vadd.f32 %v3154, %v3236
  %v3238 = vpop.f32.mrb[0].mxu0
  %3239 = vdwg.mxu0
  %3240 = vmatprep.subr.mxu0 0.0
  %v3241 = vand.u32 %v130, 4294901760
  %v3242 = vsub.f32 %v130, %v3241
  %v3243 = vand.u32 %v3242, 4294901760
  %3244 = vmatpush1.msra.mxu0 %v3243
  %3245 = vmatprep.subr.mxu0 0.0
  %v3246 = vand.u32 %v131, 4294901760
  %v3247 = vsub.f32 %v131, %v3246
  %v3248 = vand.u32 %v3247, 4294901760
  %3249 = vmatpush1.msra.mxu0 %v3248
  %3250 = vmatprep.subr.mxu0 0.0
  %3251 = vmatpush1.msra.mxu0 0.0
  %3252 = vmatprep.subr.mxu0 0.0
  %3253 = vmatpush1.msra.mxu0 0.0
  %3254 = vmatprep.subr.mxu0 0.0
  %3255 = vmatpush1.msra.mxu0 0.0
  %3256 = vmatprep.subr.mxu0 0.0
  %3257 = vmatpush1.msra.mxu0 0.0
  %3258 = vmatprep.subr.mxu0 0.0
  %3259 = vmatpush1.msra.mxu0 0.0
  %3260 = vmatprep.subr.mxu0 0.0
  %3261 = vmatpush1.msra.mxu0 0.0
  %3262 = vmatprep.subr.mxu0 0.0
  %3263 = vmatpush1.msra.mxu0 0.0
  %3264 = vmatprep.subr.mxu0 0.0
  %3265 = vmatpush1.msra.mxu0 0.0
  %3266 = vmatprep.subr.mxu0 0.0
  %3267 = vmatpush1.msra.mxu0 0.0
  %3268 = vmatprep.subr.mxu0 0.0
  %3269 = vmatpush1.msra.mxu0 0.0
  %3270 = vmatprep.subr.mxu0 0.0
  %3271 = vmatpush1.msra.mxu0 0.0
  %3272 = vmatprep.subr.mxu0 0.0
  %3273 = vmatpush1.msra.mxu0 0.0
  %3274 = vmatprep.subr.mxu0 0.0
  %3275 = vmatpush1.msra.mxu0 0.0
  %3276 = vmatprep.subr.mxu0 0.0
  %3277 = vmatpush1.msra.mxu0 0.0
  %3278 = vmatprep.subr.mxu0 0.0
  %3279 = vmatpush1.msra.mxu0 0.0
  %3280 = vmatprep.subr.mxu0 0.0
  %3281 = vmatpush1.msra.mxu0 0.0
  %3282 = vmatprep.subr.mxu0 0.0
  %3283 = vmatpush1.msra.mxu0 0.0
  %3284 = vmatprep.subr.mxu0 0.0
  %3285 = vmatpush1.msra.mxu0 0.0
  %3286 = vmatprep.subr.mxu0 0.0
  %3287 = vmatpush1.msra.mxu0 0.0
  %3288 = vmatprep.subr.mxu0 0.0
  %3289 = vmatpush1.msra.mxu0 0.0
  %3290 = vmatprep.subr.mxu0 0.0
  %3291 = vmatpush1.msra.mxu0 0.0
  %3292 = vmatprep.subr.mxu0 0.0
  %3293 = vmatpush1.msra.mxu0 0.0
  %3294 = vmatprep.subr.mxu0 0.0
  %3295 = vmatpush1.msra.mxu0 0.0
  %3296 = vmatprep.subr.mxu0 0.0
  %3297 = vmatpush1.msra.mxu0 0.0
  %3298 = vmatprep.subr.mxu0 0.0
  %3299 = vmatpush1.msra.mxu0 0.0
  %3300 = vmatprep.subr.mxu0 0.0
  %3301 = vmatpush1.msra.mxu0 0.0
  %3302 = vmatprep.subr.mxu0 0.0
  %3303 = vmatpush1.msra.mxu0 0.0
  %3304 = vmatprep.subr.mxu0 0.0
  %3305 = vmatpush1.msra.mxu0 0.0
  %3306 = vmatprep.subr.mxu0 0.0
  %3307 = vmatpush1.msra.mxu0 0.0
  %3308 = vmatprep.subr.mxu0 0.0
  %3309 = vmatpush1.msra.mxu0 0.0
  %3310 = vmatprep.mubr.f32.mxu0 0.0
  %v3311 = vand.u32 %v141, 4294901760
  %3312 = vmatmul.mubr.f32.gmra.mrb[0].mxu0 %v3311
  %v3313 = vpop.f32.mrb[0].mxu0
  %v3314 = vadd.f32 %v3229, %v3313
  %v3315 = vpop.f32.mrb[0].mxu0
  %3316 = vmatprep.mubr.f32.mxu0 0.0
  %v3317 = vand.u32 %v144, 4294901760
  %3318 = vmatmul.mubr.f32.gmra.mrb[0].mxu0 %v3317
  %v3319 = vpop.f32.mrb[0].mxu0
  %v3320 = vadd.f32 %v3237, %v3319
  %v3321 = vpop.f32.mrb[0].mxu0
  %3322 = vdwg.mxu0
  %3323 = vmatprep.subr.mxu0 0.0
  %v3324 = vand.u32 %v130, 4294901760
  %3325 = vmatpush1.msra.mxu0 %v3324
  %3326 = vmatprep.subr.mxu0 0.0
  %v3327 = vand.u32 %v131, 4294901760
  %3328 = vmatpush1.msra.mxu0 %v3327
  %3329 = vmatprep.subr.mxu0 0.0
  %3330 = vmatpush1.msra.mxu0 0.0
  %3331 = vmatprep.subr.mxu0 0.0
  %3332 = vmatpush1.msra.mxu0 0.0
  %3333 = vmatprep.subr.mxu0 0.0
  %3334 = vmatpush1.msra.mxu0 0.0
  %3335 = vmatprep.subr.mxu0 0.0
  %3336 = vmatpush1.msra.mxu0 0.0
  %3337 = vmatprep.subr.mxu0 0.0
  %3338 = vmatpush1.msra.mxu0 0.0
  %3339 = vmatprep.subr.mxu0 0.0
  %3340 = vmatpush1.msra.mxu0 0.0
  %3341 = vmatprep.subr.mxu0 0.0
  %3342 = vmatpush1.msra.mxu0 0.0
  %3343 = vmatprep.subr.mxu0 0.0
  %3344 = vmatpush1.msra.mxu0 0.0
  %3345 = vmatprep.subr.mxu0 0.0
  %3346 = vmatpush1.msra.mxu0 0.0
  %3347 = vmatprep.subr.mxu0 0.0
  %3348 = vmatpush1.msra.mxu0 0.0
  %3349 = vmatprep.subr.mxu0 0.0
  %3350 = vmatpush1.msra.mxu0 0.0
  %3351 = vmatprep.subr.mxu0 0.0
  %3352 = vmatpush1.msra.mxu0 0.0
  %3353 = vmatprep.subr.mxu0 0.0
  %3354 = vmatpush1.msra.mxu0 0.0
  %3355 = vmatprep.subr.mxu0 0.0
  %3356 = vmatpush1.msra.mxu0 0.0
  %3357 = vmatprep.subr.mxu0 0.0
  %3358 = vmatpush1.msra.mxu0 0.0
  %3359 = vmatprep.subr.mxu0 0.0
  %3360 = vmatpush1.msra.mxu0 0.0
  %3361 = vmatprep.subr.mxu0 0.0
  %3362 = vmatpush1.msra.mxu0 0.0
  %3363 = vmatprep.subr.mxu0 0.0
  %3364 = vmatpush1.msra.mxu0 0.0
  %3365 = vmatprep.subr.mxu0 0.0
  %3366 = vmatpush1.msra.mxu0 0.0
  %3367 = vmatprep.subr.mxu0 0.0
  %3368 = vmatpush1.msra.mxu0 0.0
  %3369 = vmatprep.subr.mxu0 0.0
  %3370 = vmatpush1.msra.mxu0 0.0
  %3371 = vmatprep.subr.mxu0 0.0
  %3372 = vmatpush1.msra.mxu0 0.0
  %3373 = vmatprep.subr.mxu0 0.0
  %3374 = vmatpush1.msra.mxu0 0.0
  %3375 = vmatprep.subr.mxu0 0.0
  %3376 = vmatpush1.msra.mxu0 0.0
  %3377 = vmatprep.subr.mxu0 0.0
  %3378 = vmatpush1.msra.mxu0 0.0
  %3379 = vmatprep.subr.mxu0 0.0
  %3380 = vmatpush1.msra.mxu0 0.0
  %3381 = vmatprep.subr.mxu0 0.0
  %3382 = vmatpush1.msra.mxu0 0.0
  %3383 = vmatprep.subr.mxu0 0.0
  %3384 = vmatpush1.msra.mxu0 0.0
  %3385 = vmatprep.subr.mxu0 0.0
  %3386 = vmatpush1.msra.mxu0 0.0
  %3387 = vmatprep.subr.mxu0 0.0
  %3388 = vmatpush1.msra.mxu0 0.0
  %3389 = vmatprep.mubr.f32.mxu0 0.0
  %v3390 = vand.u32 %v141, 4294901760
  %3391 = vmatmul.mubr.f32.gmra.mrb[0].mxu0 %v3390
  %v3392 = vpop.f32.mrb[0].mxu0
  %v3393 = vadd.f32 %v3314, %v3392
  %v3394 = vpop.f32.mrb[0].mxu0
  %3395 = vmatprep.mubr.f32.mxu0 0.0
  %v3396 = vand.u32 %v144, 4294901760
  %3397 = vmatmul.mubr.f32.gmra.mrb[0].mxu0 %v3396
  %v3398 = vpop.f32.mrb[0].mxu0
  %v3399 = vadd.f32 %v3320, %v3398
  %v3400 = vpop.f32.mrb[0].mxu0
  %3401 = vdwg.mxu0
  %v3402 = vmax.f32 %v3393, 0.0
  %v3403 = vmax.f32 %v3399, 0.0
  %v3404 = vld [vmem:[%s3] sm:$0xff]
  %v3405 = vld [vmem:[%s3 + $0x8] sm:$0xff]
  %v3406 = vld [vmem:[%s3 + $0x10] sm:$0xff]
  %v3407 = vld [vmem:[%s3 + $0x18] sm:$0xff]
  %v3408 = vld [vmem:[%s3 + $0x20] sm:$0xff]
  %v3409 = vld [vmem:[%s3 + $0x28] sm:$0xff]
  %v3410 = vld [vmem:[%s3 + $0x30] sm:$0xff]
  %v3411 = vld [vmem:[%s3 + $0x38] sm:$0xff]
  %v3412 = vld [vmem:[%s3 + $0x40] sm:$0xff]
  %v3413 = vld [vmem:[%s3 + $0x48] sm:$0xff]
  %v3414 = vld [vmem:[%s3 + $0x50] sm:$0xff]
  %v3415 = vld [vmem:[%s3 + $0x58] sm:$0xff]
  %v3416 = vld [vmem:[%s3 + $0x60] sm:$0xff]
  %v3417 = vld [vmem:[%s3 + $0x68] sm:$0xff]
  %v3418 = vld [vmem:[%s3 + $0x70] sm:$0xff]
  %v3419 = vld [vmem:[%s3 + $0x78] sm:$0xff]
  %v3420 = vld [vmem:[%s4] sm:$0x1]
  %v3422 = vlaneseq
  %v3423 = vshrl.u32 %v3422, 7
  %v3424 = vsub.s32 0, %v3423
  %v3425 = vrot.slane %v3420, %v3424
  %3427 = vmatprep.subr.mxu0 0.0
  %v3428 = vand.u32 %v3404, 4294901760
  %3429 = vmatpush1.msra.mxu0 %v3428
  %3430 = vmatprep.subr.mxu0 0.0
  %v3431 = vand.u32 %v3405, 4294901760
  %3432 = vmatpush1.msra.mxu0 %v3431
  %3433 = vmatprep.subr.mxu0 0.0
  %v3434 = vand.u32 %v3406, 4294901760
  %3435 = vmatpush1.msra.mxu0 %v3434
  %3436 = vmatprep.subr.mxu0 0.0
  %v3437 = vand.u32 %v3407, 4294901760
  %3438 = vmatpush1.msra.mxu0 %v3437
  %3439 = vmatprep.subr.mxu0 0.0
  %v3440 = vand.u32 %v3408, 4294901760
  %3441 = vmatpush1.msra.mxu0 %v3440
  %3442 = vmatprep.subr.mxu0 0.0
  %v3443 = vand.u32 %v3409, 4294901760
  %3444 = vmatpush1.msra.mxu0 %v3443
  %3445 = vmatprep.subr.mxu0 0.0
  %v3446 = vand.u32 %v3410, 4294901760
  %3447 = vmatpush1.msra.mxu0 %v3446
  %3448 = vmatprep.subr.mxu0 0.0
  %v3449 = vand.u32 %v3411, 4294901760
  %3450 = vmatpush1.msra.mxu0 %v3449
  %3451 = vmatprep.subr.mxu0 0.0
  %v3452 = vand.u32 %v3412, 4294901760
  %3453 = vmatpush1.msra.mxu0 %v3452
  %3454 = vmatprep.subr.mxu0 0.0
  %v3455 = vand.u32 %v3413, 4294901760
  %3456 = vmatpush1.msra.mxu0 %v3455
  %3457 = vmatprep.subr.mxu0 0.0
  %v3458 = vand.u32 %v3414, 4294901760
  %3459 = vmatpush1.msra.mxu0 %v3458
  %3460 = vmatprep.subr.mxu0 0.0
  %v3461 = vand.u32 %v3415, 4294901760
  %3462 = vmatpush1.msra.mxu0 %v3461
  %3463 = vmatprep.subr.mxu0 0.0
  %v3464 = vand.u32 %v3416, 4294901760
  %3465 = vmatpush1.msra.mxu0 %v3464
  %3466 = vmatprep.subr.mxu0 0.0
  %v3467 = vand.u32 %v3417, 4294901760
  %3468 = vmatpush1.msra.mxu0 %v3467
  %3469 = vmatprep.subr.mxu0 0.0
  %v3470 = vand.u32 %v3418, 4294901760
  %3471 = vmatpush1.msra.mxu0 %v3470
  %3472 = vmatprep.subr.mxu0 0.0
  %v3473 = vand.u32 %v3419, 4294901760
  %3474 = vmatpush1.msra.mxu0 %v3473
  %3475 = vmatprep.subr.mxu0 0.0
  %3476 = vmatpush1.msra.mxu0 0.0
  %3477 = vmatprep.subr.mxu0 0.0
  %3478 = vmatpush1.msra.mxu0 0.0
  %3479 = vmatprep.subr.mxu0 0.0
  %3480 = vmatpush1.msra.mxu0 0.0
  %3481 = vmatprep.subr.mxu0 0.0
  %3482 = vmatpush1.msra.mxu0 0.0
  %3483 = vmatprep.subr.mxu0 0.0
  %3484 = vmatpush1.msra.mxu0 0.0
  %3485 = vmatprep.subr.mxu0 0.0
  %3486 = vmatpush1.msra.mxu0 0.0
  %3487 = vmatprep.subr.mxu0 0.0
  %3488 = vmatpush1.msra.mxu0 0.0
  %3489 = vmatprep.subr.mxu0 0.0
  %3490 = vmatpush1.msra.mxu0 0.0
  %3491 = vmatprep.subr.mxu0 0.0
  %3492 = vmatpush1.msra.mxu0 0.0
  %3493 = vmatprep.subr.mxu0 0.0
  %3494 = vmatpush1.msra.mxu0 0.0
  %3495 = vmatprep.subr.mxu0 0.0
  %3496 = vmatpush1.msra.mxu0 0.0
  %3497 = vmatprep.subr.mxu0 0.0
  %3498 = vmatpush1.msra.mxu0 0.0
  %3499 = vmatprep.subr.mxu0 0.0
  %3500 = vmatpush1.msra.mxu0 0.0
  %3501 = vmatprep.subr.mxu0 0.0
  %3502 = vmatpush1.msra.mxu0 0.0
  %3503 = vmatprep.subr.mxu0 0.0
  %3504 = vmatpush1.msra.mxu0 0.0
  %3505 = vmatprep.subr.mxu0 0.0
  %3506 = vmatpush1.msra.mxu0 0.0
  %3507 = vmatprep.mubr.f32.mxu0 0.0
  %v3508 = vand.u32 %v3402, 4294901760
  %v3509 = vsub.f32 %v3402, %v3508
  %v3510 = vand.u32 %v3509, 4294901760
  %v3511 = vsub.f32 %v3509, %v3510
  %v3512 = vand.u32 %v3511, 4294901760
  %3513 = vmatmul.mubr.f32.gmra.mrb[0].mxu0 %v3512
  %v3514 = vpop.f32.mrb[0].mxu0
  %v3515 = vadd.f32 %v3425, %v3514
  %v3516 = vpop.f32.mrb[0].mxu0
  %3517 = vmatprep.mubr.f32.mxu0 0.0
  %v3518 = vand.u32 %v3403, 4294901760
  %v3519 = vsub.f32 %v3403, %v3518
  %v3520 = vand.u32 %v3519, 4294901760
  %v3521 = vsub.f32 %v3519, %v3520
  %v3522 = vand.u32 %v3521, 4294901760
  %3523 = vmatmul.mubr.f32.gmra.mrb[0].mxu0 %v3522
  %v3524 = vpop.f32.mrb[0].mxu0
  %v3525 = vadd.f32 %v3425, %v3524
  %v3526 = vpop.f32.mrb[0].mxu0
  %3527 = vdwg.mxu0
  %3528 = vmatprep.subr.mxu0 0.0
  %v3529 = vand.u32 %v3404, 4294901760
  %v3530 = vsub.f32 %v3404, %v3529
  %v3531 = vand.u32 %v3530, 4294901760
  %v3532 = vsub.f32 %v3530, %v3531
  %v3533 = vand.u32 %v3532, 4294901760
  %3534 = vmatpush1.msra.mxu0 %v3533
  %3535 = vmatprep.subr.mxu0 0.0
  %v3536 = vand.u32 %v3405, 4294901760
  %v3537 = vsub.f32 %v3405, %v3536
  %v3538 = vand.u32 %v3537, 4294901760
  %v3539 = vsub.f32 %v3537, %v3538
  %v3540 = vand.u32 %v3539, 4294901760
  %3541 = vmatpush1.msra.mxu0 %v3540
  %3542 = vmatprep.subr.mxu0 0.0
  %v3543 = vand.u32 %v3406, 4294901760
  %v3544 = vsub.f32 %v3406, %v3543
  %v3545 = vand.u32 %v3544, 4294901760
  %v3546 = vsub.f32 %v3544, %v3545
  %v3547 = vand.u32 %v3546, 4294901760
  %3548 = vmatpush1.msra.mxu0 %v3547
  %3549 = vmatprep.subr.mxu0 0.0
  %v3550 = vand.u32 %v3407, 4294901760
  %v3551 = vsub.f32 %v3407, %v3550
  %v3552 = vand.u32 %v3551, 4294901760
  %v3553 = vsub.f32 %v3551, %v3552
  %v3554 = vand.u32 %v3553, 4294901760
  %3555 = vmatpush1.msra.mxu0 %v3554
  %3556 = vmatprep.subr.mxu0 0.0
  %v3557 = vand.u32 %v3408, 4294901760
  %v3558 = vsub.f32 %v3408, %v3557
  %v3559 = vand.u32 %v3558, 4294901760
  %v3560 = vsub.f32 %v3558, %v3559
  %v3561 = vand.u32 %v3560, 4294901760
  %3562 = vmatpush1.msra.mxu0 %v3561
  %3563 = vmatprep.subr.mxu0 0.0
  %v3564 = vand.u32 %v3409, 4294901760
  %v3565 = vsub.f32 %v3409, %v3564
  %v3566 = vand.u32 %v3565, 4294901760
  %v3567 = vsub.f32 %v3565, %v3566
  %v3568 = vand.u32 %v3567, 4294901760
  %3569 = vmatpush1.msra.mxu0 %v3568
  %3570 = vmatprep.subr.mxu0 0.0
  %v3571 = vand.u32 %v3410, 4294901760
  %v3572 = vsub.f32 %v3410, %v3571
  %v3573 = vand.u32 %v3572, 4294901760
  %v3574 = vsub.f32 %v3572, %v3573
  %v3575 = vand.u32 %v3574, 4294901760
  %3576 = vmatpush1.msra.mxu0 %v3575
  %3577 = vmatprep.subr.mxu0 0.0
  %v3578 = vand.u32 %v3411, 4294901760
  %v3579 = vsub.f32 %v3411, %v3578
  %v3580 = vand.u32 %v3579, 4294901760
  %v3581 = vsub.f32 %v3579, %v3580
  %v3582 = vand.u32 %v3581, 4294901760
  %3583 = vmatpush1.msra.mxu0 %v3582
  %3584 = vmatprep.subr.mxu0 0.0
  %v3585 = vand.u32 %v3412, 4294901760
  %v3586 = vsub.f32 %v3412, %v3585
  %v3587 = vand.u32 %v3586, 4294901760
  %v3588 = vsub.f32 %v3586, %v3587
  %v3589 = vand.u32 %v3588, 4294901760
  %3590 = vmatpush1.msra.mxu0 %v3589
  %3591 = vmatprep.subr.mxu0 0.0
  %v3592 = vand.u32 %v3413, 4294901760
  %v3593 = vsub.f32 %v3413, %v3592
  %v3594 = vand.u32 %v3593, 4294901760
  %v3595 = vsub.f32 %v3593, %v3594
  %v3596 = vand.u32 %v3595, 4294901760
  %3597 = vmatpush1.msra.mxu0 %v3596
  %3598 = vmatprep.subr.mxu0 0.0
  %v3599 = vand.u32 %v3414, 4294901760
  %v3600 = vsub.f32 %v3414, %v3599
  %v3601 = vand.u32 %v3600, 4294901760
  %v3602 = vsub.f32 %v3600, %v3601
  %v3603 = vand.u32 %v3602, 4294901760
  %3604 = vmatpush1.msra.mxu0 %v3603
  %3605 = vmatprep.subr.mxu0 0.0
  %v3606 = vand.u32 %v3415, 4294901760
  %v3607 = vsub.f32 %v3415, %v3606
  %v3608 = vand.u32 %v3607, 4294901760
  %v3609 = vsub.f32 %v3607, %v3608
  %v3610 = vand.u32 %v3609, 4294901760
  %3611 = vmatpush1.msra.mxu0 %v3610
  %3612 = vmatprep.subr.mxu0 0.0
  %v3613 = vand.u32 %v3416, 4294901760
  %v3614 = vsub.f32 %v3416, %v3613
  %v3615 = vand.u32 %v3614, 4294901760
  %v3616 = vsub.f32 %v3614, %v3615
  %v3617 = vand.u32 %v3616, 4294901760
  %3618 = vmatpush1.msra.mxu0 %v3617
  %3619 = vmatprep.subr.mxu0 0.0
  %v3620 = vand.u32 %v3417, 4294901760
  %v3621 = vsub.f32 %v3417, %v3620
  %v3622 = vand.u32 %v3621, 4294901760
  %v3623 = vsub.f32 %v3621, %v3622
  %v3624 = vand.u32 %v3623, 4294901760
  %3625 = vmatpush1.msra.mxu0 %v3624
  %3626 = vmatprep.subr.mxu0 0.0
  %v3627 = vand.u32 %v3418, 4294901760
  %v3628 = vsub.f32 %v3418, %v3627
  %v3629 = vand.u32 %v3628, 4294901760
  %v3630 = vsub.f32 %v3628, %v3629
  %v3631 = vand.u32 %v3630, 4294901760
  %3632 = vmatpush1.msra.mxu0 %v3631
  %3633 = vmatprep.subr.mxu0 0.0
  %v3634 = vand.u32 %v3419, 4294901760
  %v3635 = vsub.f32 %v3419, %v3634
  %v3636 = vand.u32 %v3635, 4294901760
  %v3637 = vsub.f32 %v3635, %v3636
  %v3638 = vand.u32 %v3637, 4294901760
  %3639 = vmatpush1.msra.mxu0 %v3638
  %3640 = vmatprep.subr.mxu0 0.0
  %3641 = vmatpush1.msra.mxu0 0.0
  %3642 = vmatprep.subr.mxu0 0.0
  %3643 = vmatpush1.msra.mxu0 0.0
  %3644 = vmatprep.subr.mxu0 0.0
  %3645 = vmatpush1.msra.mxu0 0.0
  %3646 = vmatprep.subr.mxu0 0.0
  %3647 = vmatpush1.msra.mxu0 0.0
  %3648 = vmatprep.subr.mxu0 0.0
  %3649 = vmatpush1.msra.mxu0 0.0
  %3650 = vmatprep.subr.mxu0 0.0
  %3651 = vmatpush1.msra.mxu0 0.0
  %3652 = vmatprep.subr.mxu0 0.0
  %3653 = vmatpush1.msra.mxu0 0.0
  %3654 = vmatprep.subr.mxu0 0.0
  %3655 = vmatpush1.msra.mxu0 0.0
  %3656 = vmatprep.subr.mxu0 0.0
  %3657 = vmatpush1.msra.mxu0 0.0
  %3658 = vmatprep.subr.mxu0 0.0
  %3659 = vmatpush1.msra.mxu0 0.0
  %3660 = vmatprep.subr.mxu0 0.0
  %3661 = vmatpush1.msra.mxu0 0.0
  %3662 = vmatprep.subr.mxu0 0.0
  %3663 = vmatpush1.msra.mxu0 0.0
  %3664 = vmatprep.subr.mxu0 0.0
  %3665 = vmatpush1.msra.mxu0 0.0
  %3666 = vmatprep.subr.mxu0 0.0
  %3667 = vmatpush1.msra.mxu0 0.0
  %3668 = vmatprep.subr.mxu0 0.0
  %3669 = vmatpush1.msra.mxu0 0.0
  %3670 = vmatprep.subr.mxu0 0.0
  %3671 = vmatpush1.msra.mxu0 0.0
  %3672 = vmatprep.mubr.f32.mxu0 0.0
  %v3673 = vand.u32 %v3402, 4294901760
  %3674 = vmatmul.mubr.f32.gmra.mrb[0].mxu0 %v3673
  %v3675 = vpop.f32.mrb[0].mxu0
  %v3676 = vadd.f32 %v3515, %v3675
  %v3677 = vpop.f32.mrb[0].mxu0
  %3678 = vmatprep.mubr.f32.mxu0 0.0
  %v3679 = vand.u32 %v3403, 4294901760
  %3680 = vmatmul.mubr.f32.gmra.mrb[0].mxu0 %v3679
  %v3681 = vpop.f32.mrb[0].mxu0
  %v3682 = vadd.f32 %v3525, %v3681
  %v3683 = vpop.f32.mrb[0].mxu0
  %3684 = vdwg.mxu0
  %3685 = vmatprep.subr.mxu0 0.0
  %v3686 = vand.u32 %v3404, 4294901760
  %v3687 = vsub.f32 %v3404, %v3686
  %3688 = vmatpush1.msra.mxu0 %v3687
  %3689 = vmatprep.subr.mxu0 0.0
  %v3690 = vand.u32 %v3405, 4294901760
  %v3691 = vsub.f32 %v3405, %v3690
  %3692 = vmatpush1.msra.mxu0 %v3691
  %3693 = vmatprep.subr.mxu0 0.0
  %v3694 = vand.u32 %v3406, 4294901760
  %v3695 = vsub.f32 %v3406, %v3694
  %3696 = vmatpush1.msra.mxu0 %v3695
  %3697 = vmatprep.subr.mxu0 0.0
  %v3698 = vand.u32 %v3407, 4294901760
  %v3699 = vsub.f32 %v3407, %v3698
  %3700 = vmatpush1.msra.mxu0 %v3699
  %3701 = vmatprep.subr.mxu0 0.0
  %v3702 = vand.u32 %v3408, 4294901760
  %v3703 = vsub.f32 %v3408, %v3702
  %3704 = vmatpush1.msra.mxu0 %v3703
  %3705 = vmatprep.subr.mxu0 0.0
  %v3706 = vand.u32 %v3409, 4294901760
  %v3707 = vsub.f32 %v3409, %v3706
  %3708 = vmatpush1.msra.mxu0 %v3707
  %3709 = vmatprep.subr.mxu0 0.0
  %v3710 = vand.u32 %v3410, 4294901760
  %v3711 = vsub.f32 %v3410, %v3710
  %3712 = vmatpush1.msra.mxu0 %v3711
  %3713 = vmatprep.subr.mxu0 0.0
  %v3714 = vand.u32 %v3411, 4294901760
  %v3715 = vsub.f32 %v3411, %v3714
  %3716 = vmatpush1.msra.mxu0 %v3715
  %3717 = vmatprep.subr.mxu0 0.0
  %v3718 = vand.u32 %v3412, 4294901760
  %v3719 = vsub.f32 %v3412, %v3718
  %3720 = vmatpush1.msra.mxu0 %v3719
  %3721 = vmatprep.subr.mxu0 0.0
  %v3722 = vand.u32 %v3413, 4294901760
  %v3723 = vsub.f32 %v3413, %v3722
  %3724 = vmatpush1.msra.mxu0 %v3723
  %3725 = vmatprep.subr.mxu0 0.0
  %v3726 = vand.u32 %v3414, 4294901760
  %v3727 = vsub.f32 %v3414, %v3726
  %3728 = vmatpush1.msra.mxu0 %v3727
  %3729 = vmatprep.subr.mxu0 0.0
  %v3730 = vand.u32 %v3415, 4294901760
  %v3731 = vsub.f32 %v3415, %v3730
  %3732 = vmatpush1.msra.mxu0 %v3731
  %3733 = vmatprep.subr.mxu0 0.0
  %v3734 = vand.u32 %v3416, 4294901760
  %v3735 = vsub.f32 %v3416, %v3734
  %3736 = vmatpush1.msra.mxu0 %v3735
  %3737 = vmatprep.subr.mxu0 0.0
  %v3738 = vand.u32 %v3417, 4294901760
  %v3739 = vsub.f32 %v3417, %v3738
  %3740 = vmatpush1.msra.mxu0 %v3739
  %3741 = vmatprep.subr.mxu0 0.0
  %v3742 = vand.u32 %v3418, 4294901760
  %v3743 = vsub.f32 %v3418, %v3742
  %3744 = vmatpush1.msra.mxu0 %v3743
  %3745 = vmatprep.subr.mxu0 0.0
  %v3746 = vand.u32 %v3419, 4294901760
  %v3747 = vsub.f32 %v3419, %v3746
  %3748 = vmatpush1.msra.mxu0 %v3747
  %3749 = vmatprep.subr.mxu0 0.0
  %3750 = vmatpush1.msra.mxu0 0.0
  %3751 = vmatprep.subr.mxu0 0.0
  %3752 = vmatpush1.msra.mxu0 0.0
  %3753 = vmatprep.subr.mxu0 0.0
  %3754 = vmatpush1.msra.mxu0 0.0
  %3755 = vmatprep.subr.mxu0 0.0
  %3756 = vmatpush1.msra.mxu0 0.0
  %3757 = vmatprep.subr.mxu0 0.0
  %3758 = vmatpush1.msra.mxu0 0.0
  %3759 = vmatprep.subr.mxu0 0.0
  %3760 = vmatpush1.msra.mxu0 0.0
  %3761 = vmatprep.subr.mxu0 0.0
  %3762 = vmatpush1.msra.mxu0 0.0
  %3763 = vmatprep.subr.mxu0 0.0
  %3764 = vmatpush1.msra.mxu0 0.0
  %3765 = vmatprep.subr.mxu0 0.0
  %3766 = vmatpush1.msra.mxu0 0.0
  %3767 = vmatprep.subr.mxu0 0.0
  %3768 = vmatpush1.msra.mxu0 0.0
  %3769 = vmatprep.subr.mxu0 0.0
  %3770 = vmatpush1.msra.mxu0 0.0
  %3771 = vmatprep.subr.mxu0 0.0
  %3772 = vmatpush1.msra.mxu0 0.0
  %3773 = vmatprep.subr.mxu0 0.0
  %3774 = vmatpush1.msra.mxu0 0.0
  %3775 = vmatprep.subr.mxu0 0.0
  %3776 = vmatpush1.msra.mxu0 0.0
  %3777 = vmatprep.subr.mxu0 0.0
  %3778 = vmatpush1.msra.mxu0 0.0
  %3779 = vmatprep.subr.mxu0 0.0
  %3780 = vmatpush1.msra.mxu0 0.0
  %3781 = vmatprep.mubr.f32.mxu0 0.0
  %v3782 = vand.u32 %v3402, 4294901760
  %v3783 = vsub.f32 %v3402, %v3782
  %3784 = vmatmul.mubr.f32.gmra.mrb[0].mxu0 %v3783
  %v3785 = vpop.f32.mrb[0].mxu0
  %v3786 = vadd.f32 %v3676, %v3785
  %v3787 = vpop.f32.mrb[0].mxu0
  %3788 = vmatprep.mubr.f32.mxu0 0.0
  %v3789 = vand.u32 %v3403, 4294901760
  %v3790 = vsub.f32 %v3403, %v3789
  %3791 = vmatmul.mubr.f32.gmra.mrb[0].mxu0 %v3790
  %v3792 = vpop.f32.mrb[0].mxu0
  %v3793 = vadd.f32 %v3682, %v3792
  %v3794 = vpop.f32.mrb[0].mxu0
  %3795 = vdwg.mxu0
  %3796 = vmatprep.subr.mxu0 0.0
  %v3797 = vand.u32 %v3404, 4294901760
  %3798 = vmatpush1.msra.mxu0 %v3797
  %3799 = vmatprep.subr.mxu0 0.0
  %v3800 = vand.u32 %v3405, 4294901760
  %3801 = vmatpush1.msra.mxu0 %v3800
  %3802 = vmatprep.subr.mxu0 0.0
  %v3803 = vand.u32 %v3406, 4294901760
  %3804 = vmatpush1.msra.mxu0 %v3803
  %3805 = vmatprep.subr.mxu0 0.0
  %v3806 = vand.u32 %v3407, 4294901760
  %3807 = vmatpush1.msra.mxu0 %v3806
  %3808 = vmatprep.subr.mxu0 0.0
  %v3809 = vand.u32 %v3408, 4294901760
  %3810 = vmatpush1.msra.mxu0 %v3809
  %3811 = vmatprep.subr.mxu0 0.0
  %v3812 = vand.u32 %v3409, 4294901760
  %3813 = vmatpush1.msra.mxu0 %v3812
  %3814 = vmatprep.subr.mxu0 0.0
  %v3815 = vand.u32 %v3410, 4294901760
  %3816 = vmatpush1.msra.mxu0 %v3815
  %3817 = vmatprep.subr.mxu0 0.0
  %v3818 = vand.u32 %v3411, 4294901760
  %3819 = vmatpush1.msra.mxu0 %v3818
  %3820 = vmatprep.subr.mxu0 0.0
  %v3821 = vand.u32 %v3412, 4294901760
  %3822 = vmatpush1.msra.mxu0 %v3821
  %3823 = vmatprep.subr.mxu0 0.0
  %v3824 = vand.u32 %v3413, 4294901760
  %3825 = vmatpush1.msra.mxu0 %v3824
  %3826 = vmatprep.subr.mxu0 0.0
  %v3827 = vand.u32 %v3414, 4294901760
  %3828 = vmatpush1.msra.mxu0 %v3827
  %3829 = vmatprep.subr.mxu0 0.0
  %v3830 = vand.u32 %v3415, 4294901760
  %3831 = vmatpush1.msra.mxu0 %v3830
  %3832 = vmatprep.subr.mxu0 0.0
  %v3833 = vand.u32 %v3416, 4294901760
  %3834 = vmatpush1.msra.mxu0 %v3833
  %3835 = vmatprep.subr.mxu0 0.0
  %v3836 = vand.u32 %v3417, 4294901760
  %3837 = vmatpush1.msra.mxu0 %v3836
  %3838 = vmatprep.subr.mxu0 0.0
  %v3839 = vand.u32 %v3418, 4294901760
  %3840 = vmatpush1.msra.mxu0 %v3839
  %3841 = vmatprep.subr.mxu0 0.0
  %v3842 = vand.u32 %v3419, 4294901760
  %3843 = vmatpush1.msra.mxu0 %v3842
  %3844 = vmatprep.subr.mxu0 0.0
  %3845 = vmatpush1.msra.mxu0 0.0
  %3846 = vmatprep.subr.mxu0 0.0
  %3847 = vmatpush1.msra.mxu0 0.0
  %3848 = vmatprep.subr.mxu0 0.0
  %3849 = vmatpush1.msra.mxu0 0.0
  %3850 = vmatprep.subr.mxu0 0.0
  %3851 = vmatpush1.msra.mxu0 0.0
  %3852 = vmatprep.subr.mxu0 0.0
  %3853 = vmatpush1.msra.mxu0 0.0
  %3854 = vmatprep.subr.mxu0 0.0
  %3855 = vmatpush1.msra.mxu0 0.0
  %3856 = vmatprep.subr.mxu0 0.0
  %3857 = vmatpush1.msra.mxu0 0.0
  %3858 = vmatprep.subr.mxu0 0.0
  %3859 = vmatpush1.msra.mxu0 0.0
  %3860 = vmatprep.subr.mxu0 0.0
  %3861 = vmatpush1.msra.mxu0 0.0
  %3862 = vmatprep.subr.mxu0 0.0
  %3863 = vmatpush1.msra.mxu0 0.0
  %3864 = vmatprep.subr.mxu0 0.0
  %3865 = vmatpush1.msra.mxu0 0.0
  %3866 = vmatprep.subr.mxu0 0.0
  %3867 = vmatpush1.msra.mxu0 0.0
  %3868 = vmatprep.subr.mxu0 0.0
  %3869 = vmatpush1.msra.mxu0 0.0
  %3870 = vmatprep.subr.mxu0 0.0
  %3871 = vmatpush1.msra.mxu0 0.0
  %3872 = vmatprep.subr.mxu0 0.0
  %3873 = vmatpush1.msra.mxu0 0.0
  %3874 = vmatprep.subr.mxu0 0.0
  %3875 = vmatpush1.msra.mxu0 0.0
  %3876 = vmatprep.mubr.f32.mxu0 0.0
  %v3877 = vand.u32 %v3402, 4294901760
  %v3878 = vsub.f32 %v3402, %v3877
  %v3879 = vand.u32 %v3878, 4294901760
  %3880 = vmatmul.mubr.f32.gmra.mrb[0].mxu0 %v3879
  %v3881 = vpop.f32.mrb[0].mxu0
  %v3882 = vadd.f32 %v3786, %v3881
  %v3883 = vpop.f32.mrb[0].mxu0
  %3884 = vmatprep.mubr.f32.mxu0 0.0
  %v3885 = vand.u32 %v3403, 4294901760
  %v3886 = vsub.f32 %v3403, %v3885
  %v3887 = vand.u32 %v3886, 4294901760
  %3888 = vmatmul.mubr.f32.gmra.mrb[0].mxu0 %v3887
  %v3889 = vpop.f32.mrb[0].mxu0
  %v3890 = vadd.f32 %v3793, %v3889
  %v3891 = vpop.f32.mrb[0].mxu0
  %3892 = vdwg.mxu0
  %3893 = vmatprep.subr.mxu0 0.0
  %v3894 = vand.u32 %v3404, 4294901760
  %v3895 = vsub.f32 %v3404, %v3894
  %v3896 = vand.u32 %v3895, 4294901760
  %3897 = vmatpush1.msra.mxu0 %v3896
  %3898 = vmatprep.subr.mxu0 0.0
  %v3899 = vand.u32 %v3405, 4294901760
  %v3900 = vsub.f32 %v3405, %v3899
  %v3901 = vand.u32 %v3900, 4294901760
  %3902 = vmatpush1.msra.mxu0 %v3901
  %3903 = vmatprep.subr.mxu0 0.0
  %v3904 = vand.u32 %v3406, 4294901760
  %v3905 = vsub.f32 %v3406, %v3904
  %v3906 = vand.u32 %v3905, 4294901760
  %3907 = vmatpush1.msra.mxu0 %v3906
  %3908 = vmatprep.subr.mxu0 0.0
  %v3909 = vand.u32 %v3407, 4294901760
  %v3910 = vsub.f32 %v3407, %v3909
  %v3911 = vand.u32 %v3910, 4294901760
  %3912 = vmatpush1.msra.mxu0 %v3911
  %3913 = vmatprep.subr.mxu0 0.0
  %v3914 = vand.u32 %v3408, 4294901760
  %v3915 = vsub.f32 %v3408, %v3914
  %v3916 = vand.u32 %v3915, 4294901760
  %3917 = vmatpush1.msra.mxu0 %v3916
  %3918 = vmatprep.subr.mxu0 0.0
  %v3919 = vand.u32 %v3409, 4294901760
  %v3920 = vsub.f32 %v3409, %v3919
  %v3921 = vand.u32 %v3920, 4294901760
  %3922 = vmatpush1.msra.mxu0 %v3921
  %3923 = vmatprep.subr.mxu0 0.0
  %v3924 = vand.u32 %v3410, 4294901760
  %v3925 = vsub.f32 %v3410, %v3924
  %v3926 = vand.u32 %v3925, 4294901760
  %3927 = vmatpush1.msra.mxu0 %v3926
  %3928 = vmatprep.subr.mxu0 0.0
  %v3929 = vand.u32 %v3411, 4294901760
  %v3930 = vsub.f32 %v3411, %v3929
  %v3931 = vand.u32 %v3930, 4294901760
  %3932 = vmatpush1.msra.mxu0 %v3931
  %3933 = vmatprep.subr.mxu0 0.0
  %v3934 = vand.u32 %v3412, 4294901760
  %v3935 = vsub.f32 %v3412, %v3934
  %v3936 = vand.u32 %v3935, 4294901760
  %3937 = vmatpush1.msra.mxu0 %v3936
  %3938 = vmatprep.subr.mxu0 0.0
  %v3939 = vand.u32 %v3413, 4294901760
  %v3940 = vsub.f32 %v3413, %v3939
  %v3941 = vand.u32 %v3940, 4294901760
  %3942 = vmatpush1.msra.mxu0 %v3941
  %3943 = vmatprep.subr.mxu0 0.0
  %v3944 = vand.u32 %v3414, 4294901760
  %v3945 = vsub.f32 %v3414, %v3944
  %v3946 = vand.u32 %v3945, 4294901760
  %3947 = vmatpush1.msra.mxu0 %v3946
  %3948 = vmatprep.subr.mxu0 0.0
  %v3949 = vand.u32 %v3415, 4294901760
  %v3950 = vsub.f32 %v3415, %v3949
  %v3951 = vand.u32 %v3950, 4294901760
  %3952 = vmatpush1.msra.mxu0 %v3951
  %3953 = vmatprep.subr.mxu0 0.0
  %v3954 = vand.u32 %v3416, 4294901760
  %v3955 = vsub.f32 %v3416, %v3954
  %v3956 = vand.u32 %v3955, 4294901760
  %3957 = vmatpush1.msra.mxu0 %v3956
  %3958 = vmatprep.subr.mxu0 0.0
  %v3959 = vand.u32 %v3417, 4294901760
  %v3960 = vsub.f32 %v3417, %v3959
  %v3961 = vand.u32 %v3960, 4294901760
  %3962 = vmatpush1.msra.mxu0 %v3961
  %3963 = vmatprep.subr.mxu0 0.0
  %v3964 = vand.u32 %v3418, 4294901760
  %v3965 = vsub.f32 %v3418, %v3964
  %v3966 = vand.u32 %v3965, 4294901760
  %3967 = vmatpush1.msra.mxu0 %v3966
  %3968 = vmatprep.subr.mxu0 0.0
  %v3969 = vand.u32 %v3419, 4294901760
  %v3970 = vsub.f32 %v3419, %v3969
  %v3971 = vand.u32 %v3970, 4294901760
  %3972 = vmatpush1.msra.mxu0 %v3971
  %3973 = vmatprep.subr.mxu0 0.0
  %3974 = vmatpush1.msra.mxu0 0.0
  %3975 = vmatprep.subr.mxu0 0.0
  %3976 = vmatpush1.msra.mxu0 0.0
  %3977 = vmatprep.subr.mxu0 0.0
  %3978 = vmatpush1.msra.mxu0 0.0
  %3979 = vmatprep.subr.mxu0 0.0
  %3980 = vmatpush1.msra.mxu0 0.0
  %3981 = vmatprep.subr.mxu0 0.0
  %3982 = vmatpush1.msra.mxu0 0.0
  %3983 = vmatprep.subr.mxu0 0.0
  %3984 = vmatpush1.msra.mxu0 0.0
  %3985 = vmatprep.subr.mxu0 0.0
  %3986 = vmatpush1.msra.mxu0 0.0
  %3987 = vmatprep.subr.mxu0 0.0
  %3988 = vmatpush1.msra.mxu0 0.0
  %3989 = vmatprep.subr.mxu0 0.0
  %3990 = vmatpush1.msra.mxu0 0.0
  %3991 = vmatprep.subr.mxu0 0.0
  %3992 = vmatpush1.msra.mxu0 0.0
  %3993 = vmatprep.subr.mxu0 0.0
  %3994 = vmatpush1.msra.mxu0 0.0
  %3995 = vmatprep.subr.mxu0 0.0
  %3996 = vmatpush1.msra.mxu0 0.0
  %3997 = vmatprep.subr.mxu0 0.0
  %3998 = vmatpush1.msra.mxu0 0.0
  %3999 = vmatprep.subr.mxu0 0.0
  %4000 = vmatpush1.msra.mxu0 0.0
  %4001 = vmatprep.subr.mxu0 0.0
  %4002 = vmatpush1.msra.mxu0 0.0
  %4003 = vmatprep.subr.mxu0 0.0
  %4004 = vmatpush1.msra.mxu0 0.0
  %4005 = vmatprep.mubr.f32.mxu0 0.0
  %v4006 = vand.u32 %v3402, 4294901760
  %4007 = vmatmul.mubr.f32.gmra.mrb[0].mxu0 %v4006
  %v4008 = vpop.f32.mrb[0].mxu0
  %v4009 = vadd.f32 %v3882, %v4008
  %v4010 = vpop.f32.mrb[0].mxu0
  %4011 = vmatprep.mubr.f32.mxu0 0.0
  %v4012 = vand.u32 %v3403, 4294901760
  %4013 = vmatmul.mubr.f32.gmra.mrb[0].mxu0 %v4012
  %v4014 = vpop.f32.mrb[0].mxu0
  %v4015 = vadd.f32 %v3890, %v4014
  %v4016 = vpop.f32.mrb[0].mxu0
  %4017 = vdwg.mxu0
  %4018 = vmatprep.subr.mxu0 0.0
  %v4019 = vand.u32 %v3404, 4294901760
  %4020 = vmatpush1.msra.mxu0 %v4019
  %4021 = vmatprep.subr.mxu0 0.0
  %v4022 = vand.u32 %v3405, 4294901760
  %4023 = vmatpush1.msra.mxu0 %v4022
  %4024 = vmatprep.subr.mxu0 0.0
  %v4025 = vand.u32 %v3406, 4294901760
  %4026 = vmatpush1.msra.mxu0 %v4025
  %4027 = vmatprep.subr.mxu0 0.0
  %v4028 = vand.u32 %v3407, 4294901760
  %4029 = vmatpush1.msra.mxu0 %v4028
  %4030 = vmatprep.subr.mxu0 0.0
  %v4031 = vand.u32 %v3408, 4294901760
  %4032 = vmatpush1.msra.mxu0 %v4031
  %4033 = vmatprep.subr.mxu0 0.0
  %v4034 = vand.u32 %v3409, 4294901760
  %4035 = vmatpush1.msra.mxu0 %v4034
  %4036 = vmatprep.subr.mxu0 0.0
  %v4037 = vand.u32 %v3410, 4294901760
  %4038 = vmatpush1.msra.mxu0 %v4037
  %4039 = vmatprep.subr.mxu0 0.0
  %v4040 = vand.u32 %v3411, 4294901760
  %4041 = vmatpush1.msra.mxu0 %v4040
  %4042 = vmatprep.subr.mxu0 0.0
  %v4043 = vand.u32 %v3412, 4294901760
  %4044 = vmatpush1.msra.mxu0 %v4043
  %4045 = vmatprep.subr.mxu0 0.0
  %v4046 = vand.u32 %v3413, 4294901760
  %4047 = vmatpush1.msra.mxu0 %v4046
  %4048 = vmatprep.subr.mxu0 0.0
  %v4049 = vand.u32 %v3414, 4294901760
  %4050 = vmatpush1.msra.mxu0 %v4049
  %4051 = vmatprep.subr.mxu0 0.0
  %v4052 = vand.u32 %v3415, 4294901760
  %4053 = vmatpush1.msra.mxu0 %v4052
  %4054 = vmatprep.subr.mxu0 0.0
  %v4055 = vand.u32 %v3416, 4294901760
  %4056 = vmatpush1.msra.mxu0 %v4055
  %4057 = vmatprep.subr.mxu0 0.0
  %v4058 = vand.u32 %v3417, 4294901760
  %4059 = vmatpush1.msra.mxu0 %v4058
  %4060 = vmatprep.subr.mxu0 0.0
  %v4061 = vand.u32 %v3418, 4294901760
  %4062 = vmatpush1.msra.mxu0 %v4061
  %4063 = vmatprep.subr.mxu0 0.0
  %v4064 = vand.u32 %v3419, 4294901760
  %4065 = vmatpush1.msra.mxu0 %v4064
  %4066 = vmatprep.subr.mxu0 0.0
  %4067 = vmatpush1.msra.mxu0 0.0
  %4068 = vmatprep.subr.mxu0 0.0
  %4069 = vmatpush1.msra.mxu0 0.0
  %4070 = vmatprep.subr.mxu0 0.0
  %4071 = vmatpush1.msra.mxu0 0.0
  %4072 = vmatprep.subr.mxu0 0.0
  %4073 = vmatpush1.msra.mxu0 0.0
  %4074 = vmatprep.subr.mxu0 0.0
  %4075 = vmatpush1.msra.mxu0 0.0
  %4076 = vmatprep.subr.mxu0 0.0
  %4077 = vmatpush1.msra.mxu0 0.0
  %4078 = vmatprep.subr.mxu0 0.0
  %4079 = vmatpush1.msra.mxu0 0.0
  %4080 = vmatprep.subr.mxu0 0.0
  %4081 = vmatpush1.msra.mxu0 0.0
  %4082 = vmatprep.subr.mxu0 0.0
  %4083 = vmatpush1.msra.mxu0 0.0
  %4084 = vmatprep.subr.mxu0 0.0
  %4085 = vmatpush1.msra.mxu0 0.0
  %4086 = vmatprep.subr.mxu0 0.0
  %4087 = vmatpush1.msra.mxu0 0.0
  %4088 = vmatprep.subr.mxu0 0.0
  %4089 = vmatpush1.msra.mxu0 0.0
  %4090 = vmatprep.subr.mxu0 0.0
  %4091 = vmatpush1.msra.mxu0 0.0
  %4092 = vmatprep.subr.mxu0 0.0
  %4093 = vmatpush1.msra.mxu0 0.0
  %4094 = vmatprep.subr.mxu0 0.0
  %4095 = vmatpush1.msra.mxu0 0.0
  %4096 = vmatprep.subr.mxu0 0.0
  %4097 = vmatpush1.msra.mxu0 0.0
  %4098 = vmatprep.mubr.f32.mxu0 0.0
  %v4099 = vand.u32 %v3402, 4294901760
  %4100 = vmatmul.mubr.f32.gmra.mrb[0].mxu0 %v4099
  %v4101 = vpop.f32.mrb[0].mxu0
  %v4102 = vadd.f32 %v4009, %v4101
  %v4103 = vpop.f32.mrb[0].mxu0
  %4104 = vmatprep.mubr.f32.mxu0 0.0
  %v4105 = vand.u32 %v3403, 4294901760
  %4106 = vmatmul.mubr.f32.gmra.mrb[0].mxu0 %v4105
  %v4107 = vpop.f32.mrb[0].mxu0
  %v4108 = vadd.f32 %v4015, %v4107
  %v4109 = vpop.f32.mrb[0].mxu0
  %4110 = vdwg.mxu0
  %vm4111 = vcmask 80896
  %4112 = vst.msk [vmem:[%s5] sm:$0xff] %vm4111, %v4102
  %4113 = vst.msk [vmem:[%s5 + $0x8] sm:$0xff] %vm4111, %v4108
  // Predicated region
  $region22: #{net_forward.1} parent=0 // pred_check
    _
  $region23: #{net_forward.1} parent=0 // pred_check_branch
    %4115 = sbr.rel (0) target = $region25
  $region24: #{net_forward.1} parent=0 // pred_region
    _
  $region25: #{net_forward.1} parent=0 // pred_fallthru
    _
  // Predicated region
  $region26: #{net_forward.1} parent=0 // pred_check
    _
  $region27: #{net_forward.1} parent=0 // pred_check_branch
    %4117 = sbr.rel (0) target = $region29
  $region28: #{net_forward.1} parent=0 // pred_region
    _
  $region29: #{net_forward.1} parent=0 // pred_fallthru
    _

</llo_original>
